<compile_context>
chip_gen: v7x
topology: tpu7x:2x2x1
jax: 0.10.0
libtpu: 0.0.40
codegen_flags: <defaults>
</compile_context>

<pallas_src>
import functools
import math

import jax
import jax.numpy as jnp
from jax.experimental import pallas as pl
from jax.experimental.pallas import tpu as pltpu

# ---------------- model hyper-parameters (small, deterministic) ----------------
WIN = 400          # frame window (samples)
HOP = 160          # downsample rate (matches get_downsample_rate)
MEL_DIM = 8        # extracter output dim (folded away at init time)
HIDDEN = 32        # transformer hidden size
NUM_HEADS = 4
HEAD_DIM = HIDDEN // NUM_HEADS
FFN_DIM = 64
NUM_LAYERS = 2
LN_EPS = 1e-12     # BERT layernorm eps (Mockingjay uses BERT config)
N_CHUNKS = 3       # ceil(WIN / HOP): framing expressed as 3 chunked matmuls


# ============================== in-kernel helpers ===============================
def _layernorm(x, gamma, beta):
    mu = jnp.mean(x, axis=-1, keepdims=True)
    var = jnp.mean((x - mu) * (x - mu), axis=-1, keepdims=True)
    return (x - mu) * jax.lax.rsqrt(var + LN_EPS) * gamma + beta


def _gelu(x):
    c = jnp.float32(math.sqrt(2.0 / math.pi))
    return 0.5 * x * (1.0 + jnp.tanh(c * (x + 0.044715 * x * x * x)))


# ============================ fused forward kernel ==============================
def _fused_forward_kernel(rows_ref, pe_ref, mask_ref,
                          wfront_ref, bfront_ref, lnin_ref,
                          wqkv_ref, bqkv_ref, wo_ref, bo_ref, ln1_ref,
                          wf1_ref, bf1_ref, wf2_ref, bf2_ref, ln2_ref,
                          o_ref, *, seq_len):
    T = seq_len
    rows = rows_ref[0]                                   # (T + 2, HOP)

    # --- framing + fused extracter/input projection as 3 chunked matmuls ---
    # frame[t] = wav[t*HOP : t*HOP + WIN]  ->  y[t] = sum_c rows[t+c] @ W_front[c]
    h = bfront_ref[...]                                  # (1, HIDDEN) broadcast
    h = h + jnp.dot(rows[0:T], wfront_ref[0], preferred_element_type=jnp.float32)
    h = h + jnp.dot(rows[1:T + 1], wfront_ref[1], preferred_element_type=jnp.float32)
    h = h + jnp.dot(rows[2:T + 2], wfront_ref[2], preferred_element_type=jnp.float32)

    # --- + sinusoidal PE, input LayerNorm (all in VMEM) ---
    lnin = lnin_ref[...]                                 # (2, HIDDEN)
    h = _layernorm(h + pe_ref[...], lnin[0:1, :], lnin[1:2, :])

    mask = mask_ref[0]                                   # (1, T) additive mask
    scale = 1.0 / math.sqrt(HEAD_DIM)

    # --- transformer encoder layers (BERT-style post-LN), fully in-VMEM ---
    for l in range(NUM_LAYERS):
        # fused QKV projection
        qkv = jnp.dot(h, wqkv_ref[l], preferred_element_type=jnp.float32) + bqkv_ref[l]
        wo_l = wo_ref[l]                                 # (HIDDEN, HIDDEN)
        attn = bo_ref[l]                                 # (1, HIDDEN)
        # per-head attention, output projection accumulated head-by-head
        for hd in range(NUM_HEADS):
            q = qkv[:, hd * HEAD_DIM:(hd + 1) * HEAD_DIM]
            k = qkv[:, HIDDEN + hd * HEAD_DIM:HIDDEN + (hd + 1) * HEAD_DIM]
            v = qkv[:, 2 * HIDDEN + hd * HEAD_DIM:2 * HIDDEN + (hd + 1) * HEAD_DIM]
            s = jnp.dot(q, k.T, preferred_element_type=jnp.float32) * scale + mask
            s = s - jnp.max(s, axis=-1, keepdims=True)
            p = jnp.exp(s)
            p = p * pl.reciprocal(jnp.sum(p, axis=-1, keepdims=True), approx=True)
            ctx_h = jnp.dot(p, v, preferred_element_type=jnp.float32)   # (T, dH)
            attn = attn + jnp.dot(ctx_h, wo_l[hd * HEAD_DIM:(hd + 1) * HEAD_DIM, :],
                                  preferred_element_type=jnp.float32)
        ln1 = ln1_ref[l]
        h = _layernorm(h + attn, ln1[0:1, :], ln1[1:2, :])

        # feed-forward
        inter = _gelu(jnp.dot(h, wf1_ref[l], preferred_element_type=jnp.float32)
                      + bf1_ref[l])
        ffn = jnp.dot(inter, wf2_ref[l], preferred_element_type=jnp.float32) + bf2_ref[l]
        ln2 = ln2_ref[l]
        h = _layernorm(h + ffn, ln2[0:1, :], ln2[1:2, :])

    o_ref[0] = h.astype(o_ref.dtype)


def _pallas_forward(rows, pe, add_mask, w):
    """rows: (B, T+2, HOP); pe: (T, H); add_mask: (B, 1, T) -> (B, T, H)."""
    B, R, _ = rows.shape
    T = pe.shape[0]
    kernel = functools.partial(_fused_forward_kernel, seq_len=T)

    def full(arr, ndim):
        return pl.BlockSpec(arr.shape, lambda b, _n=ndim: (0,) * _n)

    in_specs = [
        pl.BlockSpec((1, R, HOP), lambda b: (b, 0, 0)),       # wav rows (per batch)
        full(pe, 2),                                          # positional encoding
        pl.BlockSpec((1, 1, T), lambda b: (b, 0, 0)),         # additive mask
        full(w["W_front"], 3), full(w["b_front"], 2), full(w["ln_in"], 2),
        full(w["W_qkv"], 3), full(w["b_qkv"], 3),
        full(w["W_o"], 3), full(w["b_o"], 3), full(w["ln1"], 3),
        full(w["W_f1"], 3), full(w["b_f1"], 3),
        full(w["W_f2"], 3), full(w["b_f2"], 3), full(w["ln2"], 3),
    ]
    return pl.pallas_call(
        kernel,
        out_shape=jax.ShapeDtypeStruct((B, T, HIDDEN), jnp.float32),
        grid=(B,),
        in_specs=in_specs,
        out_specs=pl.BlockSpec((1, T, HIDDEN), lambda b: (b, 0, 0)),
        compiler_params=pltpu.CompilerParams(
            dimension_semantics=("parallel",)),   # v7x: shard batches across 2 TCs
    )(rows, pe, add_mask,
      w["W_front"], w["b_front"], w["ln_in"],
      w["W_qkv"], w["b_qkv"], w["W_o"], w["b_o"], w["ln1"],
      w["W_f1"], w["b_f1"], w["W_f2"], w["b_f2"], w["ln2"])


# ================================ parameter init ================================
def init_params(seed=0):
    key = jax.random.PRNGKey(seed)
    ks = iter(jax.random.split(key, 64))

    def nrm(shape, std=0.02):
        return std * jax.random.normal(next(ks), shape, dtype=jnp.float32)

    # extracter projection + input linear -> folded into one matrix at init time
    W_ext = nrm((WIN, MEL_DIM))
    b_ext = jnp.zeros((MEL_DIM,), jnp.float32)
    W_in = nrm((MEL_DIM, HIDDEN))
    b_in = jnp.zeros((HIDDEN,), jnp.float32)
    W_fused = W_ext @ W_in                                   # (WIN, HIDDEN)
    b_fused = b_ext @ W_in + b_in                            # (HIDDEN,)
    pad_rows = N_CHUNKS * HOP - WIN                          # 80 zero rows
    W_front = jnp.pad(W_fused, ((0, pad_rows), (0, 0))).reshape(N_CHUNKS, HOP, HIDDEN)

    def ln_pair():
        return jnp.stack([jnp.ones((HIDDEN,), jnp.float32),
                          jnp.zeros((HIDDEN,), jnp.float32)])

    Wqkv, bqkv, Wo, bo, ln1, Wf1, bf1, Wf2, bf2, ln2 = ([] for _ in range(10))
    for _ in range(NUM_LAYERS):
        Wq, Wk, Wv = nrm((HIDDEN, HIDDEN)), nrm((HIDDEN, HIDDEN)), nrm((HIDDEN, HIDDEN))
        Wqkv.append(jnp.concatenate([Wq, Wk, Wv], axis=1))   # (H, 3H) fused QKV
        bqkv.append(jnp.zeros((1, 3 * HIDDEN), jnp.float32))
        Wo.append(nrm((HIDDEN, HIDDEN)))
        bo.append(jnp.zeros((1, HIDDEN), jnp.float32))
        ln1.append(ln_pair())
        Wf1.append(nrm((HIDDEN, FFN_DIM)))
        bf1.append(jnp.zeros((1, FFN_DIM), jnp.float32))
        Wf2.append(nrm((FFN_DIM, HIDDEN)))
        bf2.append(jnp.zeros((1, HIDDEN), jnp.float32))
        ln2.append(ln_pair())

    return {
        "W_front": W_front,
        "b_front": b_fused.reshape(1, HIDDEN),
        "ln_in": ln_pair(),
        "W_qkv": jnp.stack(Wqkv), "b_qkv": jnp.stack(bqkv),
        "W_o": jnp.stack(Wo), "b_o": jnp.stack(bo), "ln1": jnp.stack(ln1),
        "W_f1": jnp.stack(Wf1), "b_f1": jnp.stack(bf1),
        "W_f2": jnp.stack(Wf2), "b_f2": jnp.stack(bf2), "ln2": jnp.stack(ln2),
    }


def sinusoidal_pe(seq_len, dim):
    pos = jnp.arange(seq_len, dtype=jnp.float32)[:, None]
    i = jnp.arange(dim, dtype=jnp.float32)[None, :]
    angle = pos / jnp.power(10000.0, (2.0 * jnp.floor(i / 2.0)) / dim)
    return jnp.where((jnp.arange(dim) % 2) == 0, jnp.sin(angle), jnp.cos(angle))


# ================================ forward pass ==================================
def upstream_expert_forward(wavs, params):
    """wavs: list of unpadded 1-D float32 waveforms -> list of (feat_len_i, HIDDEN)."""
    wav_lengths = [int(w.shape[0]) for w in wavs]
    B = len(wavs)
    L = max(wav_lengths)
    T = (L - WIN) // HOP + 1                   # extracted sequence length (padded)
    R = T + (N_CHUNKS - 1)                     # wav rows needed by the chunked framing
    L_rows = R * HOP                           # covers every sample any frame touches

    # --- pad / truncate each wav and reshape to hop-aligned rows (glue) ---
    def prep(wav):
        wav = wav.astype(jnp.float32)
        n = wav.shape[0]
        if n >= L_rows:
            wav = wav[:L_rows]                 # samples past the last frame are unused
        else:
            wav = jnp.pad(wav, (0, L_rows - n))
        return wav.reshape(R, HOP)

    rows = jnp.stack([prep(w) for w in wavs])  # (B, R, HOP)

    # --- precomputed per-shape constants (hoisted; PE add is fused in-kernel) ---
    pe = sinusoidal_pe(T, HIDDEN)                                   # (T, H)
    n_frames = [min(T, max(1, (l - WIN) // HOP + 1)) for l in wav_lengths]
    valid = (jnp.arange(T)[None, :] < jnp.asarray(n_frames)[:, None]).astype(jnp.float32)
    add_mask = ((1.0 - valid) * -10000.0).reshape(B, 1, T)          # (B, 1, T)

    # --- single fused Pallas kernel: whole network, h resident in VMEM ---
    features = _pallas_forward(rows, pe, add_mask, params)          # (B, T, H)

    # --- per-wav length trimming (exact UpstreamExpert.forward semantics) ---
    ratio = T / wav_lengths[0]
    feat_lengths = [round(l * ratio) for l in wav_lengths]
    return [features[i, : feat_lengths[i]] for i in range(B)]


# ==================================== main ======================================
if __name__ == "__main__":
    key = jax.random.PRNGKey(0)
    k1, k2 = jax.random.split(key)
    # small unpadded waveforms (downsample rate 160, window 400)
    wav0 = jax.random.normal(k1, (2560,), dtype=jnp.float32)
    wav1 = jax.random.normal(k2, (1920,), dtype=jnp.float32)
    wavs = [wav0, wav1]

    params = init_params(seed=0)
    feats = upstream_expert_forward(wavs, params)
    for f in feats:
        jax.block_until_ready(f)

    print("KERNEL_OK")
</pallas_src>

<mosaic_0001>
module attributes {stable_mosaic.version = 11 : i64} {
  func.func @_fused_forward_kernel(%arg0: i32, %arg1: memref<1x16x160xf32, #tpu.memory_space<vmem>>, %arg2: memref<14x32xf32, #tpu.memory_space<vmem>>, %arg3: memref<1x1x14xf32, #tpu.memory_space<vmem>>, %arg4: memref<3x160x32xf32, #tpu.memory_space<vmem>>, %arg5: memref<1x32xf32, #tpu.memory_space<vmem>>, %arg6: memref<2x32xf32, #tpu.memory_space<vmem>>, %arg7: memref<2x32x96xf32, #tpu.memory_space<vmem>>, %arg8: memref<2x1x96xf32, #tpu.memory_space<vmem>>, %arg9: memref<2x32x32xf32, #tpu.memory_space<vmem>>, %arg10: memref<2x1x32xf32, #tpu.memory_space<vmem>>, %arg11: memref<2x2x32xf32, #tpu.memory_space<vmem>>, %arg12: memref<2x32x64xf32, #tpu.memory_space<vmem>>, %arg13: memref<2x1x64xf32, #tpu.memory_space<vmem>>, %arg14: memref<2x64x32xf32, #tpu.memory_space<vmem>>, %arg15: memref<2x1x32xf32, #tpu.memory_space<vmem>>, %arg16: memref<2x2x32xf32, #tpu.memory_space<vmem>>, %arg17: memref<1x14x32xf32, #tpu.memory_space<vmem>>) attributes {dimension_semantics = [#tpu.dimension_semantics<parallel>], iteration_bounds = array<i64: 2>, scalar_prefetch = 0 : i64, scratch_operands = 0 : i64, tpu.core_type = #tpu.core_type<tc>, window_params = [{transform_indices = @transform_0, window_bounds = array<i64: 1, 16, 160>}, {pipeline_mode = #tpu.pipeline_mode<synchronous>, transform_indices = @transform_1, window_bounds = array<i64: 14, 32>}, {transform_indices = @transform_2, window_bounds = array<i64: 1, 1, 14>}, {pipeline_mode = #tpu.pipeline_mode<synchronous>, transform_indices = @transform_3, window_bounds = array<i64: 3, 160, 32>}, {pipeline_mode = #tpu.pipeline_mode<synchronous>, transform_indices = @transform_4, window_bounds = array<i64: 1, 32>}, {pipeline_mode = #tpu.pipeline_mode<synchronous>, transform_indices = @transform_5, window_bounds = array<i64: 2, 32>}, {pipeline_mode = #tpu.pipeline_mode<synchronous>, transform_indices = @transform_6, window_bounds = array<i64: 2, 32, 96>}, {pipeline_mode = #tpu.pipeline_mode<synchronous>, transform_indices = @transform_7, window_bounds = array<i64: 2, 1, 96>}, {pipeline_mode = #tpu.pipeline_mode<synchronous>, transform_indices = @transform_8, window_bounds = array<i64: 2, 32, 32>}, {pipeline_mode = #tpu.pipeline_mode<synchronous>, transform_indices = @transform_9, window_bounds = array<i64: 2, 1, 32>}, {pipeline_mode = #tpu.pipeline_mode<synchronous>, transform_indices = @transform_10, window_bounds = array<i64: 2, 2, 32>}, {pipeline_mode = #tpu.pipeline_mode<synchronous>, transform_indices = @transform_11, window_bounds = array<i64: 2, 32, 64>}, {pipeline_mode = #tpu.pipeline_mode<synchronous>, transform_indices = @transform_12, window_bounds = array<i64: 2, 1, 64>}, {pipeline_mode = #tpu.pipeline_mode<synchronous>, transform_indices = @transform_13, window_bounds = array<i64: 2, 64, 32>}, {pipeline_mode = #tpu.pipeline_mode<synchronous>, transform_indices = @transform_14, window_bounds = array<i64: 2, 1, 32>}, {pipeline_mode = #tpu.pipeline_mode<synchronous>, transform_indices = @transform_15, window_bounds = array<i64: 2, 2, 32>}, {transform_indices = @transform_16, window_bounds = array<i64: 1, 14, 32>}]} {
    %c0 = arith.constant 0 : index
    %c0_0 = arith.constant 0 : index
    %c0_1 = arith.constant 0 : index
    %0 = vector.load %arg1[%c0, %c0_0, %c0_1] : memref<1x16x160xf32, #tpu.memory_space<vmem>>, vector<1x16x160xf32>
    %1 = vector.shape_cast %0 : vector<1x16x160xf32> to vector<16x160xf32>
    %c0_2 = arith.constant 0 : index
    %c0_3 = arith.constant 0 : index
    %2 = vector.load %arg5[%c0_2, %c0_3] : memref<1x32xf32, #tpu.memory_space<vmem>>, vector<1x32xf32>
    %3 = vector.extract_strided_slice %1 {offsets = [0, 0], sizes = [14, 160], strides = [1, 1]} : vector<16x160xf32> to vector<14x160xf32>
    %c0_4 = arith.constant 0 : index
    %c0_5 = arith.constant 0 : index
    %c0_6 = arith.constant 0 : index
    %4 = vector.load %arg4[%c0_4, %c0_5, %c0_6] : memref<3x160x32xf32, #tpu.memory_space<vmem>>, vector<1x160x32xf32>
    %5 = vector.shape_cast %4 : vector<1x160x32xf32> to vector<160x32xf32>
    %cst = arith.constant dense<0.000000e+00> : vector<14x32xf32>
    %6 = tpu.matmul %3, %5, %cst {dimension_numbers = #tpu.dot_dimension_numbers<[1], [0], [0], [1], [0, 0, 1, 1], [], []>} : vector<14x160xf32>, vector<160x32xf32>, vector<14x32xf32> -> vector<14x32xf32>
    %7 = vector.broadcast %2 : vector<1x32xf32> to vector<14x32xf32>
    %8 = arith.addf %7, %6 : vector<14x32xf32>
    %9 = vector.extract_strided_slice %1 {offsets = [1, 0], sizes = [14, 160], strides = [1, 1]} : vector<16x160xf32> to vector<14x160xf32>
    %c1 = arith.constant 1 : index
    %c0_7 = arith.constant 0 : index
    %c0_8 = arith.constant 0 : index
    %10 = vector.load %arg4[%c1, %c0_7, %c0_8] : memref<3x160x32xf32, #tpu.memory_space<vmem>>, vector<1x160x32xf32>
    %11 = vector.shape_cast %10 : vector<1x160x32xf32> to vector<160x32xf32>
    %cst_9 = arith.constant dense<0.000000e+00> : vector<14x32xf32>
    %12 = tpu.matmul %9, %11, %cst_9 {dimension_numbers = #tpu.dot_dimension_numbers<[1], [0], [0], [1], [0, 0, 1, 1], [], []>} : vector<14x160xf32>, vector<160x32xf32>, vector<14x32xf32> -> vector<14x32xf32>
    %13 = arith.addf %8, %12 : vector<14x32xf32>
    %14 = vector.extract_strided_slice %1 {offsets = [2, 0], sizes = [14, 160], strides = [1, 1]} : vector<16x160xf32> to vector<14x160xf32>
    %c2 = arith.constant 2 : index
    %c0_10 = arith.constant 0 : index
    %c0_11 = arith.constant 0 : index
    %15 = vector.load %arg4[%c2, %c0_10, %c0_11] : memref<3x160x32xf32, #tpu.memory_space<vmem>>, vector<1x160x32xf32>
    %16 = vector.shape_cast %15 : vector<1x160x32xf32> to vector<160x32xf32>
    %cst_12 = arith.constant dense<0.000000e+00> : vector<14x32xf32>
    %17 = tpu.matmul %14, %16, %cst_12 {dimension_numbers = #tpu.dot_dimension_numbers<[1], [0], [0], [1], [0, 0, 1, 1], [], []>} : vector<14x160xf32>, vector<160x32xf32>, vector<14x32xf32> -> vector<14x32xf32>
    %18 = arith.addf %13, %17 : vector<14x32xf32>
    %c0_13 = arith.constant 0 : index
    %c0_14 = arith.constant 0 : index
    %19 = vector.load %arg6[%c0_13, %c0_14] : memref<2x32xf32, #tpu.memory_space<vmem>>, vector<2x32xf32>
    %c0_15 = arith.constant 0 : index
    %c0_16 = arith.constant 0 : index
    %20 = vector.load %arg2[%c0_15, %c0_16] : memref<14x32xf32, #tpu.memory_space<vmem>>, vector<14x32xf32>
    %21 = arith.addf %18, %20 : vector<14x32xf32>
    %22 = vector.extract_strided_slice %19 {offsets = [0, 0], sizes = [1, 32], strides = [1, 1]} : vector<2x32xf32> to vector<1x32xf32>
    %23 = vector.extract_strided_slice %19 {offsets = [1, 0], sizes = [1, 32], strides = [1, 1]} : vector<2x32xf32> to vector<1x32xf32>
    %cst_17 = arith.constant dense<0.000000e+00> : vector<14xf32>
    %24 = vector.multi_reduction <add>, %21, %cst_17 [1] : vector<14x32xf32> to vector<14xf32>
    %25 = vector.shape_cast %24 : vector<14xf32> to vector<14x1xf32>
    %cst_18 = arith.constant 3.200000e+01 : f32
    %26 = vector.broadcast %cst_18 : f32 to vector<14x1xf32>
    %27 = arith.divf %25, %26 : vector<14x1xf32>
    %28 = vector.broadcast %27 : vector<14x1xf32> to vector<14x32xf32>
    %29 = arith.subf %21, %28 : vector<14x32xf32>
    %30 = vector.broadcast %27 : vector<14x1xf32> to vector<14x32xf32>
    %31 = arith.subf %21, %30 : vector<14x32xf32>
    %32 = arith.mulf %29, %31 : vector<14x32xf32>
    %cst_19 = arith.constant dense<0.000000e+00> : vector<14xf32>
    %33 = vector.multi_reduction <add>, %32, %cst_19 [1] : vector<14x32xf32> to vector<14xf32>
    %34 = vector.shape_cast %33 : vector<14xf32> to vector<14x1xf32>
    %cst_20 = arith.constant 3.200000e+01 : f32
    %35 = vector.broadcast %cst_20 : f32 to vector<14x1xf32>
    %36 = arith.divf %34, %35 : vector<14x1xf32>
    %37 = vector.broadcast %27 : vector<14x1xf32> to vector<14x32xf32>
    %38 = arith.subf %21, %37 : vector<14x32xf32>
    %cst_21 = arith.constant 9.99999996E-13 : f32
    %39 = vector.broadcast %cst_21 : f32 to vector<14x1xf32>
    %40 = arith.addf %36, %39 : vector<14x1xf32>
    %41 = math.rsqrt %40 : vector<14x1xf32>
    %42 = vector.broadcast %41 : vector<14x1xf32> to vector<14x32xf32>
    %43 = arith.mulf %38, %42 : vector<14x32xf32>
    %44 = vector.broadcast %22 : vector<1x32xf32> to vector<14x32xf32>
    %45 = arith.mulf %43, %44 : vector<14x32xf32>
    %46 = vector.broadcast %23 : vector<1x32xf32> to vector<14x32xf32>
    %47 = arith.addf %45, %46 : vector<14x32xf32>
    %c0_22 = arith.constant 0 : index
    %c0_23 = arith.constant 0 : index
    %c0_24 = arith.constant 0 : index
    %48 = vector.load %arg3[%c0_22, %c0_23, %c0_24] : memref<1x1x14xf32, #tpu.memory_space<vmem>>, vector<1x1x14xf32>
    %49 = vector.shape_cast %48 : vector<1x1x14xf32> to vector<1x14xf32>
    %c0_25 = arith.constant 0 : index
    %c0_26 = arith.constant 0 : index
    %c0_27 = arith.constant 0 : index
    %50 = vector.load %arg7[%c0_25, %c0_26, %c0_27] : memref<2x32x96xf32, #tpu.memory_space<vmem>>, vector<1x32x96xf32>
    %51 = vector.shape_cast %50 : vector<1x32x96xf32> to vector<32x96xf32>
    %cst_28 = arith.constant dense<0.000000e+00> : vector<14x96xf32>
    %52 = tpu.matmul %47, %51, %cst_28 {dimension_numbers = #tpu.dot_dimension_numbers<[1], [0], [0], [1], [0, 0, 1, 1], [], []>} : vector<14x32xf32>, vector<32x96xf32>, vector<14x96xf32> -> vector<14x96xf32>
    %c0_29 = arith.constant 0 : index
    %c0_30 = arith.constant 0 : index
    %c0_31 = arith.constant 0 : index
    %53 = vector.load %arg8[%c0_29, %c0_30, %c0_31] : memref<2x1x96xf32, #tpu.memory_space<vmem>>, vector<1x1x96xf32>
    %54 = vector.shape_cast %53 : vector<1x1x96xf32> to vector<1x96xf32>
    %55 = vector.broadcast %54 : vector<1x96xf32> to vector<14x96xf32>
    %56 = arith.addf %52, %55 : vector<14x96xf32>
    %c0_32 = arith.constant 0 : index
    %c0_33 = arith.constant 0 : index
    %c0_34 = arith.constant 0 : index
    %57 = vector.load %arg9[%c0_32, %c0_33, %c0_34] : memref<2x32x32xf32, #tpu.memory_space<vmem>>, vector<1x32x32xf32>
    %58 = vector.shape_cast %57 : vector<1x32x32xf32> to vector<32x32xf32>
    %c0_35 = arith.constant 0 : index
    %c0_36 = arith.constant 0 : index
    %c0_37 = arith.constant 0 : index
    %59 = vector.load %arg10[%c0_35, %c0_36, %c0_37] : memref<2x1x32xf32, #tpu.memory_space<vmem>>, vector<1x1x32xf32>
    %60 = vector.shape_cast %59 : vector<1x1x32xf32> to vector<1x32xf32>
    %61 = vector.extract_strided_slice %56 {offsets = [0, 0], sizes = [14, 8], strides = [1, 1]} : vector<14x96xf32> to vector<14x8xf32>
    %62 = vector.extract_strided_slice %56 {offsets = [0, 32], sizes = [14, 8], strides = [1, 1]} : vector<14x96xf32> to vector<14x8xf32>
    %63 = vector.extract_strided_slice %56 {offsets = [0, 64], sizes = [14, 8], strides = [1, 1]} : vector<14x96xf32> to vector<14x8xf32>
    %64 = tpu.transpose %62, [1, 0] : vector<14x8xf32> -> vector<8x14xf32>
    %cst_38 = arith.constant dense<0.000000e+00> : vector<14x14xf32>
    %65 = tpu.matmul %61, %64, %cst_38 {dimension_numbers = #tpu.dot_dimension_numbers<[1], [0], [0], [1], [0, 0, 1, 1], [], []>} : vector<14x8xf32>, vector<8x14xf32>, vector<14x14xf32> -> vector<14x14xf32>
    %cst_39 = arith.constant 0.353553385 : f32
    %66 = vector.broadcast %cst_39 : f32 to vector<14x14xf32>
    %67 = arith.mulf %65, %66 : vector<14x14xf32>
    %68 = vector.broadcast %49 : vector<1x14xf32> to vector<14x14xf32>
    %69 = arith.addf %67, %68 : vector<14x14xf32>
    %cst_40 = arith.constant dense<0xFF800000> : vector<14xf32>
    %70 = vector.multi_reduction <maximumf>, %69, %cst_40 [1] : vector<14x14xf32> to vector<14xf32>
    %71 = vector.shape_cast %70 : vector<14xf32> to vector<14x1xf32>
    %72 = vector.broadcast %71 : vector<14x1xf32> to vector<14x14xf32>
    %73 = arith.subf %69, %72 : vector<14x14xf32>
    %74 = math.exp %73 : vector<14x14xf32>
    %cst_41 = arith.constant dense<0.000000e+00> : vector<14xf32>
    %75 = vector.multi_reduction <add>, %74, %cst_41 [1] : vector<14x14xf32> to vector<14xf32>
    %76 = vector.shape_cast %75 : vector<14xf32> to vector<14x1xf32>
    %77 = tpu.reciprocal %76 {approx = true} : vector<14x1xf32> -> vector<14x1xf32>
    %78 = vector.broadcast %77 : vector<14x1xf32> to vector<14x14xf32>
    %79 = arith.mulf %74, %78 : vector<14x14xf32>
    %cst_42 = arith.constant dense<0.000000e+00> : vector<14x8xf32>
    %80 = tpu.matmul %79, %63, %cst_42 {dimension_numbers = #tpu.dot_dimension_numbers<[1], [0], [0], [1], [0, 0, 1, 1], [], []>} : vector<14x14xf32>, vector<14x8xf32>, vector<14x8xf32> -> vector<14x8xf32>
    %81 = vector.extract_strided_slice %58 {offsets = [0, 0], sizes = [8, 32], strides = [1, 1]} : vector<32x32xf32> to vector<8x32xf32>
    %cst_43 = arith.constant dense<0.000000e+00> : vector<14x32xf32>
    %82 = tpu.matmul %80, %81, %cst_43 {dimension_numbers = #tpu.dot_dimension_numbers<[1], [0], [0], [1], [0, 0, 1, 1], [], []>} : vector<14x8xf32>, vector<8x32xf32>, vector<14x32xf32> -> vector<14x32xf32>
    %83 = vector.broadcast %60 : vector<1x32xf32> to vector<14x32xf32>
    %84 = arith.addf %83, %82 : vector<14x32xf32>
    %85 = vector.extract_strided_slice %56 {offsets = [0, 8], sizes = [14, 8], strides = [1, 1]} : vector<14x96xf32> to vector<14x8xf32>
    %86 = vector.extract_strided_slice %56 {offsets = [0, 40], sizes = [14, 8], strides = [1, 1]} : vector<14x96xf32> to vector<14x8xf32>
    %87 = vector.extract_strided_slice %56 {offsets = [0, 72], sizes = [14, 8], strides = [1, 1]} : vector<14x96xf32> to vector<14x8xf32>
    %88 = tpu.transpose %86, [1, 0] : vector<14x8xf32> -> vector<8x14xf32>
    %cst_44 = arith.constant dense<0.000000e+00> : vector<14x14xf32>
    %89 = tpu.matmul %85, %88, %cst_44 {dimension_numbers = #tpu.dot_dimension_numbers<[1], [0], [0], [1], [0, 0, 1, 1], [], []>} : vector<14x8xf32>, vector<8x14xf32>, vector<14x14xf32> -> vector<14x14xf32>
    %cst_45 = arith.constant 0.353553385 : f32
    %90 = vector.broadcast %cst_45 : f32 to vector<14x14xf32>
    %91 = arith.mulf %89, %90 : vector<14x14xf32>
    %92 = vector.broadcast %49 : vector<1x14xf32> to vector<14x14xf32>
    %93 = arith.addf %91, %92 : vector<14x14xf32>
    %cst_46 = arith.constant dense<0xFF800000> : vector<14xf32>
    %94 = vector.multi_reduction <maximumf>, %93, %cst_46 [1] : vector<14x14xf32> to vector<14xf32>
    %95 = vector.shape_cast %94 : vector<14xf32> to vector<14x1xf32>
    %96 = vector.broadcast %95 : vector<14x1xf32> to vector<14x14xf32>
    %97 = arith.subf %93, %96 : vector<14x14xf32>
    %98 = math.exp %97 : vector<14x14xf32>
    %cst_47 = arith.constant dense<0.000000e+00> : vector<14xf32>
    %99 = vector.multi_reduction <add>, %98, %cst_47 [1] : vector<14x14xf32> to vector<14xf32>
    %100 = vector.shape_cast %99 : vector<14xf32> to vector<14x1xf32>
    %101 = tpu.reciprocal %100 {approx = true} : vector<14x1xf32> -> vector<14x1xf32>
    %102 = vector.broadcast %101 : vector<14x1xf32> to vector<14x14xf32>
    %103 = arith.mulf %98, %102 : vector<14x14xf32>
    %cst_48 = arith.constant dense<0.000000e+00> : vector<14x8xf32>
    %104 = tpu.matmul %103, %87, %cst_48 {dimension_numbers = #tpu.dot_dimension_numbers<[1], [0], [0], [1], [0, 0, 1, 1], [], []>} : vector<14x14xf32>, vector<14x8xf32>, vector<14x8xf32> -> vector<14x8xf32>
    %105 = vector.extract_strided_slice %58 {offsets = [8, 0], sizes = [8, 32], strides = [1, 1]} : vector<32x32xf32> to vector<8x32xf32>
    %cst_49 = arith.constant dense<0.000000e+00> : vector<14x32xf32>
    %106 = tpu.matmul %104, %105, %cst_49 {dimension_numbers = #tpu.dot_dimension_numbers<[1], [0], [0], [1], [0, 0, 1, 1], [], []>} : vector<14x8xf32>, vector<8x32xf32>, vector<14x32xf32> -> vector<14x32xf32>
    %107 = arith.addf %84, %106 : vector<14x32xf32>
    %108 = vector.extract_strided_slice %56 {offsets = [0, 16], sizes = [14, 8], strides = [1, 1]} : vector<14x96xf32> to vector<14x8xf32>
    %109 = vector.extract_strided_slice %56 {offsets = [0, 48], sizes = [14, 8], strides = [1, 1]} : vector<14x96xf32> to vector<14x8xf32>
    %110 = vector.extract_strided_slice %56 {offsets = [0, 80], sizes = [14, 8], strides = [1, 1]} : vector<14x96xf32> to vector<14x8xf32>
    %111 = tpu.transpose %109, [1, 0] : vector<14x8xf32> -> vector<8x14xf32>
    %cst_50 = arith.constant dense<0.000000e+00> : vector<14x14xf32>
    %112 = tpu.matmul %108, %111, %cst_50 {dimension_numbers = #tpu.dot_dimension_numbers<[1], [0], [0], [1], [0, 0, 1, 1], [], []>} : vector<14x8xf32>, vector<8x14xf32>, vector<14x14xf32> -> vector<14x14xf32>
    %cst_51 = arith.constant 0.353553385 : f32
    %113 = vector.broadcast %cst_51 : f32 to vector<14x14xf32>
    %114 = arith.mulf %112, %113 : vector<14x14xf32>
    %115 = vector.broadcast %49 : vector<1x14xf32> to vector<14x14xf32>
    %116 = arith.addf %114, %115 : vector<14x14xf32>
    %cst_52 = arith.constant dense<0xFF800000> : vector<14xf32>
    %117 = vector.multi_reduction <maximumf>, %116, %cst_52 [1] : vector<14x14xf32> to vector<14xf32>
    %118 = vector.shape_cast %117 : vector<14xf32> to vector<14x1xf32>
    %119 = vector.broadcast %118 : vector<14x1xf32> to vector<14x14xf32>
    %120 = arith.subf %116, %119 : vector<14x14xf32>
    %121 = math.exp %120 : vector<14x14xf32>
    %cst_53 = arith.constant dense<0.000000e+00> : vector<14xf32>
    %122 = vector.multi_reduction <add>, %121, %cst_53 [1] : vector<14x14xf32> to vector<14xf32>
    %123 = vector.shape_cast %122 : vector<14xf32> to vector<14x1xf32>
    %124 = tpu.reciprocal %123 {approx = true} : vector<14x1xf32> -> vector<14x1xf32>
    %125 = vector.broadcast %124 : vector<14x1xf32> to vector<14x14xf32>
    %126 = arith.mulf %121, %125 : vector<14x14xf32>
    %cst_54 = arith.constant dense<0.000000e+00> : vector<14x8xf32>
    %127 = tpu.matmul %126, %110, %cst_54 {dimension_numbers = #tpu.dot_dimension_numbers<[1], [0], [0], [1], [0, 0, 1, 1], [], []>} : vector<14x14xf32>, vector<14x8xf32>, vector<14x8xf32> -> vector<14x8xf32>
    %128 = vector.extract_strided_slice %58 {offsets = [16, 0], sizes = [8, 32], strides = [1, 1]} : vector<32x32xf32> to vector<8x32xf32>
    %cst_55 = arith.constant dense<0.000000e+00> : vector<14x32xf32>
    %129 = tpu.matmul %127, %128, %cst_55 {dimension_numbers = #tpu.dot_dimension_numbers<[1], [0], [0], [1], [0, 0, 1, 1], [], []>} : vector<14x8xf32>, vector<8x32xf32>, vector<14x32xf32> -> vector<14x32xf32>
    %130 = arith.addf %107, %129 : vector<14x32xf32>
    %131 = vector.extract_strided_slice %56 {offsets = [0, 24], sizes = [14, 8], strides = [1, 1]} : vector<14x96xf32> to vector<14x8xf32>
    %132 = vector.extract_strided_slice %56 {offsets = [0, 56], sizes = [14, 8], strides = [1, 1]} : vector<14x96xf32> to vector<14x8xf32>
    %133 = vector.extract_strided_slice %56 {offsets = [0, 88], sizes = [14, 8], strides = [1, 1]} : vector<14x96xf32> to vector<14x8xf32>
    %134 = tpu.transpose %132, [1, 0] : vector<14x8xf32> -> vector<8x14xf32>
    %cst_56 = arith.constant dense<0.000000e+00> : vector<14x14xf32>
    %135 = tpu.matmul %131, %134, %cst_56 {dimension_numbers = #tpu.dot_dimension_numbers<[1], [0], [0], [1], [0, 0, 1, 1], [], []>} : vector<14x8xf32>, vector<8x14xf32>, vector<14x14xf32> -> vector<14x14xf32>
    %cst_57 = arith.constant 0.353553385 : f32
    %136 = vector.broadcast %cst_57 : f32 to vector<14x14xf32>
    %137 = arith.mulf %135, %136 : vector<14x14xf32>
    %138 = vector.broadcast %49 : vector<1x14xf32> to vector<14x14xf32>
    %139 = arith.addf %137, %138 : vector<14x14xf32>
    %cst_58 = arith.constant dense<0xFF800000> : vector<14xf32>
    %140 = vector.multi_reduction <maximumf>, %139, %cst_58 [1] : vector<14x14xf32> to vector<14xf32>
    %141 = vector.shape_cast %140 : vector<14xf32> to vector<14x1xf32>
    %142 = vector.broadcast %141 : vector<14x1xf32> to vector<14x14xf32>
    %143 = arith.subf %139, %142 : vector<14x14xf32>
    %144 = math.exp %143 : vector<14x14xf32>
    %cst_59 = arith.constant dense<0.000000e+00> : vector<14xf32>
    %145 = vector.multi_reduction <add>, %144, %cst_59 [1] : vector<14x14xf32> to vector<14xf32>
    %146 = vector.shape_cast %145 : vector<14xf32> to vector<14x1xf32>
    %147 = tpu.reciprocal %146 {approx = true} : vector<14x1xf32> -> vector<14x1xf32>
    %148 = vector.broadcast %147 : vector<14x1xf32> to vector<14x14xf32>
    %149 = arith.mulf %144, %148 : vector<14x14xf32>
    %cst_60 = arith.constant dense<0.000000e+00> : vector<14x8xf32>
    %150 = tpu.matmul %149, %133, %cst_60 {dimension_numbers = #tpu.dot_dimension_numbers<[1], [0], [0], [1], [0, 0, 1, 1], [], []>} : vector<14x14xf32>, vector<14x8xf32>, vector<14x8xf32> -> vector<14x8xf32>
    %151 = vector.extract_strided_slice %58 {offsets = [24, 0], sizes = [8, 32], strides = [1, 1]} : vector<32x32xf32> to vector<8x32xf32>
    %cst_61 = arith.constant dense<0.000000e+00> : vector<14x32xf32>
    %152 = tpu.matmul %150, %151, %cst_61 {dimension_numbers = #tpu.dot_dimension_numbers<[1], [0], [0], [1], [0, 0, 1, 1], [], []>} : vector<14x8xf32>, vector<8x32xf32>, vector<14x32xf32> -> vector<14x32xf32>
    %153 = arith.addf %130, %152 : vector<14x32xf32>
    %c0_62 = arith.constant 0 : index
    %c0_63 = arith.constant 0 : index
    %c0_64 = arith.constant 0 : index
    %154 = vector.load %arg11[%c0_62, %c0_63, %c0_64] : memref<2x2x32xf32, #tpu.memory_space<vmem>>, vector<1x2x32xf32>
    %155 = vector.shape_cast %154 : vector<1x2x32xf32> to vector<2x32xf32>
    %156 = arith.addf %47, %153 : vector<14x32xf32>
    %157 = vector.extract_strided_slice %155 {offsets = [0, 0], sizes = [1, 32], strides = [1, 1]} : vector<2x32xf32> to vector<1x32xf32>
    %158 = vector.extract_strided_slice %155 {offsets = [1, 0], sizes = [1, 32], strides = [1, 1]} : vector<2x32xf32> to vector<1x32xf32>
    %cst_65 = arith.constant dense<0.000000e+00> : vector<14xf32>
    %159 = vector.multi_reduction <add>, %156, %cst_65 [1] : vector<14x32xf32> to vector<14xf32>
    %160 = vector.shape_cast %159 : vector<14xf32> to vector<14x1xf32>
    %cst_66 = arith.constant 3.200000e+01 : f32
    %161 = vector.broadcast %cst_66 : f32 to vector<14x1xf32>
    %162 = arith.divf %160, %161 : vector<14x1xf32>
    %163 = vector.broadcast %162 : vector<14x1xf32> to vector<14x32xf32>
    %164 = arith.subf %156, %163 : vector<14x32xf32>
    %165 = vector.broadcast %162 : vector<14x1xf32> to vector<14x32xf32>
    %166 = arith.subf %156, %165 : vector<14x32xf32>
    %167 = arith.mulf %164, %166 : vector<14x32xf32>
    %cst_67 = arith.constant dense<0.000000e+00> : vector<14xf32>
    %168 = vector.multi_reduction <add>, %167, %cst_67 [1] : vector<14x32xf32> to vector<14xf32>
    %169 = vector.shape_cast %168 : vector<14xf32> to vector<14x1xf32>
    %cst_68 = arith.constant 3.200000e+01 : f32
    %170 = vector.broadcast %cst_68 : f32 to vector<14x1xf32>
    %171 = arith.divf %169, %170 : vector<14x1xf32>
    %172 = vector.broadcast %162 : vector<14x1xf32> to vector<14x32xf32>
    %173 = arith.subf %156, %172 : vector<14x32xf32>
    %cst_69 = arith.constant 9.99999996E-13 : f32
    %174 = vector.broadcast %cst_69 : f32 to vector<14x1xf32>
    %175 = arith.addf %171, %174 : vector<14x1xf32>
    %176 = math.rsqrt %175 : vector<14x1xf32>
    %177 = vector.broadcast %176 : vector<14x1xf32> to vector<14x32xf32>
    %178 = arith.mulf %173, %177 : vector<14x32xf32>
    %179 = vector.broadcast %157 : vector<1x32xf32> to vector<14x32xf32>
    %180 = arith.mulf %178, %179 : vector<14x32xf32>
    %181 = vector.broadcast %158 : vector<1x32xf32> to vector<14x32xf32>
    %182 = arith.addf %180, %181 : vector<14x32xf32>
    %c0_70 = arith.constant 0 : index
    %c0_71 = arith.constant 0 : index
    %c0_72 = arith.constant 0 : index
    %183 = vector.load %arg12[%c0_70, %c0_71, %c0_72] : memref<2x32x64xf32, #tpu.memory_space<vmem>>, vector<1x32x64xf32>
    %184 = vector.shape_cast %183 : vector<1x32x64xf32> to vector<32x64xf32>
    %cst_73 = arith.constant dense<0.000000e+00> : vector<14x64xf32>
    %185 = tpu.matmul %182, %184, %cst_73 {dimension_numbers = #tpu.dot_dimension_numbers<[1], [0], [0], [1], [0, 0, 1, 1], [], []>} : vector<14x32xf32>, vector<32x64xf32>, vector<14x64xf32> -> vector<14x64xf32>
    %c0_74 = arith.constant 0 : index
    %c0_75 = arith.constant 0 : index
    %c0_76 = arith.constant 0 : index
    %186 = vector.load %arg13[%c0_74, %c0_75, %c0_76] : memref<2x1x64xf32, #tpu.memory_space<vmem>>, vector<1x1x64xf32>
    %187 = vector.shape_cast %186 : vector<1x1x64xf32> to vector<1x64xf32>
    %188 = vector.broadcast %187 : vector<1x64xf32> to vector<14x64xf32>
    %189 = arith.addf %185, %188 : vector<14x64xf32>
    %cst_77 = arith.constant 5.000000e-01 : f32
    %190 = vector.broadcast %cst_77 : f32 to vector<14x64xf32>
    %191 = arith.mulf %190, %189 : vector<14x64xf32>
    %cst_78 = arith.constant 4.471500e-02 : f32
    %192 = vector.broadcast %cst_78 : f32 to vector<14x64xf32>
    %193 = arith.mulf %192, %189 : vector<14x64xf32>
    %194 = arith.mulf %193, %189 : vector<14x64xf32>
    %195 = arith.mulf %194, %189 : vector<14x64xf32>
    %196 = arith.addf %189, %195 : vector<14x64xf32>
    %cst_79 = arith.constant 0.797884583 : f32
    %197 = vector.broadcast %cst_79 : f32 to vector<14x64xf32>
    %198 = arith.mulf %197, %196 : vector<14x64xf32>
    %199 = math.tanh %198 : vector<14x64xf32>
    %cst_80 = arith.constant 1.000000e+00 : f32
    %200 = vector.broadcast %cst_80 : f32 to vector<14x64xf32>
    %201 = arith.addf %200, %199 : vector<14x64xf32>
    %202 = arith.mulf %191, %201 : vector<14x64xf32>
    %c0_81 = arith.constant 0 : index
    %c0_82 = arith.constant 0 : index
    %c0_83 = arith.constant 0 : index
    %203 = vector.load %arg14[%c0_81, %c0_82, %c0_83] : memref<2x64x32xf32, #tpu.memory_space<vmem>>, vector<1x64x32xf32>
    %204 = vector.shape_cast %203 : vector<1x64x32xf32> to vector<64x32xf32>
    %cst_84 = arith.constant dense<0.000000e+00> : vector<14x32xf32>
    %205 = tpu.matmul %202, %204, %cst_84 {dimension_numbers = #tpu.dot_dimension_numbers<[1], [0], [0], [1], [0, 0, 1, 1], [], []>} : vector<14x64xf32>, vector<64x32xf32>, vector<14x32xf32> -> vector<14x32xf32>
    %c0_85 = arith.constant 0 : index
    %c0_86 = arith.constant 0 : index
    %c0_87 = arith.constant 0 : index
    %206 = vector.load %arg15[%c0_85, %c0_86, %c0_87] : memref<2x1x32xf32, #tpu.memory_space<vmem>>, vector<1x1x32xf32>
    %207 = vector.shape_cast %206 : vector<1x1x32xf32> to vector<1x32xf32>
    %208 = vector.broadcast %207 : vector<1x32xf32> to vector<14x32xf32>
    %209 = arith.addf %205, %208 : vector<14x32xf32>
    %c0_88 = arith.constant 0 : index
    %c0_89 = arith.constant 0 : index
    %c0_90 = arith.constant 0 : index
    %210 = vector.load %arg16[%c0_88, %c0_89, %c0_90] : memref<2x2x32xf32, #tpu.memory_space<vmem>>, vector<1x2x32xf32>
    %211 = vector.shape_cast %210 : vector<1x2x32xf32> to vector<2x32xf32>
    %212 = arith.addf %182, %209 : vector<14x32xf32>
    %213 = vector.extract_strided_slice %211 {offsets = [0, 0], sizes = [1, 32], strides = [1, 1]} : vector<2x32xf32> to vector<1x32xf32>
    %214 = vector.extract_strided_slice %211 {offsets = [1, 0], sizes = [1, 32], strides = [1, 1]} : vector<2x32xf32> to vector<1x32xf32>
    %cst_91 = arith.constant dense<0.000000e+00> : vector<14xf32>
    %215 = vector.multi_reduction <add>, %212, %cst_91 [1] : vector<14x32xf32> to vector<14xf32>
    %216 = vector.shape_cast %215 : vector<14xf32> to vector<14x1xf32>
    %cst_92 = arith.constant 3.200000e+01 : f32
    %217 = vector.broadcast %cst_92 : f32 to vector<14x1xf32>
    %218 = arith.divf %216, %217 : vector<14x1xf32>
    %219 = vector.broadcast %218 : vector<14x1xf32> to vector<14x32xf32>
    %220 = arith.subf %212, %219 : vector<14x32xf32>
    %221 = vector.broadcast %218 : vector<14x1xf32> to vector<14x32xf32>
    %222 = arith.subf %212, %221 : vector<14x32xf32>
    %223 = arith.mulf %220, %222 : vector<14x32xf32>
    %cst_93 = arith.constant dense<0.000000e+00> : vector<14xf32>
    %224 = vector.multi_reduction <add>, %223, %cst_93 [1] : vector<14x32xf32> to vector<14xf32>
    %225 = vector.shape_cast %224 : vector<14xf32> to vector<14x1xf32>
    %cst_94 = arith.constant 3.200000e+01 : f32
    %226 = vector.broadcast %cst_94 : f32 to vector<14x1xf32>
    %227 = arith.divf %225, %226 : vector<14x1xf32>
    %228 = vector.broadcast %218 : vector<14x1xf32> to vector<14x32xf32>
    %229 = arith.subf %212, %228 : vector<14x32xf32>
    %cst_95 = arith.constant 9.99999996E-13 : f32
    %230 = vector.broadcast %cst_95 : f32 to vector<14x1xf32>
    %231 = arith.addf %227, %230 : vector<14x1xf32>
    %232 = math.rsqrt %231 : vector<14x1xf32>
    %233 = vector.broadcast %232 : vector<14x1xf32> to vector<14x32xf32>
    %234 = arith.mulf %229, %233 : vector<14x32xf32>
    %235 = vector.broadcast %213 : vector<1x32xf32> to vector<14x32xf32>
    %236 = arith.mulf %234, %235 : vector<14x32xf32>
    %237 = vector.broadcast %214 : vector<1x32xf32> to vector<14x32xf32>
    %238 = arith.addf %236, %237 : vector<14x32xf32>
    %c1_96 = arith.constant 1 : index
    %c0_97 = arith.constant 0 : index
    %c0_98 = arith.constant 0 : index
    %239 = vector.load %arg7[%c1_96, %c0_97, %c0_98] : memref<2x32x96xf32, #tpu.memory_space<vmem>>, vector<1x32x96xf32>
    %240 = vector.shape_cast %239 : vector<1x32x96xf32> to vector<32x96xf32>
    %cst_99 = arith.constant dense<0.000000e+00> : vector<14x96xf32>
    %241 = tpu.matmul %238, %240, %cst_99 {dimension_numbers = #tpu.dot_dimension_numbers<[1], [0], [0], [1], [0, 0, 1, 1], [], []>} : vector<14x32xf32>, vector<32x96xf32>, vector<14x96xf32> -> vector<14x96xf32>
    %c1_100 = arith.constant 1 : index
    %c0_101 = arith.constant 0 : index
    %c0_102 = arith.constant 0 : index
    %242 = vector.load %arg8[%c1_100, %c0_101, %c0_102] : memref<2x1x96xf32, #tpu.memory_space<vmem>>, vector<1x1x96xf32>
    %243 = vector.shape_cast %242 : vector<1x1x96xf32> to vector<1x96xf32>
    %244 = vector.broadcast %243 : vector<1x96xf32> to vector<14x96xf32>
    %245 = arith.addf %241, %244 : vector<14x96xf32>
    %c1_103 = arith.constant 1 : index
    %c0_104 = arith.constant 0 : index
    %c0_105 = arith.constant 0 : index
    %246 = vector.load %arg9[%c1_103, %c0_104, %c0_105] : memref<2x32x32xf32, #tpu.memory_space<vmem>>, vector<1x32x32xf32>
    %247 = vector.shape_cast %246 : vector<1x32x32xf32> to vector<32x32xf32>
    %c1_106 = arith.constant 1 : index
    %c0_107 = arith.constant 0 : index
    %c0_108 = arith.constant 0 : index
    %248 = vector.load %arg10[%c1_106, %c0_107, %c0_108] : memref<2x1x32xf32, #tpu.memory_space<vmem>>, vector<1x1x32xf32>
    %249 = vector.shape_cast %248 : vector<1x1x32xf32> to vector<1x32xf32>
    %250 = vector.extract_strided_slice %245 {offsets = [0, 0], sizes = [14, 8], strides = [1, 1]} : vector<14x96xf32> to vector<14x8xf32>
    %251 = vector.extract_strided_slice %245 {offsets = [0, 32], sizes = [14, 8], strides = [1, 1]} : vector<14x96xf32> to vector<14x8xf32>
    %252 = vector.extract_strided_slice %245 {offsets = [0, 64], sizes = [14, 8], strides = [1, 1]} : vector<14x96xf32> to vector<14x8xf32>
    %253 = tpu.transpose %251, [1, 0] : vector<14x8xf32> -> vector<8x14xf32>
    %cst_109 = arith.constant dense<0.000000e+00> : vector<14x14xf32>
    %254 = tpu.matmul %250, %253, %cst_109 {dimension_numbers = #tpu.dot_dimension_numbers<[1], [0], [0], [1], [0, 0, 1, 1], [], []>} : vector<14x8xf32>, vector<8x14xf32>, vector<14x14xf32> -> vector<14x14xf32>
    %cst_110 = arith.constant 0.353553385 : f32
    %255 = vector.broadcast %cst_110 : f32 to vector<14x14xf32>
    %256 = arith.mulf %254, %255 : vector<14x14xf32>
    %257 = vector.broadcast %49 : vector<1x14xf32> to vector<14x14xf32>
    %258 = arith.addf %256, %257 : vector<14x14xf32>
    %cst_111 = arith.constant dense<0xFF800000> : vector<14xf32>
    %259 = vector.multi_reduction <maximumf>, %258, %cst_111 [1] : vector<14x14xf32> to vector<14xf32>
    %260 = vector.shape_cast %259 : vector<14xf32> to vector<14x1xf32>
    %261 = vector.broadcast %260 : vector<14x1xf32> to vector<14x14xf32>
    %262 = arith.subf %258, %261 : vector<14x14xf32>
    %263 = math.exp %262 : vector<14x14xf32>
    %cst_112 = arith.constant dense<0.000000e+00> : vector<14xf32>
    %264 = vector.multi_reduction <add>, %263, %cst_112 [1] : vector<14x14xf32> to vector<14xf32>
    %265 = vector.shape_cast %264 : vector<14xf32> to vector<14x1xf32>
    %266 = tpu.reciprocal %265 {approx = true} : vector<14x1xf32> -> vector<14x1xf32>
    %267 = vector.broadcast %266 : vector<14x1xf32> to vector<14x14xf32>
    %268 = arith.mulf %263, %267 : vector<14x14xf32>
    %cst_113 = arith.constant dense<0.000000e+00> : vector<14x8xf32>
    %269 = tpu.matmul %268, %252, %cst_113 {dimension_numbers = #tpu.dot_dimension_numbers<[1], [0], [0], [1], [0, 0, 1, 1], [], []>} : vector<14x14xf32>, vector<14x8xf32>, vector<14x8xf32> -> vector<14x8xf32>
    %270 = vector.extract_strided_slice %247 {offsets = [0, 0], sizes = [8, 32], strides = [1, 1]} : vector<32x32xf32> to vector<8x32xf32>
    %cst_114 = arith.constant dense<0.000000e+00> : vector<14x32xf32>
    %271 = tpu.matmul %269, %270, %cst_114 {dimension_numbers = #tpu.dot_dimension_numbers<[1], [0], [0], [1], [0, 0, 1, 1], [], []>} : vector<14x8xf32>, vector<8x32xf32>, vector<14x32xf32> -> vector<14x32xf32>
    %272 = vector.broadcast %249 : vector<1x32xf32> to vector<14x32xf32>
    %273 = arith.addf %272, %271 : vector<14x32xf32>
    %274 = vector.extract_strided_slice %245 {offsets = [0, 8], sizes = [14, 8], strides = [1, 1]} : vector<14x96xf32> to vector<14x8xf32>
    %275 = vector.extract_strided_slice %245 {offsets = [0, 40], sizes = [14, 8], strides = [1, 1]} : vector<14x96xf32> to vector<14x8xf32>
    %276 = vector.extract_strided_slice %245 {offsets = [0, 72], sizes = [14, 8], strides = [1, 1]} : vector<14x96xf32> to vector<14x8xf32>
    %277 = tpu.transpose %275, [1, 0] : vector<14x8xf32> -> vector<8x14xf32>
    %cst_115 = arith.constant dense<0.000000e+00> : vector<14x14xf32>
    %278 = tpu.matmul %274, %277, %cst_115 {dimension_numbers = #tpu.dot_dimension_numbers<[1], [0], [0], [1], [0, 0, 1, 1], [], []>} : vector<14x8xf32>, vector<8x14xf32>, vector<14x14xf32> -> vector<14x14xf32>
    %cst_116 = arith.constant 0.353553385 : f32
    %279 = vector.broadcast %cst_116 : f32 to vector<14x14xf32>
    %280 = arith.mulf %278, %279 : vector<14x14xf32>
    %281 = vector.broadcast %49 : vector<1x14xf32> to vector<14x14xf32>
    %282 = arith.addf %280, %281 : vector<14x14xf32>
    %cst_117 = arith.constant dense<0xFF800000> : vector<14xf32>
    %283 = vector.multi_reduction <maximumf>, %282, %cst_117 [1] : vector<14x14xf32> to vector<14xf32>
    %284 = vector.shape_cast %283 : vector<14xf32> to vector<14x1xf32>
    %285 = vector.broadcast %284 : vector<14x1xf32> to vector<14x14xf32>
    %286 = arith.subf %282, %285 : vector<14x14xf32>
    %287 = math.exp %286 : vector<14x14xf32>
    %cst_118 = arith.constant dense<0.000000e+00> : vector<14xf32>
    %288 = vector.multi_reduction <add>, %287, %cst_118 [1] : vector<14x14xf32> to vector<14xf32>
    %289 = vector.shape_cast %288 : vector<14xf32> to vector<14x1xf32>
    %290 = tpu.reciprocal %289 {approx = true} : vector<14x1xf32> -> vector<14x1xf32>
    %291 = vector.broadcast %290 : vector<14x1xf32> to vector<14x14xf32>
    %292 = arith.mulf %287, %291 : vector<14x14xf32>
    %cst_119 = arith.constant dense<0.000000e+00> : vector<14x8xf32>
    %293 = tpu.matmul %292, %276, %cst_119 {dimension_numbers = #tpu.dot_dimension_numbers<[1], [0], [0], [1], [0, 0, 1, 1], [], []>} : vector<14x14xf32>, vector<14x8xf32>, vector<14x8xf32> -> vector<14x8xf32>
    %294 = vector.extract_strided_slice %247 {offsets = [8, 0], sizes = [8, 32], strides = [1, 1]} : vector<32x32xf32> to vector<8x32xf32>
    %cst_120 = arith.constant dense<0.000000e+00> : vector<14x32xf32>
    %295 = tpu.matmul %293, %294, %cst_120 {dimension_numbers = #tpu.dot_dimension_numbers<[1], [0], [0], [1], [0, 0, 1, 1], [], []>} : vector<14x8xf32>, vector<8x32xf32>, vector<14x32xf32> -> vector<14x32xf32>
    %296 = arith.addf %273, %295 : vector<14x32xf32>
    %297 = vector.extract_strided_slice %245 {offsets = [0, 16], sizes = [14, 8], strides = [1, 1]} : vector<14x96xf32> to vector<14x8xf32>
    %298 = vector.extract_strided_slice %245 {offsets = [0, 48], sizes = [14, 8], strides = [1, 1]} : vector<14x96xf32> to vector<14x8xf32>
    %299 = vector.extract_strided_slice %245 {offsets = [0, 80], sizes = [14, 8], strides = [1, 1]} : vector<14x96xf32> to vector<14x8xf32>
    %300 = tpu.transpose %298, [1, 0] : vector<14x8xf32> -> vector<8x14xf32>
    %cst_121 = arith.constant dense<0.000000e+00> : vector<14x14xf32>
    %301 = tpu.matmul %297, %300, %cst_121 {dimension_numbers = #tpu.dot_dimension_numbers<[1], [0], [0], [1], [0, 0, 1, 1], [], []>} : vector<14x8xf32>, vector<8x14xf32>, vector<14x14xf32> -> vector<14x14xf32>
    %cst_122 = arith.constant 0.353553385 : f32
    %302 = vector.broadcast %cst_122 : f32 to vector<14x14xf32>
    %303 = arith.mulf %301, %302 : vector<14x14xf32>
    %304 = vector.broadcast %49 : vector<1x14xf32> to vector<14x14xf32>
    %305 = arith.addf %303, %304 : vector<14x14xf32>
    %cst_123 = arith.constant dense<0xFF800000> : vector<14xf32>
    %306 = vector.multi_reduction <maximumf>, %305, %cst_123 [1] : vector<14x14xf32> to vector<14xf32>
    %307 = vector.shape_cast %306 : vector<14xf32> to vector<14x1xf32>
    %308 = vector.broadcast %307 : vector<14x1xf32> to vector<14x14xf32>
    %309 = arith.subf %305, %308 : vector<14x14xf32>
    %310 = math.exp %309 : vector<14x14xf32>
    %cst_124 = arith.constant dense<0.000000e+00> : vector<14xf32>
    %311 = vector.multi_reduction <add>, %310, %cst_124 [1] : vector<14x14xf32> to vector<14xf32>
    %312 = vector.shape_cast %311 : vector<14xf32> to vector<14x1xf32>
    %313 = tpu.reciprocal %312 {approx = true} : vector<14x1xf32> -> vector<14x1xf32>
    %314 = vector.broadcast %313 : vector<14x1xf32> to vector<14x14xf32>
    %315 = arith.mulf %310, %314 : vector<14x14xf32>
    %cst_125 = arith.constant dense<0.000000e+00> : vector<14x8xf32>
    %316 = tpu.matmul %315, %299, %cst_125 {dimension_numbers = #tpu.dot_dimension_numbers<[1], [0], [0], [1], [0, 0, 1, 1], [], []>} : vector<14x14xf32>, vector<14x8xf32>, vector<14x8xf32> -> vector<14x8xf32>
    %317 = vector.extract_strided_slice %247 {offsets = [16, 0], sizes = [8, 32], strides = [1, 1]} : vector<32x32xf32> to vector<8x32xf32>
    %cst_126 = arith.constant dense<0.000000e+00> : vector<14x32xf32>
    %318 = tpu.matmul %316, %317, %cst_126 {dimension_numbers = #tpu.dot_dimension_numbers<[1], [0], [0], [1], [0, 0, 1, 1], [], []>} : vector<14x8xf32>, vector<8x32xf32>, vector<14x32xf32> -> vector<14x32xf32>
    %319 = arith.addf %296, %318 : vector<14x32xf32>
    %320 = vector.extract_strided_slice %245 {offsets = [0, 24], sizes = [14, 8], strides = [1, 1]} : vector<14x96xf32> to vector<14x8xf32>
    %321 = vector.extract_strided_slice %245 {offsets = [0, 56], sizes = [14, 8], strides = [1, 1]} : vector<14x96xf32> to vector<14x8xf32>
    %322 = vector.extract_strided_slice %245 {offsets = [0, 88], sizes = [14, 8], strides = [1, 1]} : vector<14x96xf32> to vector<14x8xf32>
    %323 = tpu.transpose %321, [1, 0] : vector<14x8xf32> -> vector<8x14xf32>
    %cst_127 = arith.constant dense<0.000000e+00> : vector<14x14xf32>
    %324 = tpu.matmul %320, %323, %cst_127 {dimension_numbers = #tpu.dot_dimension_numbers<[1], [0], [0], [1], [0, 0, 1, 1], [], []>} : vector<14x8xf32>, vector<8x14xf32>, vector<14x14xf32> -> vector<14x14xf32>
    %cst_128 = arith.constant 0.353553385 : f32
    %325 = vector.broadcast %cst_128 : f32 to vector<14x14xf32>
    %326 = arith.mulf %324, %325 : vector<14x14xf32>
    %327 = vector.broadcast %49 : vector<1x14xf32> to vector<14x14xf32>
    %328 = arith.addf %326, %327 : vector<14x14xf32>
    %cst_129 = arith.constant dense<0xFF800000> : vector<14xf32>
    %329 = vector.multi_reduction <maximumf>, %328, %cst_129 [1] : vector<14x14xf32> to vector<14xf32>
    %330 = vector.shape_cast %329 : vector<14xf32> to vector<14x1xf32>
    %331 = vector.broadcast %330 : vector<14x1xf32> to vector<14x14xf32>
    %332 = arith.subf %328, %331 : vector<14x14xf32>
    %333 = math.exp %332 : vector<14x14xf32>
    %cst_130 = arith.constant dense<0.000000e+00> : vector<14xf32>
    %334 = vector.multi_reduction <add>, %333, %cst_130 [1] : vector<14x14xf32> to vector<14xf32>
    %335 = vector.shape_cast %334 : vector<14xf32> to vector<14x1xf32>
    %336 = tpu.reciprocal %335 {approx = true} : vector<14x1xf32> -> vector<14x1xf32>
    %337 = vector.broadcast %336 : vector<14x1xf32> to vector<14x14xf32>
    %338 = arith.mulf %333, %337 : vector<14x14xf32>
    %cst_131 = arith.constant dense<0.000000e+00> : vector<14x8xf32>
    %339 = tpu.matmul %338, %322, %cst_131 {dimension_numbers = #tpu.dot_dimension_numbers<[1], [0], [0], [1], [0, 0, 1, 1], [], []>} : vector<14x14xf32>, vector<14x8xf32>, vector<14x8xf32> -> vector<14x8xf32>
    %340 = vector.extract_strided_slice %247 {offsets = [24, 0], sizes = [8, 32], strides = [1, 1]} : vector<32x32xf32> to vector<8x32xf32>
    %cst_132 = arith.constant dense<0.000000e+00> : vector<14x32xf32>
    %341 = tpu.matmul %339, %340, %cst_132 {dimension_numbers = #tpu.dot_dimension_numbers<[1], [0], [0], [1], [0, 0, 1, 1], [], []>} : vector<14x8xf32>, vector<8x32xf32>, vector<14x32xf32> -> vector<14x32xf32>
    %342 = arith.addf %319, %341 : vector<14x32xf32>
    %c1_133 = arith.constant 1 : index
    %c0_134 = arith.constant 0 : index
    %c0_135 = arith.constant 0 : index
    %343 = vector.load %arg11[%c1_133, %c0_134, %c0_135] : memref<2x2x32xf32, #tpu.memory_space<vmem>>, vector<1x2x32xf32>
    %344 = vector.shape_cast %343 : vector<1x2x32xf32> to vector<2x32xf32>
    %345 = arith.addf %238, %342 : vector<14x32xf32>
    %346 = vector.extract_strided_slice %344 {offsets = [0, 0], sizes = [1, 32], strides = [1, 1]} : vector<2x32xf32> to vector<1x32xf32>
    %347 = vector.extract_strided_slice %344 {offsets = [1, 0], sizes = [1, 32], strides = [1, 1]} : vector<2x32xf32> to vector<1x32xf32>
    %cst_136 = arith.constant dense<0.000000e+00> : vector<14xf32>
    %348 = vector.multi_reduction <add>, %345, %cst_136 [1] : vector<14x32xf32> to vector<14xf32>
    %349 = vector.shape_cast %348 : vector<14xf32> to vector<14x1xf32>
    %cst_137 = arith.constant 3.200000e+01 : f32
    %350 = vector.broadcast %cst_137 : f32 to vector<14x1xf32>
    %351 = arith.divf %349, %350 : vector<14x1xf32>
    %352 = vector.broadcast %351 : vector<14x1xf32> to vector<14x32xf32>
    %353 = arith.subf %345, %352 : vector<14x32xf32>
    %354 = vector.broadcast %351 : vector<14x1xf32> to vector<14x32xf32>
    %355 = arith.subf %345, %354 : vector<14x32xf32>
    %356 = arith.mulf %353, %355 : vector<14x32xf32>
    %cst_138 = arith.constant dense<0.000000e+00> : vector<14xf32>
    %357 = vector.multi_reduction <add>, %356, %cst_138 [1] : vector<14x32xf32> to vector<14xf32>
    %358 = vector.shape_cast %357 : vector<14xf32> to vector<14x1xf32>
    %cst_139 = arith.constant 3.200000e+01 : f32
    %359 = vector.broadcast %cst_139 : f32 to vector<14x1xf32>
    %360 = arith.divf %358, %359 : vector<14x1xf32>
    %361 = vector.broadcast %351 : vector<14x1xf32> to vector<14x32xf32>
    %362 = arith.subf %345, %361 : vector<14x32xf32>
    %cst_140 = arith.constant 9.99999996E-13 : f32
    %363 = vector.broadcast %cst_140 : f32 to vector<14x1xf32>
    %364 = arith.addf %360, %363 : vector<14x1xf32>
    %365 = math.rsqrt %364 : vector<14x1xf32>
    %366 = vector.broadcast %365 : vector<14x1xf32> to vector<14x32xf32>
    %367 = arith.mulf %362, %366 : vector<14x32xf32>
    %368 = vector.broadcast %346 : vector<1x32xf32> to vector<14x32xf32>
    %369 = arith.mulf %367, %368 : vector<14x32xf32>
    %370 = vector.broadcast %347 : vector<1x32xf32> to vector<14x32xf32>
    %371 = arith.addf %369, %370 : vector<14x32xf32>
    %c1_141 = arith.constant 1 : index
    %c0_142 = arith.constant 0 : index
    %c0_143 = arith.constant 0 : index
    %372 = vector.load %arg12[%c1_141, %c0_142, %c0_143] : memref<2x32x64xf32, #tpu.memory_space<vmem>>, vector<1x32x64xf32>
    %373 = vector.shape_cast %372 : vector<1x32x64xf32> to vector<32x64xf32>
    %cst_144 = arith.constant dense<0.000000e+00> : vector<14x64xf32>
    %374 = tpu.matmul %371, %373, %cst_144 {dimension_numbers = #tpu.dot_dimension_numbers<[1], [0], [0], [1], [0, 0, 1, 1], [], []>} : vector<14x32xf32>, vector<32x64xf32>, vector<14x64xf32> -> vector<14x64xf32>
    %c1_145 = arith.constant 1 : index
    %c0_146 = arith.constant 0 : index
    %c0_147 = arith.constant 0 : index
    %375 = vector.load %arg13[%c1_145, %c0_146, %c0_147] : memref<2x1x64xf32, #tpu.memory_space<vmem>>, vector<1x1x64xf32>
    %376 = vector.shape_cast %375 : vector<1x1x64xf32> to vector<1x64xf32>
    %377 = vector.broadcast %376 : vector<1x64xf32> to vector<14x64xf32>
    %378 = arith.addf %374, %377 : vector<14x64xf32>
    %cst_148 = arith.constant 5.000000e-01 : f32
    %379 = vector.broadcast %cst_148 : f32 to vector<14x64xf32>
    %380 = arith.mulf %379, %378 : vector<14x64xf32>
    %cst_149 = arith.constant 4.471500e-02 : f32
    %381 = vector.broadcast %cst_149 : f32 to vector<14x64xf32>
    %382 = arith.mulf %381, %378 : vector<14x64xf32>
    %383 = arith.mulf %382, %378 : vector<14x64xf32>
    %384 = arith.mulf %383, %378 : vector<14x64xf32>
    %385 = arith.addf %378, %384 : vector<14x64xf32>
    %cst_150 = arith.constant 0.797884583 : f32
    %386 = vector.broadcast %cst_150 : f32 to vector<14x64xf32>
    %387 = arith.mulf %386, %385 : vector<14x64xf32>
    %388 = math.tanh %387 : vector<14x64xf32>
    %cst_151 = arith.constant 1.000000e+00 : f32
    %389 = vector.broadcast %cst_151 : f32 to vector<14x64xf32>
    %390 = arith.addf %389, %388 : vector<14x64xf32>
    %391 = arith.mulf %380, %390 : vector<14x64xf32>
    %c1_152 = arith.constant 1 : index
    %c0_153 = arith.constant 0 : index
    %c0_154 = arith.constant 0 : index
    %392 = vector.load %arg14[%c1_152, %c0_153, %c0_154] : memref<2x64x32xf32, #tpu.memory_space<vmem>>, vector<1x64x32xf32>
    %393 = vector.shape_cast %392 : vector<1x64x32xf32> to vector<64x32xf32>
    %cst_155 = arith.constant dense<0.000000e+00> : vector<14x32xf32>
    %394 = tpu.matmul %391, %393, %cst_155 {dimension_numbers = #tpu.dot_dimension_numbers<[1], [0], [0], [1], [0, 0, 1, 1], [], []>} : vector<14x64xf32>, vector<64x32xf32>, vector<14x32xf32> -> vector<14x32xf32>
    %c1_156 = arith.constant 1 : index
    %c0_157 = arith.constant 0 : index
    %c0_158 = arith.constant 0 : index
    %395 = vector.load %arg15[%c1_156, %c0_157, %c0_158] : memref<2x1x32xf32, #tpu.memory_space<vmem>>, vector<1x1x32xf32>
    %396 = vector.shape_cast %395 : vector<1x1x32xf32> to vector<1x32xf32>
    %397 = vector.broadcast %396 : vector<1x32xf32> to vector<14x32xf32>
    %398 = arith.addf %394, %397 : vector<14x32xf32>
    %c1_159 = arith.constant 1 : index
    %c0_160 = arith.constant 0 : index
    %c0_161 = arith.constant 0 : index
    %399 = vector.load %arg16[%c1_159, %c0_160, %c0_161] : memref<2x2x32xf32, #tpu.memory_space<vmem>>, vector<1x2x32xf32>
    %400 = vector.shape_cast %399 : vector<1x2x32xf32> to vector<2x32xf32>
    %401 = arith.addf %371, %398 : vector<14x32xf32>
    %402 = vector.extract_strided_slice %400 {offsets = [0, 0], sizes = [1, 32], strides = [1, 1]} : vector<2x32xf32> to vector<1x32xf32>
    %403 = vector.extract_strided_slice %400 {offsets = [1, 0], sizes = [1, 32], strides = [1, 1]} : vector<2x32xf32> to vector<1x32xf32>
    %cst_162 = arith.constant dense<0.000000e+00> : vector<14xf32>
    %404 = vector.multi_reduction <add>, %401, %cst_162 [1] : vector<14x32xf32> to vector<14xf32>
    %405 = vector.shape_cast %404 : vector<14xf32> to vector<14x1xf32>
    %cst_163 = arith.constant 3.200000e+01 : f32
    %406 = vector.broadcast %cst_163 : f32 to vector<14x1xf32>
    %407 = arith.divf %405, %406 : vector<14x1xf32>
    %408 = vector.broadcast %407 : vector<14x1xf32> to vector<14x32xf32>
    %409 = arith.subf %401, %408 : vector<14x32xf32>
    %410 = vector.broadcast %407 : vector<14x1xf32> to vector<14x32xf32>
    %411 = arith.subf %401, %410 : vector<14x32xf32>
    %412 = arith.mulf %409, %411 : vector<14x32xf32>
    %cst_164 = arith.constant dense<0.000000e+00> : vector<14xf32>
    %413 = vector.multi_reduction <add>, %412, %cst_164 [1] : vector<14x32xf32> to vector<14xf32>
    %414 = vector.shape_cast %413 : vector<14xf32> to vector<14x1xf32>
    %cst_165 = arith.constant 3.200000e+01 : f32
    %415 = vector.broadcast %cst_165 : f32 to vector<14x1xf32>
    %416 = arith.divf %414, %415 : vector<14x1xf32>
    %417 = vector.broadcast %407 : vector<14x1xf32> to vector<14x32xf32>
    %418 = arith.subf %401, %417 : vector<14x32xf32>
    %cst_166 = arith.constant 9.99999996E-13 : f32
    %419 = vector.broadcast %cst_166 : f32 to vector<14x1xf32>
    %420 = arith.addf %416, %419 : vector<14x1xf32>
    %421 = math.rsqrt %420 : vector<14x1xf32>
    %422 = vector.broadcast %421 : vector<14x1xf32> to vector<14x32xf32>
    %423 = arith.mulf %418, %422 : vector<14x32xf32>
    %424 = vector.broadcast %402 : vector<1x32xf32> to vector<14x32xf32>
    %425 = arith.mulf %423, %424 : vector<14x32xf32>
    %426 = vector.broadcast %403 : vector<1x32xf32> to vector<14x32xf32>
    %427 = arith.addf %425, %426 : vector<14x32xf32>
    %c0_167 = arith.constant 0 : index
    %c0_168 = arith.constant 0 : index
    %c0_169 = arith.constant 0 : index
    %428 = vector.load %arg17[%c0_167, %c0_168, %c0_169] : memref<1x14x32xf32, #tpu.memory_space<vmem>>, vector<1x14x32xf32>
    %429 = vector.shape_cast %428 : vector<1x14x32xf32> to vector<14x32xf32>
    %430 = vector.shape_cast %427 : vector<14x32xf32> to vector<1x14x32xf32>
    tpu.vector_store %arg17[%c0_167, %c0_168, %c0_169], %430 {strides = array<i32>} : memref<1x14x32xf32, #tpu.memory_space<vmem>>, vector<1x14x32xf32>,
    return
  }
  func.func @transform_0(%arg0: i32) -> (i32, i32, i32) {
    %c0_i32 = arith.constant 0 : i32
    %c0_i32_0 = arith.constant 0 : i32
    %c0_i32_1 = arith.constant 0 : i32
    return %arg0, %c0_i32, %c0_i32_0 : i32, i32, i32
  }
  func.func @transform_1(%arg0: i32) -> (i32, i32) {
    %c0_i32 = arith.constant 0 : i32
    %c0_i32_0 = arith.constant 0 : i32
    %c0_i32_1 = arith.constant 0 : i32
    return %c0_i32, %c0_i32_0 : i32, i32
  }
  func.func @transform_2(%arg0: i32) -> (i32, i32, i32) {
    %c0_i32 = arith.constant 0 : i32
    %c0_i32_0 = arith.constant 0 : i32
    %c0_i32_1 = arith.constant 0 : i32
    return %arg0, %c0_i32, %c0_i32_0 : i32, i32, i32
  }
  func.func @transform_3(%arg0: i32) -> (i32, i32, i32) {
    %c0_i32 = arith.constant 0 : i32
    %c0_i32_0 = arith.constant 0 : i32
    %c0_i32_1 = arith.constant 0 : i32
    %c0_i32_2 = arith.constant 0 : i32
    return %c0_i32, %c0_i32_0, %c0_i32_1 : i32, i32, i32
  }
  func.func @transform_4(%arg0: i32) -> (i32, i32) {
    %c0_i32 = arith.constant 0 : i32
    %c0_i32_0 = arith.constant 0 : i32
    %c0_i32_1 = arith.constant 0 : i32
    return %c0_i32, %c0_i32_0 : i32, i32
  }
  func.func @transform_5(%arg0: i32) -> (i32, i32) {
    %c0_i32 = arith.constant 0 : i32
    %c0_i32_0 = arith.constant 0 : i32
    %c0_i32_1 = arith.constant 0 : i32
    return %c0_i32, %c0_i32_0 : i32, i32
  }
  func.func @transform_6(%arg0: i32) -> (i32, i32, i32) {
    %c0_i32 = arith.constant 0 : i32
    %c0_i32_0 = arith.constant 0 : i32
    %c0_i32_1 = arith.constant 0 : i32
    %c0_i32_2 = arith.constant 0 : i32
    return %c0_i32, %c0_i32_0, %c0_i32_1 : i32, i32, i32
  }
  func.func @transform_7(%arg0: i32) -> (i32, i32, i32) {
    %c0_i32 = arith.constant 0 : i32
    %c0_i32_0 = arith.constant 0 : i32
    %c0_i32_1 = arith.constant 0 : i32
    %c0_i32_2 = arith.constant 0 : i32
    return %c0_i32, %c0_i32_0, %c0_i32_1 : i32, i32, i32
  }
  func.func @transform_8(%arg0: i32) -> (i32, i32, i32) {
    %c0_i32 = arith.constant 0 : i32
    %c0_i32_0 = arith.constant 0 : i32
    %c0_i32_1 = arith.constant 0 : i32
    %c0_i32_2 = arith.constant 0 : i32
    return %c0_i32, %c0_i32_0, %c0_i32_1 : i32, i32, i32
  }
  func.func @transform_9(%arg0: i32) -> (i32, i32, i32) {
    %c0_i32 = arith.constant 0 : i32
    %c0_i32_0 = arith.constant 0 : i32
    %c0_i32_1 = arith.constant 0 : i32
    %c0_i32_2 = arith.constant 0 : i32
    return %c0_i32, %c0_i32_0, %c0_i32_1 : i32, i32, i32
  }
  func.func @transform_10(%arg0: i32) -> (i32, i32, i32) {
    %c0_i32 = arith.constant 0 : i32
    %c0_i32_0 = arith.constant 0 : i32
    %c0_i32_1 = arith.constant 0 : i32
    %c0_i32_2 = arith.constant 0 : i32
    return %c0_i32, %c0_i32_0, %c0_i32_1 : i32, i32, i32
  }
  func.func @transform_11(%arg0: i32) -> (i32, i32, i32) {
    %c0_i32 = arith.constant 0 : i32
    %c0_i32_0 = arith.constant 0 : i32
    %c0_i32_1 = arith.constant 0 : i32
    %c0_i32_2 = arith.constant 0 : i32
    return %c0_i32, %c0_i32_0, %c0_i32_1 : i32, i32, i32
  }
  func.func @transform_12(%arg0: i32) -> (i32, i32, i32) {
    %c0_i32 = arith.constant 0 : i32
    %c0_i32_0 = arith.constant 0 : i32
    %c0_i32_1 = arith.constant 0 : i32
    %c0_i32_2 = arith.constant 0 : i32
    return %c0_i32, %c0_i32_0, %c0_i32_1 : i32, i32, i32
  }
  func.func @transform_13(%arg0: i32) -> (i32, i32, i32) {
    %c0_i32 = arith.constant 0 : i32
    %c0_i32_0 = arith.constant 0 : i32
    %c0_i32_1 = arith.constant 0 : i32
    %c0_i32_2 = arith.constant 0 : i32
    return %c0_i32, %c0_i32_0, %c0_i32_1 : i32, i32, i32
  }
  func.func @transform_14(%arg0: i32) -> (i32, i32, i32) {
    %c0_i32 = arith.constant 0 : i32
    %c0_i32_0 = arith.constant 0 : i32
    %c0_i32_1 = arith.constant 0 : i32
    %c0_i32_2 = arith.constant 0 : i32
    return %c0_i32, %c0_i32_0, %c0_i32_1 : i32, i32, i32
  }
  func.func @transform_15(%arg0: i32) -> (i32, i32, i32) {
    %c0_i32 = arith.constant 0 : i32
    %c0_i32_0 = arith.constant 0 : i32
    %c0_i32_1 = arith.constant 0 : i32
    %c0_i32_2 = arith.constant 0 : i32
    return %c0_i32, %c0_i32_0, %c0_i32_1 : i32, i32, i32
  }
  func.func @transform_16(%arg0: i32) -> (i32, i32, i32) {
    %c0_i32 = arith.constant 0 : i32
    %c0_i32_0 = arith.constant 0 : i32
    %c0_i32_1 = arith.constant 0 : i32
    return %arg0, %c0_i32, %c0_i32_0 : i32, i32, i32
  }
}

</mosaic_0001>

<llo_original>
// kernel: tpu_custom_call.1
$region0: #{tpu_custom_call.1}
  #allocation0 [shape = 'u32[]', space=smem, size = 0x4, offset = 0x4, fixed_abs, tag = 'smem constant byte address 0x4 - core index']
  #allocation1 [shape = 'u32[144,128]{1,0:T(1,128)}', space=vmem, size = 0x12000, scoped, tag = 'internal scratch']
  %s0 = inlined_call_operand.vmem [shape: f32[2,16,160], index: 0, kind: input, shape index: {}]
  %s1 = inlined_call_operand.vmem [shape: f32[14,32], index: 1, kind: input, shape index: {}]
  %s2 = inlined_call_operand.vmem [shape: f32[2,1,14], index: 2, kind: input, shape index: {}]
  %s3 = inlined_call_operand.vmem [shape: f32[3,160,32], index: 3, kind: input, shape index: {}]
  %s4 = inlined_call_operand.vmem [shape: f32[1,32], index: 4, kind: input, shape index: {}]
  %s5 = inlined_call_operand.vmem [shape: f32[2,32], index: 5, kind: input, shape index: {}]
  %s6 = inlined_call_operand.vmem [shape: f32[2,32,96], index: 6, kind: input, shape index: {}]
  %s7 = inlined_call_operand.vmem [shape: f32[2,1,96], index: 7, kind: input, shape index: {}]
  %s8 = inlined_call_operand.vmem [shape: f32[2,32,32], index: 8, kind: input, shape index: {}]
  %s9 = inlined_call_operand.vmem [shape: f32[2,1,32], index: 9, kind: input, shape index: {}]
  %s10 = inlined_call_operand.vmem [shape: f32[2,2,32], index: 10, kind: input, shape index: {}]
  %s11 = inlined_call_operand.vmem [shape: f32[2,32,64], index: 11, kind: input, shape index: {}]
  %s12 = inlined_call_operand.vmem [shape: f32[2,1,64], index: 12, kind: input, shape index: {}]
  %s13 = inlined_call_operand.vmem [shape: f32[2,64,32], index: 13, kind: input, shape index: {}]
  %s14 = inlined_call_operand.vmem [shape: f32[2,1,32], index: 14, kind: input, shape index: {}]
  %s15 = inlined_call_operand.vmem [shape: f32[2,2,32], index: 15, kind: input, shape index: {}]
  %s16 = inlined_call_operand.vmem [shape: f32[2,14,32], index: 16, kind: output, shape index: {}]
  %s17 = sld [smem:[#allocation0]]
  $region97: #{tpu_custom_call.1} parent=0
    _
  %s19 = ssub.s32 1, %s17
  %s20 = scalar_select 0, %s19, %s17
  loop: start=0, step=1, limit=4
  $region2: #{tpu_custom_call.1} parent=0 // loop_pre_header
    _
  $region3: #{tpu_custom_call.1} parent=0 // loop_header
    %s22 = sphi 0, %s26
    %p23 = scmp.ge.s32.totalorder %s22, 4
    %s32 = sphi 0, %s34
    %s35 = sphi 0, %s32
    %s36 = sphi 0, %s35
    %s52 = sphi 0, %s36
    %s56 = sphi 0, %s56
    %s58 = sphi 0, %s56
    %s59 = sphi 0, %s58
    %s73 = sphi 0, %s59
    %s79 = sphi 0, %s81
    %s82 = sphi 0, %s79
    %s83 = sphi 0, %s82
    %s99 = sphi 0, %s83
    %s103 = sphi 0, %s103
    %s105 = sphi 0, %s103
    %s106 = sphi 0, %s105
    %s120 = sphi 0, %s106
    %s124 = sphi 0, %s124
    %s126 = sphi 0, %s124
    %s127 = sphi 0, %s126
    %s141 = sphi 0, %s127
    %s145 = sphi 0, %s145
    %s147 = sphi 0, %s145
    %s148 = sphi 0, %s147
    %s162 = sphi 0, %s148
    %s166 = sphi 0, %s166
    %s168 = sphi 0, %s166
    %s169 = sphi 0, %s168
    %s183 = sphi 0, %s169
    %s187 = sphi 0, %s187
    %s189 = sphi 0, %s187
    %s190 = sphi 0, %s189
    %s204 = sphi 0, %s190
    %s208 = sphi 0, %s208
    %s210 = sphi 0, %s208
    %s211 = sphi 0, %s210
    %s225 = sphi 0, %s211
    %s229 = sphi 0, %s229
    %s231 = sphi 0, %s229
    %s232 = sphi 0, %s231
    %s246 = sphi 0, %s232
    %s250 = sphi 0, %s250
    %s252 = sphi 0, %s250
    %s253 = sphi 0, %s252
    %s267 = sphi 0, %s253
    %s271 = sphi 0, %s271
    %s273 = sphi 0, %s271
    %s274 = sphi 0, %s273
    %s288 = sphi 0, %s274
    %s292 = sphi 0, %s292
    %s294 = sphi 0, %s292
    %s295 = sphi 0, %s294
    %s309 = sphi 0, %s295
    %s313 = sphi 0, %s313
    %s315 = sphi 0, %s313
    %s316 = sphi 0, %s315
    %s330 = sphi 0, %s316
    %s334 = sphi 0, %s334
    %s336 = sphi 0, %s334
    %s337 = sphi 0, %s336
    %s351 = sphi 0, %s337
    %s355 = sphi 0, %s355
    %s357 = sphi 0, %s355
    %s358 = sphi 0, %s357
    %s372 = sphi 0, %s358
    %s378 = sphi 0, %s380
    %s381 = sphi 0, %s378
    %s382 = sphi 0, %s381
    %s398 = sphi 0, %s382
  $region4: #{tpu_custom_call.1} parent=0 // loop_header_branch
    %25 = sbr.rel (%p23) target = $region8
  $region5: #{tpu_custom_call.1} parent=0 // loop_body
    %s27 = ssub.s32 %s22, 1
    %s28 = ssub.s32 %s22, 2
    %s29 = sadd.s32 %s22, 1
    %s30 = ssub.s32 %s22, %s29
    %p31 = scmp.eq.s32.totalorder %s30, 0
    %s33 = sadd.s32 %s32, 1
    %s34 = scalar_select %p31, %s32, %s33
    %p37 = pneg %p31
    %p38 = scmp.eq.s32.totalorder %s22, 1
    %p39 = por %p37, %p38
    %p40 = scmp.ne.s32.totalorder %s32, %s35
    %p41 = scmp.eq.s32.totalorder %s22, 0
    %p42 = por %p40, %p41
    %p43 = scmp.ne.s32.totalorder %s32, %s35
    %p44 = scmp.eq.s32.totalorder %s27, 1
    %p45 = por %p43, %p44
    %p46 = scmp.ne.s32.totalorder %s35, %s36
    %p47 = scmp.eq.s32.totalorder %s27, 0
    %p48 = por %p46, %p47
    %p49 = scmp.ne.s32.totalorder %s35, %s36
    %p50 = scmp.eq.s32.totalorder %s28, 1
    %p51 = por %p49, %p50
    %p53 = scmp.ne.s32.totalorder %s36, %s52
    %p54 = scmp.eq.s32.totalorder %s28, 0
    %p55 = por %p53, %p54
    %s57 = sadd.s32 %s56, 1
    %p60 = scmp.eq.s32.totalorder %s22, 1
    %p61 = scmp.ne.s32.totalorder %s56, %s58
    %p62 = scmp.eq.s32.totalorder %s22, 0
    %p63 = por %p61, %p62
    %p64 = scmp.ne.s32.totalorder %s56, %s58
    %p65 = scmp.eq.s32.totalorder %s27, 1
    %p66 = por %p64, %p65
    %p67 = scmp.ne.s32.totalorder %s58, %s59
    %p68 = scmp.eq.s32.totalorder %s27, 0
    %p69 = por %p67, %p68
    %p70 = scmp.ne.s32.totalorder %s58, %s59
    %p71 = scmp.eq.s32.totalorder %s28, 1
    %p72 = por %p70, %p71
    %p74 = scmp.ne.s32.totalorder %s59, %s73
    %p75 = scmp.eq.s32.totalorder %s28, 0
    %p76 = por %p74, %p75
    %s77 = ssub.s32 %s22, %s29
    %p78 = scmp.eq.s32.totalorder %s77, 0
    %s80 = sadd.s32 %s79, 1
    %s81 = scalar_select %p78, %s79, %s80
    %p84 = pneg %p78
    %p85 = scmp.eq.s32.totalorder %s22, 1
    %p86 = por %p84, %p85
    %p87 = scmp.ne.s32.totalorder %s79, %s82
    %p88 = scmp.eq.s32.totalorder %s22, 0
    %p89 = por %p87, %p88
    %p90 = scmp.ne.s32.totalorder %s79, %s82
    %p91 = scmp.eq.s32.totalorder %s27, 1
    %p92 = por %p90, %p91
    %p93 = scmp.ne.s32.totalorder %s82, %s83
    %p94 = scmp.eq.s32.totalorder %s27, 0
    %p95 = por %p93, %p94
    %p96 = scmp.ne.s32.totalorder %s82, %s83
    %p97 = scmp.eq.s32.totalorder %s28, 1
    %p98 = por %p96, %p97
    %p100 = scmp.ne.s32.totalorder %s83, %s99
    %p101 = scmp.eq.s32.totalorder %s28, 0
    %p102 = por %p100, %p101
    %s104 = sadd.s32 %s103, 1
    %p107 = scmp.eq.s32.totalorder %s22, 1
    %p108 = scmp.ne.s32.totalorder %s103, %s105
    %p109 = scmp.eq.s32.totalorder %s22, 0
    %p110 = por %p108, %p109
    %p111 = scmp.ne.s32.totalorder %s103, %s105
    %p112 = scmp.eq.s32.totalorder %s27, 1
    %p113 = por %p111, %p112
    %p114 = scmp.ne.s32.totalorder %s105, %s106
    %p115 = scmp.eq.s32.totalorder %s27, 0
    %p116 = por %p114, %p115
    %p117 = scmp.ne.s32.totalorder %s105, %s106
    %p118 = scmp.eq.s32.totalorder %s28, 1
    %p119 = por %p117, %p118
    %p121 = scmp.ne.s32.totalorder %s106, %s120
    %p122 = scmp.eq.s32.totalorder %s28, 0
    %p123 = por %p121, %p122
    %s125 = sadd.s32 %s124, 1
    %p128 = scmp.eq.s32.totalorder %s22, 1
    %p129 = scmp.ne.s32.totalorder %s124, %s126
    %p130 = scmp.eq.s32.totalorder %s22, 0
    %p131 = por %p129, %p130
    %p132 = scmp.ne.s32.totalorder %s124, %s126
    %p133 = scmp.eq.s32.totalorder %s27, 1
    %p134 = por %p132, %p133
    %p135 = scmp.ne.s32.totalorder %s126, %s127
    %p136 = scmp.eq.s32.totalorder %s27, 0
    %p137 = por %p135, %p136
    %p138 = scmp.ne.s32.totalorder %s126, %s127
    %p139 = scmp.eq.s32.totalorder %s28, 1
    %p140 = por %p138, %p139
    %p142 = scmp.ne.s32.totalorder %s127, %s141
    %p143 = scmp.eq.s32.totalorder %s28, 0
    %p144 = por %p142, %p143
    %s146 = sadd.s32 %s145, 1
    %p149 = scmp.eq.s32.totalorder %s22, 1
    %p150 = scmp.ne.s32.totalorder %s145, %s147
    %p151 = scmp.eq.s32.totalorder %s22, 0
    %p152 = por %p150, %p151
    %p153 = scmp.ne.s32.totalorder %s145, %s147
    %p154 = scmp.eq.s32.totalorder %s27, 1
    %p155 = por %p153, %p154
    %p156 = scmp.ne.s32.totalorder %s147, %s148
    %p157 = scmp.eq.s32.totalorder %s27, 0
    %p158 = por %p156, %p157
    %p159 = scmp.ne.s32.totalorder %s147, %s148
    %p160 = scmp.eq.s32.totalorder %s28, 1
    %p161 = por %p159, %p160
    %p163 = scmp.ne.s32.totalorder %s148, %s162
    %p164 = scmp.eq.s32.totalorder %s28, 0
    %p165 = por %p163, %p164
    %s167 = sadd.s32 %s166, 1
    %p170 = scmp.eq.s32.totalorder %s22, 1
    %p171 = scmp.ne.s32.totalorder %s166, %s168
    %p172 = scmp.eq.s32.totalorder %s22, 0
    %p173 = por %p171, %p172
    %p174 = scmp.ne.s32.totalorder %s166, %s168
    %p175 = scmp.eq.s32.totalorder %s27, 1
    %p176 = por %p174, %p175
    %p177 = scmp.ne.s32.totalorder %s168, %s169
    %p178 = scmp.eq.s32.totalorder %s27, 0
    %p179 = por %p177, %p178
    %p180 = scmp.ne.s32.totalorder %s168, %s169
    %p181 = scmp.eq.s32.totalorder %s28, 1
    %p182 = por %p180, %p181
    %p184 = scmp.ne.s32.totalorder %s169, %s183
    %p185 = scmp.eq.s32.totalorder %s28, 0
    %p186 = por %p184, %p185
    %s188 = sadd.s32 %s187, 1
    %p191 = scmp.eq.s32.totalorder %s22, 1
    %p192 = scmp.ne.s32.totalorder %s187, %s189
    %p193 = scmp.eq.s32.totalorder %s22, 0
    %p194 = por %p192, %p193
    %p195 = scmp.ne.s32.totalorder %s187, %s189
    %p196 = scmp.eq.s32.totalorder %s27, 1
    %p197 = por %p195, %p196
    %p198 = scmp.ne.s32.totalorder %s189, %s190
    %p199 = scmp.eq.s32.totalorder %s27, 0
    %p200 = por %p198, %p199
    %p201 = scmp.ne.s32.totalorder %s189, %s190
    %p202 = scmp.eq.s32.totalorder %s28, 1
    %p203 = por %p201, %p202
    %p205 = scmp.ne.s32.totalorder %s190, %s204
    %p206 = scmp.eq.s32.totalorder %s28, 0
    %p207 = por %p205, %p206
    %s209 = sadd.s32 %s208, 1
    %p212 = scmp.eq.s32.totalorder %s22, 1
    %p213 = scmp.ne.s32.totalorder %s208, %s210
    %p214 = scmp.eq.s32.totalorder %s22, 0
    %p215 = por %p213, %p214
    %p216 = scmp.ne.s32.totalorder %s208, %s210
    %p217 = scmp.eq.s32.totalorder %s27, 1
    %p218 = por %p216, %p217
    %p219 = scmp.ne.s32.totalorder %s210, %s211
    %p220 = scmp.eq.s32.totalorder %s27, 0
    %p221 = por %p219, %p220
    %p222 = scmp.ne.s32.totalorder %s210, %s211
    %p223 = scmp.eq.s32.totalorder %s28, 1
    %p224 = por %p222, %p223
    %p226 = scmp.ne.s32.totalorder %s211, %s225
    %p227 = scmp.eq.s32.totalorder %s28, 0
    %p228 = por %p226, %p227
    %s230 = sadd.s32 %s229, 1
    %p233 = scmp.eq.s32.totalorder %s22, 1
    %p234 = scmp.ne.s32.totalorder %s229, %s231
    %p235 = scmp.eq.s32.totalorder %s22, 0
    %p236 = por %p234, %p235
    %p237 = scmp.ne.s32.totalorder %s229, %s231
    %p238 = scmp.eq.s32.totalorder %s27, 1
    %p239 = por %p237, %p238
    %p240 = scmp.ne.s32.totalorder %s231, %s232
    %p241 = scmp.eq.s32.totalorder %s27, 0
    %p242 = por %p240, %p241
    %p243 = scmp.ne.s32.totalorder %s231, %s232
    %p244 = scmp.eq.s32.totalorder %s28, 1
    %p245 = por %p243, %p244
    %p247 = scmp.ne.s32.totalorder %s232, %s246
    %p248 = scmp.eq.s32.totalorder %s28, 0
    %p249 = por %p247, %p248
    %s251 = sadd.s32 %s250, 1
    %p254 = scmp.eq.s32.totalorder %s22, 1
    %p255 = scmp.ne.s32.totalorder %s250, %s252
    %p256 = scmp.eq.s32.totalorder %s22, 0
    %p257 = por %p255, %p256
    %p258 = scmp.ne.s32.totalorder %s250, %s252
    %p259 = scmp.eq.s32.totalorder %s27, 1
    %p260 = por %p258, %p259
    %p261 = scmp.ne.s32.totalorder %s252, %s253
    %p262 = scmp.eq.s32.totalorder %s27, 0
    %p263 = por %p261, %p262
    %p264 = scmp.ne.s32.totalorder %s252, %s253
    %p265 = scmp.eq.s32.totalorder %s28, 1
    %p266 = por %p264, %p265
    %p268 = scmp.ne.s32.totalorder %s253, %s267
    %p269 = scmp.eq.s32.totalorder %s28, 0
    %p270 = por %p268, %p269
    %s272 = sadd.s32 %s271, 1
    %p275 = scmp.eq.s32.totalorder %s22, 1
    %p276 = scmp.ne.s32.totalorder %s271, %s273
    %p277 = scmp.eq.s32.totalorder %s22, 0
    %p278 = por %p276, %p277
    %p279 = scmp.ne.s32.totalorder %s271, %s273
    %p280 = scmp.eq.s32.totalorder %s27, 1
    %p281 = por %p279, %p280
    %p282 = scmp.ne.s32.totalorder %s273, %s274
    %p283 = scmp.eq.s32.totalorder %s27, 0
    %p284 = por %p282, %p283
    %p285 = scmp.ne.s32.totalorder %s273, %s274
    %p286 = scmp.eq.s32.totalorder %s28, 1
    %p287 = por %p285, %p286
    %p289 = scmp.ne.s32.totalorder %s274, %s288
    %p290 = scmp.eq.s32.totalorder %s28, 0
    %p291 = por %p289, %p290
    %s293 = sadd.s32 %s292, 1
    %p296 = scmp.eq.s32.totalorder %s22, 1
    %p297 = scmp.ne.s32.totalorder %s292, %s294
    %p298 = scmp.eq.s32.totalorder %s22, 0
    %p299 = por %p297, %p298
    %p300 = scmp.ne.s32.totalorder %s292, %s294
    %p301 = scmp.eq.s32.totalorder %s27, 1
    %p302 = por %p300, %p301
    %p303 = scmp.ne.s32.totalorder %s294, %s295
    %p304 = scmp.eq.s32.totalorder %s27, 0
    %p305 = por %p303, %p304
    %p306 = scmp.ne.s32.totalorder %s294, %s295
    %p307 = scmp.eq.s32.totalorder %s28, 1
    %p308 = por %p306, %p307
    %p310 = scmp.ne.s32.totalorder %s295, %s309
    %p311 = scmp.eq.s32.totalorder %s28, 0
    %p312 = por %p310, %p311
    %s314 = sadd.s32 %s313, 1
    %p317 = scmp.eq.s32.totalorder %s22, 1
    %p318 = scmp.ne.s32.totalorder %s313, %s315
    %p319 = scmp.eq.s32.totalorder %s22, 0
    %p320 = por %p318, %p319
    %p321 = scmp.ne.s32.totalorder %s313, %s315
    %p322 = scmp.eq.s32.totalorder %s27, 1
    %p323 = por %p321, %p322
    %p324 = scmp.ne.s32.totalorder %s315, %s316
    %p325 = scmp.eq.s32.totalorder %s27, 0
    %p326 = por %p324, %p325
    %p327 = scmp.ne.s32.totalorder %s315, %s316
    %p328 = scmp.eq.s32.totalorder %s28, 1
    %p329 = por %p327, %p328
    %p331 = scmp.ne.s32.totalorder %s316, %s330
    %p332 = scmp.eq.s32.totalorder %s28, 0
    %p333 = por %p331, %p332
    %s335 = sadd.s32 %s334, 1
    %p338 = scmp.eq.s32.totalorder %s22, 1
    %p339 = scmp.ne.s32.totalorder %s334, %s336
    %p340 = scmp.eq.s32.totalorder %s22, 0
    %p341 = por %p339, %p340
    %p342 = scmp.ne.s32.totalorder %s334, %s336
    %p343 = scmp.eq.s32.totalorder %s27, 1
    %p344 = por %p342, %p343
    %p345 = scmp.ne.s32.totalorder %s336, %s337
    %p346 = scmp.eq.s32.totalorder %s27, 0
    %p347 = por %p345, %p346
    %p348 = scmp.ne.s32.totalorder %s336, %s337
    %p349 = scmp.eq.s32.totalorder %s28, 1
    %p350 = por %p348, %p349
    %p352 = scmp.ne.s32.totalorder %s337, %s351
    %p353 = scmp.eq.s32.totalorder %s28, 0
    %p354 = por %p352, %p353
    %s356 = sadd.s32 %s355, 1
    %p359 = scmp.eq.s32.totalorder %s22, 1
    %p360 = scmp.ne.s32.totalorder %s355, %s357
    %p361 = scmp.eq.s32.totalorder %s22, 0
    %p362 = por %p360, %p361
    %p363 = scmp.ne.s32.totalorder %s355, %s357
    %p364 = scmp.eq.s32.totalorder %s27, 1
    %p365 = por %p363, %p364
    %p366 = scmp.ne.s32.totalorder %s357, %s358
    %p367 = scmp.eq.s32.totalorder %s27, 0
    %p368 = por %p366, %p367
    %p369 = scmp.ne.s32.totalorder %s357, %s358
    %p370 = scmp.eq.s32.totalorder %s28, 1
    %p371 = por %p369, %p370
    %p373 = scmp.ne.s32.totalorder %s358, %s372
    %p374 = scmp.eq.s32.totalorder %s28, 0
    %p375 = por %p373, %p374
    %s376 = ssub.s32 %s22, %s29
    %p377 = scmp.eq.s32.totalorder %s376, 0
    %s379 = sadd.s32 %s378, 1
    %s380 = scalar_select %p377, %s378, %s379
    %p383 = pneg %p377
    %p384 = scmp.eq.s32.totalorder %s22, 1
    %p385 = por %p383, %p384
    %p386 = scmp.ne.s32.totalorder %s378, %s381
    %p387 = scmp.eq.s32.totalorder %s22, 0
    %p388 = por %p386, %p387
    %p389 = scmp.ne.s32.totalorder %s378, %s381
    %p390 = scmp.eq.s32.totalorder %s27, 1
    %p391 = por %p389, %p390
    %p392 = scmp.ne.s32.totalorder %s381, %s382
    %p393 = scmp.eq.s32.totalorder %s27, 0
    %p394 = por %p392, %p393
    %p395 = scmp.ne.s32.totalorder %s381, %s382
    %p396 = scmp.eq.s32.totalorder %s28, 1
    %p397 = por %p395, %p396
    %p399 = scmp.ne.s32.totalorder %s382, %s398
    %p400 = scmp.eq.s32.totalorder %s28, 0
    %p401 = por %p399, %p400
    %p402 = scmp.le.s32.totalorder 1, %s22
    %p403 = scmp.lt.s32.totalorder %s22, 3
    %p404 = pnand %p402, %p403
    %p405 = pneg %p404
    // Predicated region
    $region9: #{tpu_custom_call.1} parent=5 // pred_check
      _
    $region10: #{tpu_custom_call.1} parent=5 // pred_check_branch
      %407 = sbr.rel (%p404) target = $region12
    $region11: #{tpu_custom_call.1} parent=5 // pred_region
      %s408 = ssub.s32 %s22, 1
      // Predicated region
      $region13: #{tpu_custom_call.1} parent=11 // pred_check
        %p409 = pneg %p69
      $region14: #{tpu_custom_call.1} parent=11 // pred_check_branch
        %411 = sbr.rel (%p409) target = $region16
      $region15: #{tpu_custom_call.1} parent=11 // pred_region
        _
      $region16: #{tpu_custom_call.1} parent=11 // pred_fallthru
        _
      // Predicated region
      $region17: #{tpu_custom_call.1} parent=11 // pred_check
        %p412 = pneg %p116
      $region18: #{tpu_custom_call.1} parent=11 // pred_check_branch
        %414 = sbr.rel (%p412) target = $region20
      $region19: #{tpu_custom_call.1} parent=11 // pred_region
        _
      $region20: #{tpu_custom_call.1} parent=11 // pred_fallthru
        _
      // Predicated region
      $region21: #{tpu_custom_call.1} parent=11 // pred_check
        %p415 = pneg %p137
      $region22: #{tpu_custom_call.1} parent=11 // pred_check_branch
        %417 = sbr.rel (%p415) target = $region24
      $region23: #{tpu_custom_call.1} parent=11 // pred_region
        _
      $region24: #{tpu_custom_call.1} parent=11 // pred_fallthru
        _
      // Predicated region
      $region25: #{tpu_custom_call.1} parent=11 // pred_check
        %p418 = pneg %p158
      $region26: #{tpu_custom_call.1} parent=11 // pred_check_branch
        %420 = sbr.rel (%p418) target = $region28
      $region27: #{tpu_custom_call.1} parent=11 // pred_region
        _
      $region28: #{tpu_custom_call.1} parent=11 // pred_fallthru
        _
      // Predicated region
      $region29: #{tpu_custom_call.1} parent=11 // pred_check
        %p421 = pneg %p179
      $region30: #{tpu_custom_call.1} parent=11 // pred_check_branch
        %423 = sbr.rel (%p421) target = $region32
      $region31: #{tpu_custom_call.1} parent=11 // pred_region
        _
      $region32: #{tpu_custom_call.1} parent=11 // pred_fallthru
        _
      // Predicated region
      $region33: #{tpu_custom_call.1} parent=11 // pred_check
        %p424 = pneg %p200
      $region34: #{tpu_custom_call.1} parent=11 // pred_check_branch
        %426 = sbr.rel (%p424) target = $region36
      $region35: #{tpu_custom_call.1} parent=11 // pred_region
        _
      $region36: #{tpu_custom_call.1} parent=11 // pred_fallthru
        _
      // Predicated region
      $region37: #{tpu_custom_call.1} parent=11 // pred_check
        %p427 = pneg %p221
      $region38: #{tpu_custom_call.1} parent=11 // pred_check_branch
        %429 = sbr.rel (%p427) target = $region40
      $region39: #{tpu_custom_call.1} parent=11 // pred_region
        _
      $region40: #{tpu_custom_call.1} parent=11 // pred_fallthru
        _
      // Predicated region
      $region41: #{tpu_custom_call.1} parent=11 // pred_check
        %p430 = pneg %p242
      $region42: #{tpu_custom_call.1} parent=11 // pred_check_branch
        %432 = sbr.rel (%p430) target = $region44
      $region43: #{tpu_custom_call.1} parent=11 // pred_region
        _
      $region44: #{tpu_custom_call.1} parent=11 // pred_fallthru
        _
      // Predicated region
      $region45: #{tpu_custom_call.1} parent=11 // pred_check
        %p433 = pneg %p263
      $region46: #{tpu_custom_call.1} parent=11 // pred_check_branch
        %435 = sbr.rel (%p433) target = $region48
      $region47: #{tpu_custom_call.1} parent=11 // pred_region
        _
      $region48: #{tpu_custom_call.1} parent=11 // pred_fallthru
        _
      // Predicated region
      $region49: #{tpu_custom_call.1} parent=11 // pred_check
        %p436 = pneg %p284
      $region50: #{tpu_custom_call.1} parent=11 // pred_check_branch
        %438 = sbr.rel (%p436) target = $region52
      $region51: #{tpu_custom_call.1} parent=11 // pred_region
        _
      $region52: #{tpu_custom_call.1} parent=11 // pred_fallthru
        _
      // Predicated region
      $region53: #{tpu_custom_call.1} parent=11 // pred_check
        %p439 = pneg %p305
      $region54: #{tpu_custom_call.1} parent=11 // pred_check_branch
        %441 = sbr.rel (%p439) target = $region56
      $region55: #{tpu_custom_call.1} parent=11 // pred_region
        _
      $region56: #{tpu_custom_call.1} parent=11 // pred_fallthru
        _
      // Predicated region
      $region57: #{tpu_custom_call.1} parent=11 // pred_check
        %p442 = pneg %p326
      $region58: #{tpu_custom_call.1} parent=11 // pred_check_branch
        %444 = sbr.rel (%p442) target = $region60
      $region59: #{tpu_custom_call.1} parent=11 // pred_region
        _
      $region60: #{tpu_custom_call.1} parent=11 // pred_fallthru
        _
      // Predicated region
      $region61: #{tpu_custom_call.1} parent=11 // pred_check
        %p445 = pneg %p347
      $region62: #{tpu_custom_call.1} parent=11 // pred_check_branch
        %447 = sbr.rel (%p445) target = $region64
      $region63: #{tpu_custom_call.1} parent=11 // pred_region
        _
      $region64: #{tpu_custom_call.1} parent=11 // pred_fallthru
        _
      // Predicated region
      $region65: #{tpu_custom_call.1} parent=11 // pred_check
        %p448 = pneg %p368
      $region66: #{tpu_custom_call.1} parent=11 // pred_check_branch
        %450 = sbr.rel (%p448) target = $region68
      $region67: #{tpu_custom_call.1} parent=11 // pred_region
        _
      $region68: #{tpu_custom_call.1} parent=11 // pred_fallthru
        _
    $region12: #{tpu_custom_call.1} parent=5 // pred_fallthru
      _
    %p451 = scmp.lt.s32.totalorder %s22, 2
    // Predicated region
    $region69: #{tpu_custom_call.1} parent=5 // pred_check
      %p452 = pneg %p451
    $region70: #{tpu_custom_call.1} parent=5 // pred_check_branch
      %454 = sbr.rel (%p452) target = $region72
    $region71: #{tpu_custom_call.1} parent=5 // pred_region
      // Predicated region
      $region73: #{tpu_custom_call.1} parent=71 // pred_check
        %p455 = pneg %p42
      $region74: #{tpu_custom_call.1} parent=71 // pred_check_branch
        %457 = sbr.rel (%p455) target = $region76
      $region75: #{tpu_custom_call.1} parent=71 // pred_region
        %p458 = scmp.lt.s32.totalorder %s22, 1
        %s459 = scalar_select %p458, %s22, 1
        %s460 = smul.addr %s459, 4
        %s461 = smul.addr %s460, 8
        %s462 = scalar_lea.vmem %s0, %s461
      $region76: #{tpu_custom_call.1} parent=71 // pred_fallthru
        _
      // Predicated region
      $region77: #{tpu_custom_call.1} parent=71 // pred_check
        %p463 = pneg %p89
      $region78: #{tpu_custom_call.1} parent=71 // pred_check_branch
        %465 = sbr.rel (%p463) target = $region80
      $region79: #{tpu_custom_call.1} parent=71 // pred_region
        %p466 = scmp.lt.s32.totalorder %s22, 1
        %s467 = scalar_select %p466, %s22, 1
        %s468 = scalar_lea.vmem %s2, %s467
      $region80: #{tpu_custom_call.1} parent=71 // pred_fallthru
        _
    $region72: #{tpu_custom_call.1} parent=5 // pred_fallthru
      _
    %p469 = scmp.le.s32.totalorder 1, %s22
    %p470 = scmp.lt.s32.totalorder %s22, 3
    %p471 = pnand %p469, %p470
    %p472 = pneg %p471
    // Predicated region
    $region81: #{tpu_custom_call.1} parent=5 // pred_check
      _
    $region82: #{tpu_custom_call.1} parent=5 // pred_check_branch
      %474 = sbr.rel (%p471) target = $region84
    $region83: #{tpu_custom_call.1} parent=5 // pred_region
      %s475 = ssub.s32 %s22, 1
      %p476 = scmp.lt.s32.totalorder %s27, 1
      %s477 = scalar_select %p476, %s27, 1
      %s478 = smul.addr %s477, 4
      %s479 = smul.addr %s478, 8
      %s480 = scalar_lea.vmem %s0, %s479
      %p481 = pneg %p48
      %p482 = pneg %p45
      %p483 = pneg %p69
      %p484 = pneg %p66
      %p485 = scmp.lt.s32.totalorder %s27, 1
      %s486 = scalar_select %p485, %s27, 1
      %s487 = scalar_lea.vmem %s2, %s486
      %p488 = pneg %p95
      %p489 = pneg %p92
      %p490 = pneg %p116
      %p491 = pneg %p113
      %p492 = pneg %p137
      %p493 = pneg %p134
      %p494 = pneg %p158
      %p495 = pneg %p155
      %p496 = pneg %p179
      %p497 = pneg %p176
      %p498 = pneg %p200
      %p499 = pneg %p197
      %p500 = pneg %p221
      %p501 = pneg %p218
      %p502 = pneg %p242
      %p503 = pneg %p239
      %p504 = pneg %p263
      %p505 = pneg %p260
      %p506 = pneg %p284
      %p507 = pneg %p281
      %p508 = pneg %p305
      %p509 = pneg %p302
      %p510 = pneg %p326
      %p511 = pneg %p323
      %p512 = pneg %p347
      %p513 = pneg %p344
      %p514 = pneg %p368
      %p515 = pneg %p365
      %p516 = pneg %p394
      %p517 = pneg %p391
      %p518 = scmp.lt.s32.totalorder %s27, 1
      %s519 = scalar_select %p518, %s27, 1
      %s520 = smul.addr %s519, 2
      %s521 = smul.addr %s520, 8
      %s522 = scalar_lea.vmem %s16, %s521
      %p523 = scmp.lt.s32.totalorder %s27, 1
      %s524 = scalar_select %p523, %s27, 1
      %s525 = smul.addr %s524, 4
      %s526 = smul.addr %s525, 8
      %s527 = scalar_lea.vmem %s0, %s526
      %p528 = scmp.lt.s32.totalorder %s27, 1
      %s529 = scalar_select %p528, %s27, 1
      %s530 = scalar_lea.vmem %s2, %s529
      %p531 = scmp.lt.s32.totalorder %s27, 1
      %s532 = scalar_select %p531, %s27, 1
      %s533 = smul.addr %s532, 2
      %s534 = smul.addr %s533, 8
      %s535 = scalar_lea.vmem %s16, %s534
      %v536 = vld [vmem:[%s527] sm:$0xff]
      %v537 = vld [vmem:[%s527 + $0x8] sm:$0xff]
      %v538 = vld [vmem:[%s527 + $0x10] sm:$0xff]
      %v539 = vld [vmem:[%s527 + $0x18] sm:$0xff]
      %v540 = vld [vmem:[%s4] sm:$0x1]
      %v541 = vld [vmem:[%s3] sm:$0xff]
      %v542 = vld [vmem:[%s3 + $0x8] sm:$0xff]
      %v543 = vld [vmem:[%s3 + $0x10] sm:$0xff]
      %v544 = vld [vmem:[%s3 + $0x18] sm:$0xff]
      %v545 = vld [vmem:[%s3 + $0x20] sm:$0xff]
      %v546 = vld [vmem:[%s3 + $0x28] sm:$0xff]
      %v547 = vld [vmem:[%s3 + $0x30] sm:$0xff]
      %v548 = vld [vmem:[%s3 + $0x38] sm:$0xff]
      %v549 = vld [vmem:[%s3 + $0x40] sm:$0xff]
      %v550 = vld [vmem:[%s3 + $0x48] sm:$0xff]
      %v551 = vld [vmem:[%s3 + $0x50] sm:$0xff]
      %v552 = vld [vmem:[%s3 + $0x58] sm:$0xff]
      %v553 = vld [vmem:[%s3 + $0x60] sm:$0xff]
      %v554 = vld [vmem:[%s3 + $0x68] sm:$0xff]
      %v555 = vld [vmem:[%s3 + $0x70] sm:$0xff]
      %v556 = vld [vmem:[%s3 + $0x78] sm:$0xff]
      %v557 = vld [vmem:[%s3 + $0x80] sm:$0xff]
      %v558 = vld [vmem:[%s3 + $0x88] sm:$0xff]
      %v559 = vld [vmem:[%s3 + $0x90] sm:$0xff]
      %v560 = vld [vmem:[%s3 + $0x98] sm:$0xff]
      %vm561 = vcmask 261120
      %v563 = vsel %vm561, %v537, 0
      %v566 = vsel %vm561, %v539, 0
      %568 = vmatprep.subr.mxu0 0.0
      %569 = vmatpush1.msra.mxu0 %v541
      %570 = vmatprep.subr.mxu0 0.0
      %571 = vmatpush1.msra.mxu0 %v542
      %572 = vmatprep.subr.mxu0 0.0
      %573 = vmatpush1.msra.mxu0 %v543
      %574 = vmatprep.subr.mxu0 0.0
      %575 = vmatpush1.msra.mxu0 %v544
      %576 = vmatprep.subr.mxu0 0.0
      %577 = vmatpush1.msra.mxu0 %v545
      %578 = vmatprep.subr.mxu0 0.0
      %579 = vmatpush1.msra.mxu0 %v546
      %580 = vmatprep.subr.mxu0 0.0
      %581 = vmatpush1.msra.mxu0 %v547
      %582 = vmatprep.subr.mxu0 0.0
      %583 = vmatpush1.msra.mxu0 %v548
      %584 = vmatprep.subr.mxu0 0.0
      %585 = vmatpush1.msra.mxu0 %v549
      %586 = vmatprep.subr.mxu0 0.0
      %587 = vmatpush1.msra.mxu0 %v550
      %588 = vmatprep.subr.mxu0 0.0
      %589 = vmatpush1.msra.mxu0 %v551
      %590 = vmatprep.subr.mxu0 0.0
      %591 = vmatpush1.msra.mxu0 %v552
      %592 = vmatprep.subr.mxu0 0.0
      %593 = vmatpush1.msra.mxu0 %v553
      %594 = vmatprep.subr.mxu0 0.0
      %595 = vmatpush1.msra.mxu0 %v554
      %596 = vmatprep.subr.mxu0 0.0
      %597 = vmatpush1.msra.mxu0 %v555
      %598 = vmatprep.subr.mxu0 0.0
      %599 = vmatpush1.msra.mxu0 %v556
      %600 = vmatprep.subr.mxu0 0.0
      %601 = vmatpush1.msra.mxu0 %v557
      %602 = vmatprep.subr.mxu0 0.0
      %603 = vmatpush1.msra.mxu0 %v558
      %604 = vmatprep.subr.mxu0 0.0
      %605 = vmatpush1.msra.mxu0 %v559
      %606 = vmatprep.subr.mxu0 0.0
      %607 = vmatpush1.msra.mxu0 %v560
      %608 = vmatprep.subr.mxu0 0.0
      %609 = vmatpush1.msra.mxu0 0.0
      %610 = vmatprep.subr.mxu0 0.0
      %611 = vmatpush1.msra.mxu0 0.0
      %612 = vmatprep.subr.mxu0 0.0
      %613 = vmatpush1.msra.mxu0 0.0
      %614 = vmatprep.subr.mxu0 0.0
      %615 = vmatpush1.msra.mxu0 0.0
      %616 = vmatprep.subr.mxu0 0.0
      %617 = vmatpush1.msra.mxu0 0.0
      %618 = vmatprep.subr.mxu0 0.0
      %619 = vmatpush1.msra.mxu0 0.0
      %620 = vmatprep.subr.mxu0 0.0
      %621 = vmatpush1.msra.mxu0 0.0
      %622 = vmatprep.subr.mxu0 0.0
      %623 = vmatpush1.msra.mxu0 0.0
      %624 = vmatprep.subr.mxu0 0.0
      %625 = vmatpush1.msra.mxu0 0.0
      %626 = vmatprep.subr.mxu0 0.0
      %627 = vmatpush1.msra.mxu0 0.0
      %628 = vmatprep.subr.mxu0 0.0
      %629 = vmatpush1.msra.mxu0 0.0
      %630 = vmatprep.subr.mxu0 0.0
      %631 = vmatpush1.msra.mxu0 0.0
      %632 = vmatprep.mubr.f32.mxu0 %v563
      %633 = vmatmul.mubr.f32.gmra.mrb[0].mxu0 %v536
      %v634 = vpop.f32.mrb[0].mxu0
      %v635 = vadd.f32 0.0, %v634
      %v636 = vpop.f32.mrb[0].mxu0
      %637 = vmatprep.mubr.f32.mxu0 %v566
      %638 = vmatmul.mubr.f32.gmra.mrb[0].mxu0 %v538
      %v639 = vpop.f32.mrb[0].mxu0
      %v640 = vadd.f32 0.0, %v639
      %v641 = vpop.f32.mrb[0].mxu0
      %642 = vdwg.mxu0
      %v644 = vlaneseq
      %v645 = vshrl.u32 %v644, 7
      %v646 = vsub.s32 0, %v645
      %v647 = vrot.slane %v540, %v646
      %v649 = vadd.f32 %v647, %v635
      %v650 = vadd.f32 %v647, %v640
      %s651 = scalar_lea.vmem %s3, 160
      %v652 = vld [vmem:[%s651] sm:$0xff]
      %v653 = vld [vmem:[%s651 + $0x8] sm:$0xff]
      %v654 = vld [vmem:[%s651 + $0x10] sm:$0xff]
      %v655 = vld [vmem:[%s651 + $0x18] sm:$0xff]
      %v656 = vld [vmem:[%s651 + $0x20] sm:$0xff]
      %v657 = vld [vmem:[%s651 + $0x28] sm:$0xff]
      %v658 = vld [vmem:[%s651 + $0x30] sm:$0xff]
      %v659 = vld [vmem:[%s651 + $0x38] sm:$0xff]
      %v660 = vld [vmem:[%s651 + $0x40] sm:$0xff]
      %v661 = vld [vmem:[%s651 + $0x48] sm:$0xff]
      %v662 = vld [vmem:[%s651 + $0x50] sm:$0xff]
      %v663 = vld [vmem:[%s651 + $0x58] sm:$0xff]
      %v664 = vld [vmem:[%s651 + $0x60] sm:$0xff]
      %v665 = vld [vmem:[%s651 + $0x68] sm:$0xff]
      %v666 = vld [vmem:[%s651 + $0x70] sm:$0xff]
      %v667 = vld [vmem:[%s651 + $0x78] sm:$0xff]
      %v668 = vld [vmem:[%s651 + $0x80] sm:$0xff]
      %v669 = vld [vmem:[%s651 + $0x88] sm:$0xff]
      %v670 = vld [vmem:[%s651 + $0x90] sm:$0xff]
      %v671 = vld [vmem:[%s651 + $0x98] sm:$0xff]
      %vm674 = vcmask 1046528
      %v675 = vrot.slane %v536, 1
      %v676 = vrot.slane %v538, 1
      %v677 = vsel %vm674, %v675, %v676
      %v678 = vrot.slane %v537, 1
      %v679 = vrot.slane %v539, 1
      %v680 = vsel %vm674, %v678, %v679
      %v683 = vsel %vm561, %v680, 0
      %v685 = vsel %vm561, %v679, 0
      %687 = vmatprep.subr.mxu0 0.0
      %688 = vmatpush1.msra.mxu0 %v652
      %689 = vmatprep.subr.mxu0 0.0
      %690 = vmatpush1.msra.mxu0 %v653
      %691 = vmatprep.subr.mxu0 0.0
      %692 = vmatpush1.msra.mxu0 %v654
      %693 = vmatprep.subr.mxu0 0.0
      %694 = vmatpush1.msra.mxu0 %v655
      %695 = vmatprep.subr.mxu0 0.0
      %696 = vmatpush1.msra.mxu0 %v656
      %697 = vmatprep.subr.mxu0 0.0
      %698 = vmatpush1.msra.mxu0 %v657
      %699 = vmatprep.subr.mxu0 0.0
      %700 = vmatpush1.msra.mxu0 %v658
      %701 = vmatprep.subr.mxu0 0.0
      %702 = vmatpush1.msra.mxu0 %v659
      %703 = vmatprep.subr.mxu0 0.0
      %704 = vmatpush1.msra.mxu0 %v660
      %705 = vmatprep.subr.mxu0 0.0
      %706 = vmatpush1.msra.mxu0 %v661
      %707 = vmatprep.subr.mxu0 0.0
      %708 = vmatpush1.msra.mxu0 %v662
      %709 = vmatprep.subr.mxu0 0.0
      %710 = vmatpush1.msra.mxu0 %v663
      %711 = vmatprep.subr.mxu0 0.0
      %712 = vmatpush1.msra.mxu0 %v664
      %713 = vmatprep.subr.mxu0 0.0
      %714 = vmatpush1.msra.mxu0 %v665
      %715 = vmatprep.subr.mxu0 0.0
      %716 = vmatpush1.msra.mxu0 %v666
      %717 = vmatprep.subr.mxu0 0.0
      %718 = vmatpush1.msra.mxu0 %v667
      %719 = vmatprep.subr.mxu0 0.0
      %720 = vmatpush1.msra.mxu0 %v668
      %721 = vmatprep.subr.mxu0 0.0
      %722 = vmatpush1.msra.mxu0 %v669
      %723 = vmatprep.subr.mxu0 0.0
      %724 = vmatpush1.msra.mxu0 %v670
      %725 = vmatprep.subr.mxu0 0.0
      %726 = vmatpush1.msra.mxu0 %v671
      %727 = vmatprep.subr.mxu0 0.0
      %728 = vmatpush1.msra.mxu0 0.0
      %729 = vmatprep.subr.mxu0 0.0
      %730 = vmatpush1.msra.mxu0 0.0
      %731 = vmatprep.subr.mxu0 0.0
      %732 = vmatpush1.msra.mxu0 0.0
      %733 = vmatprep.subr.mxu0 0.0
      %734 = vmatpush1.msra.mxu0 0.0
      %735 = vmatprep.subr.mxu0 0.0
      %736 = vmatpush1.msra.mxu0 0.0
      %737 = vmatprep.subr.mxu0 0.0
      %738 = vmatpush1.msra.mxu0 0.0
      %739 = vmatprep.subr.mxu0 0.0
      %740 = vmatpush1.msra.mxu0 0.0
      %741 = vmatprep.subr.mxu0 0.0
      %742 = vmatpush1.msra.mxu0 0.0
      %743 = vmatprep.subr.mxu0 0.0
      %744 = vmatpush1.msra.mxu0 0.0
      %745 = vmatprep.subr.mxu0 0.0
      %746 = vmatpush1.msra.mxu0 0.0
      %747 = vmatprep.subr.mxu0 0.0
      %748 = vmatpush1.msra.mxu0 0.0
      %749 = vmatprep.subr.mxu0 0.0
      %750 = vmatpush1.msra.mxu0 0.0
      %751 = vmatprep.mubr.f32.mxu0 %v683
      %752 = vmatmul.mubr.f32.gmra.mrb[0].mxu0 %v677
      %v753 = vpop.f32.mrb[0].mxu0
      %v754 = vadd.f32 0.0, %v753
      %v755 = vpop.f32.mrb[0].mxu0
      %756 = vmatprep.mubr.f32.mxu0 %v685
      %757 = vmatmul.mubr.f32.gmra.mrb[0].mxu0 %v676
      %v758 = vpop.f32.mrb[0].mxu0
      %v759 = vadd.f32 0.0, %v758
      %v760 = vpop.f32.mrb[0].mxu0
      %761 = vdwg.mxu0
      %v762 = vadd.f32 %v649, %v754
      %v763 = vadd.f32 %v650, %v759
      %s764 = scalar_lea.vmem %s3, 320
      %v765 = vld [vmem:[%s764] sm:$0xff]
      %v766 = vld [vmem:[%s764 + $0x8] sm:$0xff]
      %v767 = vld [vmem:[%s764 + $0x10] sm:$0xff]
      %v768 = vld [vmem:[%s764 + $0x18] sm:$0xff]
      %v769 = vld [vmem:[%s764 + $0x20] sm:$0xff]
      %v770 = vld [vmem:[%s764 + $0x28] sm:$0xff]
      %v771 = vld [vmem:[%s764 + $0x30] sm:$0xff]
      %v772 = vld [vmem:[%s764 + $0x38] sm:$0xff]
      %v773 = vld [vmem:[%s764 + $0x40] sm:$0xff]
      %v774 = vld [vmem:[%s764 + $0x48] sm:$0xff]
      %v775 = vld [vmem:[%s764 + $0x50] sm:$0xff]
      %v776 = vld [vmem:[%s764 + $0x58] sm:$0xff]
      %v777 = vld [vmem:[%s764 + $0x60] sm:$0xff]
      %v778 = vld [vmem:[%s764 + $0x68] sm:$0xff]
      %v779 = vld [vmem:[%s764 + $0x70] sm:$0xff]
      %v780 = vld [vmem:[%s764 + $0x78] sm:$0xff]
      %v781 = vld [vmem:[%s764 + $0x80] sm:$0xff]
      %v782 = vld [vmem:[%s764 + $0x88] sm:$0xff]
      %v783 = vld [vmem:[%s764 + $0x90] sm:$0xff]
      %v784 = vld [vmem:[%s764 + $0x98] sm:$0xff]
      %vm785 = vcmask 1045504
      %v786 = vrot.slane %v536, 2
      %v787 = vrot.slane %v538, 2
      %v788 = vsel %vm785, %v786, %v787
      %v789 = vrot.slane %v537, 2
      %v790 = vrot.slane %v539, 2
      %v791 = vsel %vm785, %v789, %v790
      %v794 = vsel %vm561, %v791, 0
      %v796 = vsel %vm561, %v790, 0
      %798 = vmatprep.subr.mxu0 0.0
      %799 = vmatpush1.msra.mxu0 %v765
      %800 = vmatprep.subr.mxu0 0.0
      %801 = vmatpush1.msra.mxu0 %v766
      %802 = vmatprep.subr.mxu0 0.0
      %803 = vmatpush1.msra.mxu0 %v767
      %804 = vmatprep.subr.mxu0 0.0
      %805 = vmatpush1.msra.mxu0 %v768
      %806 = vmatprep.subr.mxu0 0.0
      %807 = vmatpush1.msra.mxu0 %v769
      %808 = vmatprep.subr.mxu0 0.0
      %809 = vmatpush1.msra.mxu0 %v770
      %810 = vmatprep.subr.mxu0 0.0
      %811 = vmatpush1.msra.mxu0 %v771
      %812 = vmatprep.subr.mxu0 0.0
      %813 = vmatpush1.msra.mxu0 %v772
      %814 = vmatprep.subr.mxu0 0.0
      %815 = vmatpush1.msra.mxu0 %v773
      %816 = vmatprep.subr.mxu0 0.0
      %817 = vmatpush1.msra.mxu0 %v774
      %818 = vmatprep.subr.mxu0 0.0
      %819 = vmatpush1.msra.mxu0 %v775
      %820 = vmatprep.subr.mxu0 0.0
      %821 = vmatpush1.msra.mxu0 %v776
      %822 = vmatprep.subr.mxu0 0.0
      %823 = vmatpush1.msra.mxu0 %v777
      %824 = vmatprep.subr.mxu0 0.0
      %825 = vmatpush1.msra.mxu0 %v778
      %826 = vmatprep.subr.mxu0 0.0
      %827 = vmatpush1.msra.mxu0 %v779
      %828 = vmatprep.subr.mxu0 0.0
      %829 = vmatpush1.msra.mxu0 %v780
      %830 = vmatprep.subr.mxu0 0.0
      %831 = vmatpush1.msra.mxu0 %v781
      %832 = vmatprep.subr.mxu0 0.0
      %833 = vmatpush1.msra.mxu0 %v782
      %834 = vmatprep.subr.mxu0 0.0
      %835 = vmatpush1.msra.mxu0 %v783
      %836 = vmatprep.subr.mxu0 0.0
      %837 = vmatpush1.msra.mxu0 %v784
      %838 = vmatprep.subr.mxu0 0.0
      %839 = vmatpush1.msra.mxu0 0.0
      %840 = vmatprep.subr.mxu0 0.0
      %841 = vmatpush1.msra.mxu0 0.0
      %842 = vmatprep.subr.mxu0 0.0
      %843 = vmatpush1.msra.mxu0 0.0
      %844 = vmatprep.subr.mxu0 0.0
      %845 = vmatpush1.msra.mxu0 0.0
      %846 = vmatprep.subr.mxu0 0.0
      %847 = vmatpush1.msra.mxu0 0.0
      %848 = vmatprep.subr.mxu0 0.0
      %849 = vmatpush1.msra.mxu0 0.0
      %850 = vmatprep.subr.mxu0 0.0
      %851 = vmatpush1.msra.mxu0 0.0
      %852 = vmatprep.subr.mxu0 0.0
      %853 = vmatpush1.msra.mxu0 0.0
      %854 = vmatprep.subr.mxu0 0.0
      %855 = vmatpush1.msra.mxu0 0.0
      %856 = vmatprep.subr.mxu0 0.0
      %857 = vmatpush1.msra.mxu0 0.0
      %858 = vmatprep.subr.mxu0 0.0
      %859 = vmatpush1.msra.mxu0 0.0
      %860 = vmatprep.subr.mxu0 0.0
      %861 = vmatpush1.msra.mxu0 0.0
      %862 = vmatprep.mubr.f32.mxu0 %v794
      %863 = vmatmul.mubr.f32.gmra.mrb[0].mxu0 %v788
      %v864 = vpop.f32.mrb[0].mxu0
      %v865 = vadd.f32 0.0, %v864
      %v866 = vpop.f32.mrb[0].mxu0
      %867 = vmatprep.mubr.f32.mxu0 %v796
      %868 = vmatmul.mubr.f32.gmra.mrb[0].mxu0 %v787
      %v869 = vpop.f32.mrb[0].mxu0
      %v870 = vadd.f32 0.0, %v869
      %v871 = vpop.f32.mrb[0].mxu0
      %872 = vdwg.mxu0
      %v873 = vadd.f32 %v762, %v865
      %v874 = vadd.f32 %v763, %v870
      %v875 = vld [vmem:[%s5] sm:$0x3]
      %v876 = vld [vmem:[%s1] sm:$0xff]
      %v877 = vld [vmem:[%s1 + $0x8] sm:$0x3f]
      %v878 = vadd.f32 %v873, %v876
      %v879 = vadd.f32 %v874, %v877
      %v880 = vsel %vm561, %v878, 0.0
      %881 = vadd.xlane.f32.xlu0 %v880
      %v882 = vpop.xlane.xlu0 %881
      %vm883 = vcmask 259072
      %v884 = vsel %vm883, %v879, 0.0
      %885 = vadd.xlane.f32.xlu0 %v884
      %v886 = vpop.xlane.xlu0 %885
      %v887 = vrcp.pop 32.0
      %v888 = vmul.f32 %v882, %v887
      %v889 = vmul.f32 %v886, %v887
      %v890 = vsub.f32 %v878, %v888
      %v891 = vsub.f32 %v879, %v889
      %v892 = vmul.f32 %v890, %v890
      %v893 = vmul.f32 %v891, %v891
      %v894 = vsel %vm561, %v892, 0.0
      %895 = vadd.xlane.f32.xlu0 %v894
      %v896 = vpop.xlane.xlu0 %895
      %v897 = vsel %vm883, %v893, 0.0
      %898 = vadd.xlane.f32.xlu0 %v897
      %v899 = vpop.xlane.xlu0 %898
      %v900 = vmul.f32 %v896, %v887
      %v901 = vmul.f32 %v899, %v887
      %v902 = vadd.f32 %v900, 1e-12
      %v903 = vadd.f32 %v901, 1e-12
      %v904 = vrsqrt.pop %v902
      %v905 = vrsqrt.pop %v903
      %v906 = vmul.f32 %v890, %v904
      %v907 = vmul.f32 %v891, %v905
      %v908 = vlaneseq
      %v909 = vshrl.u32 %v908, 7
      %v910 = vsub.s32 0, %v909
      %v911 = vrot.slane %v875, %v910
      %v912 = vmul.f32 %v906, %v911
      %v913 = vmul.f32 %v907, %v911
      %v914 = vlaneseq
      %v915 = vshrl.u32 %v914, 7
      %v916 = vsub.s32 1, %v915
      %v917 = vrot.slane %v875, %v916
      %v918 = vadd.f32 %v912, %v917
      %v919 = vadd.f32 %v913, %v917
      %v920 = vld [vmem:[%s530] sm:$0x1]
      %v921 = vld [vmem:[%s6] sm:$0xff]
      %v922 = vld [vmem:[%s6 + $0x8] sm:$0xff]
      %v923 = vld [vmem:[%s6 + $0x10] sm:$0xff]
      %v924 = vld [vmem:[%s6 + $0x18] sm:$0xff]
      %v925 = vld [vmem:[%s7] sm:$0x1]
      %v927 = vlaneseq
      %v928 = vshrl.u32 %v927, 7
      %v929 = vsub.s32 0, %v928
      %v930 = vrot.slane %v925, %v929
      %v933 = vsel %vm561, %v918, 0
      %v936 = vsel %vm561, %v919, 0
      %938 = vmatprep.subr.mxu0 0.0
      %939 = vmatpush1.msra.mxu0 %v921
      %940 = vmatprep.subr.mxu0 0.0
      %941 = vmatpush1.msra.mxu0 %v922
      %942 = vmatprep.subr.mxu0 0.0
      %943 = vmatpush1.msra.mxu0 %v923
      %944 = vmatprep.subr.mxu0 0.0
      %945 = vmatpush1.msra.mxu0 %v924
      %946 = vmatprep.subr.mxu0 0.0
      %947 = vmatpush1.msra.mxu0 0.0
      %948 = vmatprep.subr.mxu0 0.0
      %949 = vmatpush1.msra.mxu0 0.0
      %950 = vmatprep.subr.mxu0 0.0
      %951 = vmatpush1.msra.mxu0 0.0
      %952 = vmatprep.subr.mxu0 0.0
      %953 = vmatpush1.msra.mxu0 0.0
      %954 = vmatprep.subr.mxu0 0.0
      %955 = vmatpush1.msra.mxu0 0.0
      %956 = vmatprep.subr.mxu0 0.0
      %957 = vmatpush1.msra.mxu0 0.0
      %958 = vmatprep.subr.mxu0 0.0
      %959 = vmatpush1.msra.mxu0 0.0
      %960 = vmatprep.subr.mxu0 0.0
      %961 = vmatpush1.msra.mxu0 0.0
      %962 = vmatprep.subr.mxu0 0.0
      %963 = vmatpush1.msra.mxu0 0.0
      %964 = vmatprep.subr.mxu0 0.0
      %965 = vmatpush1.msra.mxu0 0.0
      %966 = vmatprep.subr.mxu0 0.0
      %967 = vmatpush1.msra.mxu0 0.0
      %968 = vmatprep.subr.mxu0 0.0
      %969 = vmatpush1.msra.mxu0 0.0
      %970 = vmatprep.subr.mxu0 0.0
      %971 = vmatpush1.msra.mxu0 0.0
      %972 = vmatprep.subr.mxu0 0.0
      %973 = vmatpush1.msra.mxu0 0.0
      %974 = vmatprep.subr.mxu0 0.0
      %975 = vmatpush1.msra.mxu0 0.0
      %976 = vmatprep.subr.mxu0 0.0
      %977 = vmatpush1.msra.mxu0 0.0
      %978 = vmatprep.subr.mxu0 0.0
      %979 = vmatpush1.msra.mxu0 0.0
      %980 = vmatprep.subr.mxu0 0.0
      %981 = vmatpush1.msra.mxu0 0.0
      %982 = vmatprep.subr.mxu0 0.0
      %983 = vmatpush1.msra.mxu0 0.0
      %984 = vmatprep.subr.mxu0 0.0
      %985 = vmatpush1.msra.mxu0 0.0
      %986 = vmatprep.subr.mxu0 0.0
      %987 = vmatpush1.msra.mxu0 0.0
      %988 = vmatprep.subr.mxu0 0.0
      %989 = vmatpush1.msra.mxu0 0.0
      %990 = vmatprep.subr.mxu0 0.0
      %991 = vmatpush1.msra.mxu0 0.0
      %992 = vmatprep.subr.mxu0 0.0
      %993 = vmatpush1.msra.mxu0 0.0
      %994 = vmatprep.subr.mxu0 0.0
      %995 = vmatpush1.msra.mxu0 0.0
      %996 = vmatprep.subr.mxu0 0.0
      %997 = vmatpush1.msra.mxu0 0.0
      %998 = vmatprep.subr.mxu0 0.0
      %999 = vmatpush1.msra.mxu0 0.0
      %1000 = vmatprep.subr.mxu0 0.0
      %1001 = vmatpush1.msra.mxu0 0.0
      %1002 = vmatprep.mubr.f32.mxu0 0.0
      %1003 = vmatmul.mubr.f32.gmra.mrb[0].mxu0 %v933
      %v1004 = vpop.f32.mrb[0].mxu0
      %v1005 = vadd.f32 %v930, %v1004
      %v1006 = vpop.f32.mrb[0].mxu0
      %1007 = vmatprep.mubr.f32.mxu0 0.0
      %1008 = vmatmul.mubr.f32.gmra.mrb[0].mxu0 %v936
      %v1009 = vpop.f32.mrb[0].mxu0
      %v1010 = vadd.f32 %v930, %v1009
      %v1011 = vpop.f32.mrb[0].mxu0
      %1012 = vdwg.mxu0
      %v1013 = vld [vmem:[%s8] sm:$0xff]
      %v1014 = vld [vmem:[%s8 + $0x8] sm:$0xff]
      %v1015 = vld [vmem:[%s8 + $0x10] sm:$0xff]
      %v1016 = vld [vmem:[%s8 + $0x18] sm:$0xff]
      %v1017 = vld [vmem:[%s9] sm:$0x1]
      %1020 = vrot.lane.b32.xlu0 %v1005, 96
      %v1021 = vpop.permute.xlu0 %1020
      %1022 = vrot.lane.b32.xlu0 %v1010, 96
      %v1023 = vpop.permute.xlu0 %1022
      %vm1024 = vcmask 64512
      %v1025 = vsel %vm1024, %v1005, 0
      %v1027 = vsel %vm1024, %v1010, 0
      %v1029 = vsel %vm1024, %v1021, 0
      %v1031 = vsel %vm1024, %v1023, 0
      %1033 = vmatprep.subr.mxu0 0.0
      %1034 = vmatpush1.xpose.msra.mxu0 %v1029
      %1035 = vmatprep.subr.mxu0 0.0
      %1036 = vmatpush1.xpose.msra.mxu0 %v1031
      %1037 = vmatprep.subr.mxu0 0.0
      %1038 = vmatpush1.xpose.msra.mxu0 0.0
      %1039 = vmatprep.subr.mxu0 0.0
      %1040 = vmatpush1.xpose.msra.mxu0 0.0
      %1041 = vmatprep.subr.mxu0 0.0
      %1042 = vmatpush1.xpose.msra.mxu0 0.0
      %1043 = vmatprep.subr.mxu0 0.0
      %1044 = vmatpush1.xpose.msra.mxu0 0.0
      %1045 = vmatprep.subr.mxu0 0.0
      %1046 = vmatpush1.xpose.msra.mxu0 0.0
      %1047 = vmatprep.subr.mxu0 0.0
      %1048 = vmatpush1.xpose.msra.mxu0 0.0
      %1049 = vmatprep.subr.mxu0 0.0
      %1050 = vmatpush1.xpose.msra.mxu0 0.0
      %1051 = vmatprep.subr.mxu0 0.0
      %1052 = vmatpush1.xpose.msra.mxu0 0.0
      %1053 = vmatprep.subr.mxu0 0.0
      %1054 = vmatpush1.xpose.msra.mxu0 0.0
      %1055 = vmatprep.subr.mxu0 0.0
      %1056 = vmatpush1.xpose.msra.mxu0 0.0
      %1057 = vmatprep.subr.mxu0 0.0
      %1058 = vmatpush1.xpose.msra.mxu0 0.0
      %1059 = vmatprep.subr.mxu0 0.0
      %1060 = vmatpush1.xpose.msra.mxu0 0.0
      %1061 = vmatprep.subr.mxu0 0.0
      %1062 = vmatpush1.xpose.msra.mxu0 0.0
      %1063 = vmatprep.subr.mxu0 0.0
      %1064 = vmatpush1.xpose.msra.mxu0 0.0
      %1065 = vmatprep.subr.mxu0 0.0
      %1066 = vmatpush1.xpose.msra.mxu0 0.0
      %1067 = vmatprep.subr.mxu0 0.0
      %1068 = vmatpush1.xpose.msra.mxu0 0.0
      %1069 = vmatprep.subr.mxu0 0.0
      %1070 = vmatpush1.xpose.msra.mxu0 0.0
      %1071 = vmatprep.subr.mxu0 0.0
      %1072 = vmatpush1.xpose.msra.mxu0 0.0
      %1073 = vmatprep.subr.mxu0 0.0
      %1074 = vmatpush1.xpose.msra.mxu0 0.0
      %1075 = vmatprep.subr.mxu0 0.0
      %1076 = vmatpush1.xpose.msra.mxu0 0.0
      %1077 = vmatprep.subr.mxu0 0.0
      %1078 = vmatpush1.xpose.msra.mxu0 0.0
      %1079 = vmatprep.subr.mxu0 0.0
      %1080 = vmatpush1.xpose.msra.mxu0 0.0
      %1081 = vmatprep.subr.mxu0 0.0
      %1082 = vmatpush1.xpose.msra.mxu0 0.0
      %1083 = vmatprep.subr.mxu0 0.0
      %1084 = vmatpush1.xpose.msra.mxu0 0.0
      %1085 = vmatprep.subr.mxu0 0.0
      %1086 = vmatpush1.xpose.msra.mxu0 0.0
      %1087 = vmatprep.subr.mxu0 0.0
      %1088 = vmatpush1.xpose.msra.mxu0 0.0
      %1089 = vmatprep.subr.mxu0 0.0
      %1090 = vmatpush1.xpose.msra.mxu0 0.0
      %1091 = vmatprep.subr.mxu0 0.0
      %1092 = vmatpush1.xpose.msra.mxu0 0.0
      %1093 = vmatprep.subr.mxu0 0.0
      %1094 = vmatpush1.xpose.msra.mxu0 0.0
      %1095 = vmatprep.subr.mxu0 0.0
      %1096 = vmatpush1.xpose.msra.mxu0 0.0
      %1097 = vmatprep.mubr.f32.mxu0 0.0
      %1098 = vmatmul.mubr.f32.gmra.mrb[0].mxu0 %v1025
      %v1099 = vpop.f32.mrb[0].mxu0
      %v1100 = vadd.f32 0.0, %v1099
      %v1101 = vpop.f32.mrb[0].mxu0
      %1102 = vmatprep.mubr.f32.mxu0 0.0
      %1103 = vmatmul.mubr.f32.gmra.mrb[0].mxu0 %v1027
      %v1104 = vpop.f32.mrb[0].mxu0
      %v1105 = vadd.f32 0.0, %v1104
      %v1106 = vpop.f32.mrb[0].mxu0
      %1107 = vdwg.mxu0
      %v1108 = vmul.f32 %v1100, 0.35355338
      %v1109 = vmul.f32 %v1105, 0.35355338
      %v1111 = vlaneseq
      %v1112 = vshrl.u32 %v1111, 7
      %v1113 = vsub.s32 0, %v1112
      %v1114 = vrot.slane %v920, %v1113
      %v1116 = vadd.f32 %v1108, %v1114
      %v1117 = vadd.f32 %v1109, %v1114
      %vm1118 = vcmask 113664
      %v1119 = vsel %vm1118, %v1116, -inf
      %1120 = vmax.xlane.f32.xlu0 %v1119
      %v1121 = vpop.xlane.xlu0 %1120
      %vm1122 = vcmask 111616
      %v1123 = vsel %vm1122, %v1117, -inf
      %1124 = vmax.xlane.f32.xlu0 %v1123
      %v1125 = vpop.xlane.xlu0 %1124
      %v1126 = vsub.f32 %v1116, %v1121
      %v1127 = vsub.f32 %v1117, %v1125
      %v1128 = vmul.f32 %v1126, 1.442695
      %v1129 = vpow.pop %v1128
      %v1130 = vmul.f32 %v1127, 1.442695
      %v1131 = vpow.pop %v1130
      %v1132 = vsel %vm1118, %v1129, 0.0
      %1133 = vadd.xlane.f32.xlu0 %v1132
      %v1134 = vpop.xlane.xlu0 %1133
      %v1135 = vsel %vm1122, %v1131, 0.0
      %1136 = vadd.xlane.f32.xlu0 %v1135
      %v1137 = vpop.xlane.xlu0 %1136
      %v1138 = vrcp.pop %v1134
      %v1139 = vrcp.pop %v1137
      %v1140 = vmul.f32 %v1129, %v1138
      %v1141 = vmul.f32 %v1131, %v1139
      %1142 = vrot.lane.b32.xlu0 %v1005, 64
      %v1143 = vpop.permute.xlu0 %1142
      %1144 = vrot.lane.b32.xlu0 %v1010, 64
      %v1145 = vpop.permute.xlu0 %1144
      %v1148 = vsel %vm1118, %v1140, 0
      %v1151 = vsel %vm1118, %v1141, 0
      %v1153 = vsel %vm785, %v1145, 0
      %1155 = vmatprep.subr.mxu0 0.0
      %1156 = vmatpush1.msra.mxu0 %v1143
      %1157 = vmatprep.subr.mxu0 0.0
      %1158 = vmatpush1.msra.mxu0 %v1153
      %1159 = vmatprep.subr.mxu0 0.0
      %1160 = vmatpush1.msra.mxu0 0.0
      %1161 = vmatprep.subr.mxu0 0.0
      %1162 = vmatpush1.msra.mxu0 0.0
      %1163 = vmatprep.subr.mxu0 0.0
      %1164 = vmatpush1.msra.mxu0 0.0
      %1165 = vmatprep.subr.mxu0 0.0
      %1166 = vmatpush1.msra.mxu0 0.0
      %1167 = vmatprep.subr.mxu0 0.0
      %1168 = vmatpush1.msra.mxu0 0.0
      %1169 = vmatprep.subr.mxu0 0.0
      %1170 = vmatpush1.msra.mxu0 0.0
      %1171 = vmatprep.subr.mxu0 0.0
      %1172 = vmatpush1.msra.mxu0 0.0
      %1173 = vmatprep.subr.mxu0 0.0
      %1174 = vmatpush1.msra.mxu0 0.0
      %1175 = vmatprep.subr.mxu0 0.0
      %1176 = vmatpush1.msra.mxu0 0.0
      %1177 = vmatprep.subr.mxu0 0.0
      %1178 = vmatpush1.msra.mxu0 0.0
      %1179 = vmatprep.subr.mxu0 0.0
      %1180 = vmatpush1.msra.mxu0 0.0
      %1181 = vmatprep.subr.mxu0 0.0
      %1182 = vmatpush1.msra.mxu0 0.0
      %1183 = vmatprep.subr.mxu0 0.0
      %1184 = vmatpush1.msra.mxu0 0.0
      %1185 = vmatprep.subr.mxu0 0.0
      %1186 = vmatpush1.msra.mxu0 0.0
      %1187 = vmatprep.subr.mxu0 0.0
      %1188 = vmatpush1.msra.mxu0 0.0
      %1189 = vmatprep.subr.mxu0 0.0
      %1190 = vmatpush1.msra.mxu0 0.0
      %1191 = vmatprep.subr.mxu0 0.0
      %1192 = vmatpush1.msra.mxu0 0.0
      %1193 = vmatprep.subr.mxu0 0.0
      %1194 = vmatpush1.msra.mxu0 0.0
      %1195 = vmatprep.subr.mxu0 0.0
      %1196 = vmatpush1.msra.mxu0 0.0
      %1197 = vmatprep.subr.mxu0 0.0
      %1198 = vmatpush1.msra.mxu0 0.0
      %1199 = vmatprep.subr.mxu0 0.0
      %1200 = vmatpush1.msra.mxu0 0.0
      %1201 = vmatprep.subr.mxu0 0.0
      %1202 = vmatpush1.msra.mxu0 0.0
      %1203 = vmatprep.subr.mxu0 0.0
      %1204 = vmatpush1.msra.mxu0 0.0
      %1205 = vmatprep.subr.mxu0 0.0
      %1206 = vmatpush1.msra.mxu0 0.0
      %1207 = vmatprep.subr.mxu0 0.0
      %1208 = vmatpush1.msra.mxu0 0.0
      %1209 = vmatprep.subr.mxu0 0.0
      %1210 = vmatpush1.msra.mxu0 0.0
      %1211 = vmatprep.subr.mxu0 0.0
      %1212 = vmatpush1.msra.mxu0 0.0
      %1213 = vmatprep.subr.mxu0 0.0
      %1214 = vmatpush1.msra.mxu0 0.0
      %1215 = vmatprep.subr.mxu0 0.0
      %1216 = vmatpush1.msra.mxu0 0.0
      %1217 = vmatprep.subr.mxu0 0.0
      %1218 = vmatpush1.msra.mxu0 0.0
      %1219 = vmatprep.mubr.f32.mxu0 0.0
      %1220 = vmatmul.mubr.f32.gmra.mrb[0].mxu0 %v1148
      %v1221 = vpop.f32.mrb[0].mxu0
      %v1222 = vadd.f32 0.0, %v1221
      %v1223 = vpop.f32.mrb[0].mxu0
      %1224 = vmatprep.mubr.f32.mxu0 0.0
      %1225 = vmatmul.mubr.f32.gmra.mrb[0].mxu0 %v1151
      %v1226 = vpop.f32.mrb[0].mxu0
      %v1227 = vadd.f32 0.0, %v1226
      %v1228 = vpop.f32.mrb[0].mxu0
      %1229 = vdwg.mxu0
      %v1231 = vsel %vm1024, %v1222, 0
      %v1234 = vsel %vm1024, %v1227, 0
      %1236 = vmatprep.subr.mxu0 0.0
      %1237 = vmatpush1.msra.mxu0 %v1013
      %1238 = vmatprep.subr.mxu0 0.0
      %1239 = vmatpush1.msra.mxu0 0.0
      %1240 = vmatprep.subr.mxu0 0.0
      %1241 = vmatpush1.msra.mxu0 0.0
      %1242 = vmatprep.subr.mxu0 0.0
      %1243 = vmatpush1.msra.mxu0 0.0
      %1244 = vmatprep.subr.mxu0 0.0
      %1245 = vmatpush1.msra.mxu0 0.0
      %1246 = vmatprep.subr.mxu0 0.0
      %1247 = vmatpush1.msra.mxu0 0.0
      %1248 = vmatprep.subr.mxu0 0.0
      %1249 = vmatpush1.msra.mxu0 0.0
      %1250 = vmatprep.subr.mxu0 0.0
      %1251 = vmatpush1.msra.mxu0 0.0
      %1252 = vmatprep.subr.mxu0 0.0
      %1253 = vmatpush1.msra.mxu0 0.0
      %1254 = vmatprep.subr.mxu0 0.0
      %1255 = vmatpush1.msra.mxu0 0.0
      %1256 = vmatprep.subr.mxu0 0.0
      %1257 = vmatpush1.msra.mxu0 0.0
      %1258 = vmatprep.subr.mxu0 0.0
      %1259 = vmatpush1.msra.mxu0 0.0
      %1260 = vmatprep.subr.mxu0 0.0
      %1261 = vmatpush1.msra.mxu0 0.0
      %1262 = vmatprep.subr.mxu0 0.0
      %1263 = vmatpush1.msra.mxu0 0.0
      %1264 = vmatprep.subr.mxu0 0.0
      %1265 = vmatpush1.msra.mxu0 0.0
      %1266 = vmatprep.subr.mxu0 0.0
      %1267 = vmatpush1.msra.mxu0 0.0
      %1268 = vmatprep.subr.mxu0 0.0
      %1269 = vmatpush1.msra.mxu0 0.0
      %1270 = vmatprep.subr.mxu0 0.0
      %1271 = vmatpush1.msra.mxu0 0.0
      %1272 = vmatprep.subr.mxu0 0.0
      %1273 = vmatpush1.msra.mxu0 0.0
      %1274 = vmatprep.subr.mxu0 0.0
      %1275 = vmatpush1.msra.mxu0 0.0
      %1276 = vmatprep.subr.mxu0 0.0
      %1277 = vmatpush1.msra.mxu0 0.0
      %1278 = vmatprep.subr.mxu0 0.0
      %1279 = vmatpush1.msra.mxu0 0.0
      %1280 = vmatprep.subr.mxu0 0.0
      %1281 = vmatpush1.msra.mxu0 0.0
      %1282 = vmatprep.subr.mxu0 0.0
      %1283 = vmatpush1.msra.mxu0 0.0
      %1284 = vmatprep.subr.mxu0 0.0
      %1285 = vmatpush1.msra.mxu0 0.0
      %1286 = vmatprep.subr.mxu0 0.0
      %1287 = vmatpush1.msra.mxu0 0.0
      %1288 = vmatprep.subr.mxu0 0.0
      %1289 = vmatpush1.msra.mxu0 0.0
      %1290 = vmatprep.subr.mxu0 0.0
      %1291 = vmatpush1.msra.mxu0 0.0
      %1292 = vmatprep.subr.mxu0 0.0
      %1293 = vmatpush1.msra.mxu0 0.0
      %1294 = vmatprep.subr.mxu0 0.0
      %1295 = vmatpush1.msra.mxu0 0.0
      %1296 = vmatprep.subr.mxu0 0.0
      %1297 = vmatpush1.msra.mxu0 0.0
      %1298 = vmatprep.subr.mxu0 0.0
      %1299 = vmatpush1.msra.mxu0 0.0
      %1300 = vmatprep.mubr.f32.mxu0 0.0
      %1301 = vmatmul.mubr.f32.gmra.mrb[0].mxu0 %v1231
      %v1302 = vpop.f32.mrb[0].mxu0
      %v1303 = vadd.f32 0.0, %v1302
      %v1304 = vpop.f32.mrb[0].mxu0
      %1305 = vmatprep.mubr.f32.mxu0 0.0
      %1306 = vmatmul.mubr.f32.gmra.mrb[0].mxu0 %v1234
      %v1307 = vpop.f32.mrb[0].mxu0
      %v1308 = vadd.f32 0.0, %v1307
      %v1309 = vpop.f32.mrb[0].mxu0
      %1310 = vdwg.mxu0
      %v1312 = vlaneseq
      %v1313 = vshrl.u32 %v1312, 7
      %v1314 = vsub.s32 0, %v1313
      %v1315 = vrot.slane %v1017, %v1314
      %v1317 = vadd.f32 %v1315, %v1303
      %v1318 = vadd.f32 %v1315, %v1308
      %1319 = vrot.lane.b32.xlu0 %v1005, 120
      %v1320 = vpop.permute.xlu0 %1319
      %1321 = vrot.lane.b32.xlu0 %v1010, 120
      %v1322 = vpop.permute.xlu0 %1321
      %1323 = vrot.lane.b32.xlu0 %v1005, 88
      %v1324 = vpop.permute.xlu0 %1323
      %1325 = vrot.lane.b32.xlu0 %v1010, 88
      %v1326 = vpop.permute.xlu0 %1325
      %v1327 = vsel %vm1024, %v1320, 0
      %v1329 = vsel %vm1024, %v1322, 0
      %v1331 = vsel %vm1024, %v1324, 0
      %v1333 = vsel %vm1024, %v1326, 0
      %1335 = vmatprep.subr.mxu0 0.0
      %1336 = vmatpush1.xpose.msra.mxu0 %v1331
      %1337 = vmatprep.subr.mxu0 0.0
      %1338 = vmatpush1.xpose.msra.mxu0 %v1333
      %1339 = vmatprep.subr.mxu0 0.0
      %1340 = vmatpush1.xpose.msra.mxu0 0.0
      %1341 = vmatprep.subr.mxu0 0.0
      %1342 = vmatpush1.xpose.msra.mxu0 0.0
      %1343 = vmatprep.subr.mxu0 0.0
      %1344 = vmatpush1.xpose.msra.mxu0 0.0
      %1345 = vmatprep.subr.mxu0 0.0
      %1346 = vmatpush1.xpose.msra.mxu0 0.0
      %1347 = vmatprep.subr.mxu0 0.0
      %1348 = vmatpush1.xpose.msra.mxu0 0.0
      %1349 = vmatprep.subr.mxu0 0.0
      %1350 = vmatpush1.xpose.msra.mxu0 0.0
      %1351 = vmatprep.subr.mxu0 0.0
      %1352 = vmatpush1.xpose.msra.mxu0 0.0
      %1353 = vmatprep.subr.mxu0 0.0
      %1354 = vmatpush1.xpose.msra.mxu0 0.0
      %1355 = vmatprep.subr.mxu0 0.0
      %1356 = vmatpush1.xpose.msra.mxu0 0.0
      %1357 = vmatprep.subr.mxu0 0.0
      %1358 = vmatpush1.xpose.msra.mxu0 0.0
      %1359 = vmatprep.subr.mxu0 0.0
      %1360 = vmatpush1.xpose.msra.mxu0 0.0
      %1361 = vmatprep.subr.mxu0 0.0
      %1362 = vmatpush1.xpose.msra.mxu0 0.0
      %1363 = vmatprep.subr.mxu0 0.0
      %1364 = vmatpush1.xpose.msra.mxu0 0.0
      %1365 = vmatprep.subr.mxu0 0.0
      %1366 = vmatpush1.xpose.msra.mxu0 0.0
      %1367 = vmatprep.subr.mxu0 0.0
      %1368 = vmatpush1.xpose.msra.mxu0 0.0
      %1369 = vmatprep.subr.mxu0 0.0
      %1370 = vmatpush1.xpose.msra.mxu0 0.0
      %1371 = vmatprep.subr.mxu0 0.0
      %1372 = vmatpush1.xpose.msra.mxu0 0.0
      %1373 = vmatprep.subr.mxu0 0.0
      %1374 = vmatpush1.xpose.msra.mxu0 0.0
      %1375 = vmatprep.subr.mxu0 0.0
      %1376 = vmatpush1.xpose.msra.mxu0 0.0
      %1377 = vmatprep.subr.mxu0 0.0
      %1378 = vmatpush1.xpose.msra.mxu0 0.0
      %1379 = vmatprep.subr.mxu0 0.0
      %1380 = vmatpush1.xpose.msra.mxu0 0.0
      %1381 = vmatprep.subr.mxu0 0.0
      %1382 = vmatpush1.xpose.msra.mxu0 0.0
      %1383 = vmatprep.subr.mxu0 0.0
      %1384 = vmatpush1.xpose.msra.mxu0 0.0
      %1385 = vmatprep.subr.mxu0 0.0
      %1386 = vmatpush1.xpose.msra.mxu0 0.0
      %1387 = vmatprep.subr.mxu0 0.0
      %1388 = vmatpush1.xpose.msra.mxu0 0.0
      %1389 = vmatprep.subr.mxu0 0.0
      %1390 = vmatpush1.xpose.msra.mxu0 0.0
      %1391 = vmatprep.subr.mxu0 0.0
      %1392 = vmatpush1.xpose.msra.mxu0 0.0
      %1393 = vmatprep.subr.mxu0 0.0
      %1394 = vmatpush1.xpose.msra.mxu0 0.0
      %1395 = vmatprep.subr.mxu0 0.0
      %1396 = vmatpush1.xpose.msra.mxu0 0.0
      %1397 = vmatprep.subr.mxu0 0.0
      %1398 = vmatpush1.xpose.msra.mxu0 0.0
      %1399 = vmatprep.mubr.f32.mxu0 0.0
      %1400 = vmatmul.mubr.f32.gmra.mrb[0].mxu0 %v1327
      %v1401 = vpop.f32.mrb[0].mxu0
      %v1402 = vadd.f32 0.0, %v1401
      %v1403 = vpop.f32.mrb[0].mxu0
      %1404 = vmatprep.mubr.f32.mxu0 0.0
      %1405 = vmatmul.mubr.f32.gmra.mrb[0].mxu0 %v1329
      %v1406 = vpop.f32.mrb[0].mxu0
      %v1407 = vadd.f32 0.0, %v1406
      %v1408 = vpop.f32.mrb[0].mxu0
      %1409 = vdwg.mxu0
      %v1410 = vmul.f32 %v1402, 0.35355338
      %v1411 = vmul.f32 %v1407, 0.35355338
      %v1412 = vadd.f32 %v1410, %v1114
      %v1413 = vadd.f32 %v1411, %v1114
      %v1414 = vsel %vm1118, %v1412, -inf
      %1415 = vmax.xlane.f32.xlu0 %v1414
      %v1416 = vpop.xlane.xlu0 %1415
      %v1417 = vsel %vm1122, %v1413, -inf
      %1418 = vmax.xlane.f32.xlu0 %v1417
      %v1419 = vpop.xlane.xlu0 %1418
      %v1420 = vsub.f32 %v1412, %v1416
      %v1421 = vsub.f32 %v1413, %v1419
      %v1422 = vmul.f32 %v1420, 1.442695
      %v1423 = vpow.pop %v1422
      %v1424 = vmul.f32 %v1421, 1.442695
      %v1425 = vpow.pop %v1424
      %v1426 = vsel %vm1118, %v1423, 0.0
      %1427 = vadd.xlane.f32.xlu0 %v1426
      %v1428 = vpop.xlane.xlu0 %1427
      %v1429 = vsel %vm1122, %v1425, 0.0
      %1430 = vadd.xlane.f32.xlu0 %v1429
      %v1431 = vpop.xlane.xlu0 %1430
      %v1432 = vrcp.pop %v1428
      %v1433 = vrcp.pop %v1431
      %v1434 = vmul.f32 %v1423, %v1432
      %v1435 = vmul.f32 %v1425, %v1433
      %1436 = vrot.lane.b32.xlu0 %v1005, 56
      %v1437 = vpop.permute.xlu0 %1436
      %1438 = vrot.lane.b32.xlu0 %v1010, 56
      %v1439 = vpop.permute.xlu0 %1438
      %v1442 = vsel %vm1118, %v1434, 0
      %v1445 = vsel %vm1118, %v1435, 0
      %v1447 = vsel %vm785, %v1439, 0
      %1449 = vmatprep.subr.mxu0 0.0
      %1450 = vmatpush1.msra.mxu0 %v1437
      %1451 = vmatprep.subr.mxu0 0.0
      %1452 = vmatpush1.msra.mxu0 %v1447
      %1453 = vmatprep.subr.mxu0 0.0
      %1454 = vmatpush1.msra.mxu0 0.0
      %1455 = vmatprep.subr.mxu0 0.0
      %1456 = vmatpush1.msra.mxu0 0.0
      %1457 = vmatprep.subr.mxu0 0.0
      %1458 = vmatpush1.msra.mxu0 0.0
      %1459 = vmatprep.subr.mxu0 0.0
      %1460 = vmatpush1.msra.mxu0 0.0
      %1461 = vmatprep.subr.mxu0 0.0
      %1462 = vmatpush1.msra.mxu0 0.0
      %1463 = vmatprep.subr.mxu0 0.0
      %1464 = vmatpush1.msra.mxu0 0.0
      %1465 = vmatprep.subr.mxu0 0.0
      %1466 = vmatpush1.msra.mxu0 0.0
      %1467 = vmatprep.subr.mxu0 0.0
      %1468 = vmatpush1.msra.mxu0 0.0
      %1469 = vmatprep.subr.mxu0 0.0
      %1470 = vmatpush1.msra.mxu0 0.0
      %1471 = vmatprep.subr.mxu0 0.0
      %1472 = vmatpush1.msra.mxu0 0.0
      %1473 = vmatprep.subr.mxu0 0.0
      %1474 = vmatpush1.msra.mxu0 0.0
      %1475 = vmatprep.subr.mxu0 0.0
      %1476 = vmatpush1.msra.mxu0 0.0
      %1477 = vmatprep.subr.mxu0 0.0
      %1478 = vmatpush1.msra.mxu0 0.0
      %1479 = vmatprep.subr.mxu0 0.0
      %1480 = vmatpush1.msra.mxu0 0.0
      %1481 = vmatprep.subr.mxu0 0.0
      %1482 = vmatpush1.msra.mxu0 0.0
      %1483 = vmatprep.subr.mxu0 0.0
      %1484 = vmatpush1.msra.mxu0 0.0
      %1485 = vmatprep.subr.mxu0 0.0
      %1486 = vmatpush1.msra.mxu0 0.0
      %1487 = vmatprep.subr.mxu0 0.0
      %1488 = vmatpush1.msra.mxu0 0.0
      %1489 = vmatprep.subr.mxu0 0.0
      %1490 = vmatpush1.msra.mxu0 0.0
      %1491 = vmatprep.subr.mxu0 0.0
      %1492 = vmatpush1.msra.mxu0 0.0
      %1493 = vmatprep.subr.mxu0 0.0
      %1494 = vmatpush1.msra.mxu0 0.0
      %1495 = vmatprep.subr.mxu0 0.0
      %1496 = vmatpush1.msra.mxu0 0.0
      %1497 = vmatprep.subr.mxu0 0.0
      %1498 = vmatpush1.msra.mxu0 0.0
      %1499 = vmatprep.subr.mxu0 0.0
      %1500 = vmatpush1.msra.mxu0 0.0
      %1501 = vmatprep.subr.mxu0 0.0
      %1502 = vmatpush1.msra.mxu0 0.0
      %1503 = vmatprep.subr.mxu0 0.0
      %1504 = vmatpush1.msra.mxu0 0.0
      %1505 = vmatprep.subr.mxu0 0.0
      %1506 = vmatpush1.msra.mxu0 0.0
      %1507 = vmatprep.subr.mxu0 0.0
      %1508 = vmatpush1.msra.mxu0 0.0
      %1509 = vmatprep.subr.mxu0 0.0
      %1510 = vmatpush1.msra.mxu0 0.0
      %1511 = vmatprep.subr.mxu0 0.0
      %1512 = vmatpush1.msra.mxu0 0.0
      %1513 = vmatprep.mubr.f32.mxu0 0.0
      %1514 = vmatmul.mubr.f32.gmra.mrb[0].mxu0 %v1442
      %v1515 = vpop.f32.mrb[0].mxu0
      %v1516 = vadd.f32 0.0, %v1515
      %v1517 = vpop.f32.mrb[0].mxu0
      %1518 = vmatprep.mubr.f32.mxu0 0.0
      %1519 = vmatmul.mubr.f32.gmra.mrb[0].mxu0 %v1445
      %v1520 = vpop.f32.mrb[0].mxu0
      %v1521 = vadd.f32 0.0, %v1520
      %v1522 = vpop.f32.mrb[0].mxu0
      %1523 = vdwg.mxu0
      %v1525 = vsel %vm1024, %v1516, 0
      %v1528 = vsel %vm1024, %v1521, 0
      %1530 = vmatprep.subr.mxu0 0.0
      %1531 = vmatpush1.msra.mxu0 %v1014
      %1532 = vmatprep.subr.mxu0 0.0
      %1533 = vmatpush1.msra.mxu0 0.0
      %1534 = vmatprep.subr.mxu0 0.0
      %1535 = vmatpush1.msra.mxu0 0.0
      %1536 = vmatprep.subr.mxu0 0.0
      %1537 = vmatpush1.msra.mxu0 0.0
      %1538 = vmatprep.subr.mxu0 0.0
      %1539 = vmatpush1.msra.mxu0 0.0
      %1540 = vmatprep.subr.mxu0 0.0
      %1541 = vmatpush1.msra.mxu0 0.0
      %1542 = vmatprep.subr.mxu0 0.0
      %1543 = vmatpush1.msra.mxu0 0.0
      %1544 = vmatprep.subr.mxu0 0.0
      %1545 = vmatpush1.msra.mxu0 0.0
      %1546 = vmatprep.subr.mxu0 0.0
      %1547 = vmatpush1.msra.mxu0 0.0
      %1548 = vmatprep.subr.mxu0 0.0
      %1549 = vmatpush1.msra.mxu0 0.0
      %1550 = vmatprep.subr.mxu0 0.0
      %1551 = vmatpush1.msra.mxu0 0.0
      %1552 = vmatprep.subr.mxu0 0.0
      %1553 = vmatpush1.msra.mxu0 0.0
      %1554 = vmatprep.subr.mxu0 0.0
      %1555 = vmatpush1.msra.mxu0 0.0
      %1556 = vmatprep.subr.mxu0 0.0
      %1557 = vmatpush1.msra.mxu0 0.0
      %1558 = vmatprep.subr.mxu0 0.0
      %1559 = vmatpush1.msra.mxu0 0.0
      %1560 = vmatprep.subr.mxu0 0.0
      %1561 = vmatpush1.msra.mxu0 0.0
      %1562 = vmatprep.subr.mxu0 0.0
      %1563 = vmatpush1.msra.mxu0 0.0
      %1564 = vmatprep.subr.mxu0 0.0
      %1565 = vmatpush1.msra.mxu0 0.0
      %1566 = vmatprep.subr.mxu0 0.0
      %1567 = vmatpush1.msra.mxu0 0.0
      %1568 = vmatprep.subr.mxu0 0.0
      %1569 = vmatpush1.msra.mxu0 0.0
      %1570 = vmatprep.subr.mxu0 0.0
      %1571 = vmatpush1.msra.mxu0 0.0
      %1572 = vmatprep.subr.mxu0 0.0
      %1573 = vmatpush1.msra.mxu0 0.0
      %1574 = vmatprep.subr.mxu0 0.0
      %1575 = vmatpush1.msra.mxu0 0.0
      %1576 = vmatprep.subr.mxu0 0.0
      %1577 = vmatpush1.msra.mxu0 0.0
      %1578 = vmatprep.subr.mxu0 0.0
      %1579 = vmatpush1.msra.mxu0 0.0
      %1580 = vmatprep.subr.mxu0 0.0
      %1581 = vmatpush1.msra.mxu0 0.0
      %1582 = vmatprep.subr.mxu0 0.0
      %1583 = vmatpush1.msra.mxu0 0.0
      %1584 = vmatprep.subr.mxu0 0.0
      %1585 = vmatpush1.msra.mxu0 0.0
      %1586 = vmatprep.subr.mxu0 0.0
      %1587 = vmatpush1.msra.mxu0 0.0
      %1588 = vmatprep.subr.mxu0 0.0
      %1589 = vmatpush1.msra.mxu0 0.0
      %1590 = vmatprep.subr.mxu0 0.0
      %1591 = vmatpush1.msra.mxu0 0.0
      %1592 = vmatprep.subr.mxu0 0.0
      %1593 = vmatpush1.msra.mxu0 0.0
      %1594 = vmatprep.mubr.f32.mxu0 0.0
      %1595 = vmatmul.mubr.f32.gmra.mrb[0].mxu0 %v1525
      %v1596 = vpop.f32.mrb[0].mxu0
      %v1597 = vadd.f32 0.0, %v1596
      %v1598 = vpop.f32.mrb[0].mxu0
      %1599 = vmatprep.mubr.f32.mxu0 0.0
      %1600 = vmatmul.mubr.f32.gmra.mrb[0].mxu0 %v1528
      %v1601 = vpop.f32.mrb[0].mxu0
      %v1602 = vadd.f32 0.0, %v1601
      %v1603 = vpop.f32.mrb[0].mxu0
      %1604 = vdwg.mxu0
      %v1605 = vadd.f32 %v1317, %v1597
      %v1606 = vadd.f32 %v1318, %v1602
      %1607 = vrot.lane.b32.xlu0 %v1005, 112
      %v1608 = vpop.permute.xlu0 %1607
      %1609 = vrot.lane.b32.xlu0 %v1010, 112
      %v1610 = vpop.permute.xlu0 %1609
      %1611 = vrot.lane.b32.xlu0 %v1005, 80
      %v1612 = vpop.permute.xlu0 %1611
      %1613 = vrot.lane.b32.xlu0 %v1010, 80
      %v1614 = vpop.permute.xlu0 %1613
      %v1615 = vsel %vm1024, %v1608, 0
      %v1617 = vsel %vm1024, %v1610, 0
      %v1619 = vsel %vm1024, %v1612, 0
      %v1621 = vsel %vm1024, %v1614, 0
      %1623 = vmatprep.subr.mxu0 0.0
      %1624 = vmatpush1.xpose.msra.mxu0 %v1619
      %1625 = vmatprep.subr.mxu0 0.0
      %1626 = vmatpush1.xpose.msra.mxu0 %v1621
      %1627 = vmatprep.subr.mxu0 0.0
      %1628 = vmatpush1.xpose.msra.mxu0 0.0
      %1629 = vmatprep.subr.mxu0 0.0
      %1630 = vmatpush1.xpose.msra.mxu0 0.0
      %1631 = vmatprep.subr.mxu0 0.0
      %1632 = vmatpush1.xpose.msra.mxu0 0.0
      %1633 = vmatprep.subr.mxu0 0.0
      %1634 = vmatpush1.xpose.msra.mxu0 0.0
      %1635 = vmatprep.subr.mxu0 0.0
      %1636 = vmatpush1.xpose.msra.mxu0 0.0
      %1637 = vmatprep.subr.mxu0 0.0
      %1638 = vmatpush1.xpose.msra.mxu0 0.0
      %1639 = vmatprep.subr.mxu0 0.0
      %1640 = vmatpush1.xpose.msra.mxu0 0.0
      %1641 = vmatprep.subr.mxu0 0.0
      %1642 = vmatpush1.xpose.msra.mxu0 0.0
      %1643 = vmatprep.subr.mxu0 0.0
      %1644 = vmatpush1.xpose.msra.mxu0 0.0
      %1645 = vmatprep.subr.mxu0 0.0
      %1646 = vmatpush1.xpose.msra.mxu0 0.0
      %1647 = vmatprep.subr.mxu0 0.0
      %1648 = vmatpush1.xpose.msra.mxu0 0.0
      %1649 = vmatprep.subr.mxu0 0.0
      %1650 = vmatpush1.xpose.msra.mxu0 0.0
      %1651 = vmatprep.subr.mxu0 0.0
      %1652 = vmatpush1.xpose.msra.mxu0 0.0
      %1653 = vmatprep.subr.mxu0 0.0
      %1654 = vmatpush1.xpose.msra.mxu0 0.0
      %1655 = vmatprep.subr.mxu0 0.0
      %1656 = vmatpush1.xpose.msra.mxu0 0.0
      %1657 = vmatprep.subr.mxu0 0.0
      %1658 = vmatpush1.xpose.msra.mxu0 0.0
      %1659 = vmatprep.subr.mxu0 0.0
      %1660 = vmatpush1.xpose.msra.mxu0 0.0
      %1661 = vmatprep.subr.mxu0 0.0
      %1662 = vmatpush1.xpose.msra.mxu0 0.0
      %1663 = vmatprep.subr.mxu0 0.0
      %1664 = vmatpush1.xpose.msra.mxu0 0.0
      %1665 = vmatprep.subr.mxu0 0.0
      %1666 = vmatpush1.xpose.msra.mxu0 0.0
      %1667 = vmatprep.subr.mxu0 0.0
      %1668 = vmatpush1.xpose.msra.mxu0 0.0
      %1669 = vmatprep.subr.mxu0 0.0
      %1670 = vmatpush1.xpose.msra.mxu0 0.0
      %1671 = vmatprep.subr.mxu0 0.0
      %1672 = vmatpush1.xpose.msra.mxu0 0.0
      %1673 = vmatprep.subr.mxu0 0.0
      %1674 = vmatpush1.xpose.msra.mxu0 0.0
      %1675 = vmatprep.subr.mxu0 0.0
      %1676 = vmatpush1.xpose.msra.mxu0 0.0
      %1677 = vmatprep.subr.mxu0 0.0
      %1678 = vmatpush1.xpose.msra.mxu0 0.0
      %1679 = vmatprep.subr.mxu0 0.0
      %1680 = vmatpush1.xpose.msra.mxu0 0.0
      %1681 = vmatprep.subr.mxu0 0.0
      %1682 = vmatpush1.xpose.msra.mxu0 0.0
      %1683 = vmatprep.subr.mxu0 0.0
      %1684 = vmatpush1.xpose.msra.mxu0 0.0
      %1685 = vmatprep.subr.mxu0 0.0
      %1686 = vmatpush1.xpose.msra.mxu0 0.0
      %1687 = vmatprep.mubr.f32.mxu0 0.0
      %1688 = vmatmul.mubr.f32.gmra.mrb[0].mxu0 %v1615
      %v1689 = vpop.f32.mrb[0].mxu0
      %v1690 = vadd.f32 0.0, %v1689
      %v1691 = vpop.f32.mrb[0].mxu0
      %1692 = vmatprep.mubr.f32.mxu0 0.0
      %1693 = vmatmul.mubr.f32.gmra.mrb[0].mxu0 %v1617
      %v1694 = vpop.f32.mrb[0].mxu0
      %v1695 = vadd.f32 0.0, %v1694
      %v1696 = vpop.f32.mrb[0].mxu0
      %1697 = vdwg.mxu0
      %v1698 = vmul.f32 %v1690, 0.35355338
      %v1699 = vmul.f32 %v1695, 0.35355338
      %v1700 = vadd.f32 %v1698, %v1114
      %v1701 = vadd.f32 %v1699, %v1114
      %v1702 = vsel %vm1118, %v1700, -inf
      %1703 = vmax.xlane.f32.xlu0 %v1702
      %v1704 = vpop.xlane.xlu0 %1703
      %v1705 = vsel %vm1122, %v1701, -inf
      %1706 = vmax.xlane.f32.xlu0 %v1705
      %v1707 = vpop.xlane.xlu0 %1706
      %v1708 = vsub.f32 %v1700, %v1704
      %v1709 = vsub.f32 %v1701, %v1707
      %v1710 = vmul.f32 %v1708, 1.442695
      %v1711 = vpow.pop %v1710
      %v1712 = vmul.f32 %v1709, 1.442695
      %v1713 = vpow.pop %v1712
      %v1714 = vsel %vm1118, %v1711, 0.0
      %1715 = vadd.xlane.f32.xlu0 %v1714
      %v1716 = vpop.xlane.xlu0 %1715
      %v1717 = vsel %vm1122, %v1713, 0.0
      %1718 = vadd.xlane.f32.xlu0 %v1717
      %v1719 = vpop.xlane.xlu0 %1718
      %v1720 = vrcp.pop %v1716
      %v1721 = vrcp.pop %v1719
      %v1722 = vmul.f32 %v1711, %v1720
      %v1723 = vmul.f32 %v1713, %v1721
      %1724 = vrot.lane.b32.xlu0 %v1005, 48
      %v1725 = vpop.permute.xlu0 %1724
      %1726 = vrot.lane.b32.xlu0 %v1010, 48
      %v1727 = vpop.permute.xlu0 %1726
      %v1730 = vsel %vm1118, %v1722, 0
      %v1733 = vsel %vm1118, %v1723, 0
      %v1735 = vsel %vm785, %v1727, 0
      %1737 = vmatprep.subr.mxu0 0.0
      %1738 = vmatpush1.msra.mxu0 %v1725
      %1739 = vmatprep.subr.mxu0 0.0
      %1740 = vmatpush1.msra.mxu0 %v1735
      %1741 = vmatprep.subr.mxu0 0.0
      %1742 = vmatpush1.msra.mxu0 0.0
      %1743 = vmatprep.subr.mxu0 0.0
      %1744 = vmatpush1.msra.mxu0 0.0
      %1745 = vmatprep.subr.mxu0 0.0
      %1746 = vmatpush1.msra.mxu0 0.0
      %1747 = vmatprep.subr.mxu0 0.0
      %1748 = vmatpush1.msra.mxu0 0.0
      %1749 = vmatprep.subr.mxu0 0.0
      %1750 = vmatpush1.msra.mxu0 0.0
      %1751 = vmatprep.subr.mxu0 0.0
      %1752 = vmatpush1.msra.mxu0 0.0
      %1753 = vmatprep.subr.mxu0 0.0
      %1754 = vmatpush1.msra.mxu0 0.0
      %1755 = vmatprep.subr.mxu0 0.0
      %1756 = vmatpush1.msra.mxu0 0.0
      %1757 = vmatprep.subr.mxu0 0.0
      %1758 = vmatpush1.msra.mxu0 0.0
      %1759 = vmatprep.subr.mxu0 0.0
      %1760 = vmatpush1.msra.mxu0 0.0
      %1761 = vmatprep.subr.mxu0 0.0
      %1762 = vmatpush1.msra.mxu0 0.0
      %1763 = vmatprep.subr.mxu0 0.0
      %1764 = vmatpush1.msra.mxu0 0.0
      %1765 = vmatprep.subr.mxu0 0.0
      %1766 = vmatpush1.msra.mxu0 0.0
      %1767 = vmatprep.subr.mxu0 0.0
      %1768 = vmatpush1.msra.mxu0 0.0
      %1769 = vmatprep.subr.mxu0 0.0
      %1770 = vmatpush1.msra.mxu0 0.0
      %1771 = vmatprep.subr.mxu0 0.0
      %1772 = vmatpush1.msra.mxu0 0.0
      %1773 = vmatprep.subr.mxu0 0.0
      %1774 = vmatpush1.msra.mxu0 0.0
      %1775 = vmatprep.subr.mxu0 0.0
      %1776 = vmatpush1.msra.mxu0 0.0
      %1777 = vmatprep.subr.mxu0 0.0
      %1778 = vmatpush1.msra.mxu0 0.0
      %1779 = vmatprep.subr.mxu0 0.0
      %1780 = vmatpush1.msra.mxu0 0.0
      %1781 = vmatprep.subr.mxu0 0.0
      %1782 = vmatpush1.msra.mxu0 0.0
      %1783 = vmatprep.subr.mxu0 0.0
      %1784 = vmatpush1.msra.mxu0 0.0
      %1785 = vmatprep.subr.mxu0 0.0
      %1786 = vmatpush1.msra.mxu0 0.0
      %1787 = vmatprep.subr.mxu0 0.0
      %1788 = vmatpush1.msra.mxu0 0.0
      %1789 = vmatprep.subr.mxu0 0.0
      %1790 = vmatpush1.msra.mxu0 0.0
      %1791 = vmatprep.subr.mxu0 0.0
      %1792 = vmatpush1.msra.mxu0 0.0
      %1793 = vmatprep.subr.mxu0 0.0
      %1794 = vmatpush1.msra.mxu0 0.0
      %1795 = vmatprep.subr.mxu0 0.0
      %1796 = vmatpush1.msra.mxu0 0.0
      %1797 = vmatprep.subr.mxu0 0.0
      %1798 = vmatpush1.msra.mxu0 0.0
      %1799 = vmatprep.subr.mxu0 0.0
      %1800 = vmatpush1.msra.mxu0 0.0
      %1801 = vmatprep.mubr.f32.mxu0 0.0
      %1802 = vmatmul.mubr.f32.gmra.mrb[0].mxu0 %v1730
      %v1803 = vpop.f32.mrb[0].mxu0
      %v1804 = vadd.f32 0.0, %v1803
      %v1805 = vpop.f32.mrb[0].mxu0
      %1806 = vmatprep.mubr.f32.mxu0 0.0
      %1807 = vmatmul.mubr.f32.gmra.mrb[0].mxu0 %v1733
      %v1808 = vpop.f32.mrb[0].mxu0
      %v1809 = vadd.f32 0.0, %v1808
      %v1810 = vpop.f32.mrb[0].mxu0
      %1811 = vdwg.mxu0
      %v1813 = vsel %vm1024, %v1804, 0
      %v1816 = vsel %vm1024, %v1809, 0
      %1818 = vmatprep.subr.mxu0 0.0
      %1819 = vmatpush1.msra.mxu0 %v1015
      %1820 = vmatprep.subr.mxu0 0.0
      %1821 = vmatpush1.msra.mxu0 0.0
      %1822 = vmatprep.subr.mxu0 0.0
      %1823 = vmatpush1.msra.mxu0 0.0
      %1824 = vmatprep.subr.mxu0 0.0
      %1825 = vmatpush1.msra.mxu0 0.0
      %1826 = vmatprep.subr.mxu0 0.0
      %1827 = vmatpush1.msra.mxu0 0.0
      %1828 = vmatprep.subr.mxu0 0.0
      %1829 = vmatpush1.msra.mxu0 0.0
      %1830 = vmatprep.subr.mxu0 0.0
      %1831 = vmatpush1.msra.mxu0 0.0
      %1832 = vmatprep.subr.mxu0 0.0
      %1833 = vmatpush1.msra.mxu0 0.0
      %1834 = vmatprep.subr.mxu0 0.0
      %1835 = vmatpush1.msra.mxu0 0.0
      %1836 = vmatprep.subr.mxu0 0.0
      %1837 = vmatpush1.msra.mxu0 0.0
      %1838 = vmatprep.subr.mxu0 0.0
      %1839 = vmatpush1.msra.mxu0 0.0
      %1840 = vmatprep.subr.mxu0 0.0
      %1841 = vmatpush1.msra.mxu0 0.0
      %1842 = vmatprep.subr.mxu0 0.0
      %1843 = vmatpush1.msra.mxu0 0.0
      %1844 = vmatprep.subr.mxu0 0.0
      %1845 = vmatpush1.msra.mxu0 0.0
      %1846 = vmatprep.subr.mxu0 0.0
      %1847 = vmatpush1.msra.mxu0 0.0
      %1848 = vmatprep.subr.mxu0 0.0
      %1849 = vmatpush1.msra.mxu0 0.0
      %1850 = vmatprep.subr.mxu0 0.0
      %1851 = vmatpush1.msra.mxu0 0.0
      %1852 = vmatprep.subr.mxu0 0.0
      %1853 = vmatpush1.msra.mxu0 0.0
      %1854 = vmatprep.subr.mxu0 0.0
      %1855 = vmatpush1.msra.mxu0 0.0
      %1856 = vmatprep.subr.mxu0 0.0
      %1857 = vmatpush1.msra.mxu0 0.0
      %1858 = vmatprep.subr.mxu0 0.0
      %1859 = vmatpush1.msra.mxu0 0.0
      %1860 = vmatprep.subr.mxu0 0.0
      %1861 = vmatpush1.msra.mxu0 0.0
      %1862 = vmatprep.subr.mxu0 0.0
      %1863 = vmatpush1.msra.mxu0 0.0
      %1864 = vmatprep.subr.mxu0 0.0
      %1865 = vmatpush1.msra.mxu0 0.0
      %1866 = vmatprep.subr.mxu0 0.0
      %1867 = vmatpush1.msra.mxu0 0.0
      %1868 = vmatprep.subr.mxu0 0.0
      %1869 = vmatpush1.msra.mxu0 0.0
      %1870 = vmatprep.subr.mxu0 0.0
      %1871 = vmatpush1.msra.mxu0 0.0
      %1872 = vmatprep.subr.mxu0 0.0
      %1873 = vmatpush1.msra.mxu0 0.0
      %1874 = vmatprep.subr.mxu0 0.0
      %1875 = vmatpush1.msra.mxu0 0.0
      %1876 = vmatprep.subr.mxu0 0.0
      %1877 = vmatpush1.msra.mxu0 0.0
      %1878 = vmatprep.subr.mxu0 0.0
      %1879 = vmatpush1.msra.mxu0 0.0
      %1880 = vmatprep.subr.mxu0 0.0
      %1881 = vmatpush1.msra.mxu0 0.0
      %1882 = vmatprep.mubr.f32.mxu0 0.0
      %1883 = vmatmul.mubr.f32.gmra.mrb[0].mxu0 %v1813
      %v1884 = vpop.f32.mrb[0].mxu0
      %v1885 = vadd.f32 0.0, %v1884
      %v1886 = vpop.f32.mrb[0].mxu0
      %1887 = vmatprep.mubr.f32.mxu0 0.0
      %1888 = vmatmul.mubr.f32.gmra.mrb[0].mxu0 %v1816
      %v1889 = vpop.f32.mrb[0].mxu0
      %v1890 = vadd.f32 0.0, %v1889
      %v1891 = vpop.f32.mrb[0].mxu0
      %1892 = vdwg.mxu0
      %v1893 = vadd.f32 %v1605, %v1885
      %v1894 = vadd.f32 %v1606, %v1890
      %1895 = vrot.lane.b32.xlu0 %v1005, 104
      %v1896 = vpop.permute.xlu0 %1895
      %1897 = vrot.lane.b32.xlu0 %v1010, 104
      %v1898 = vpop.permute.xlu0 %1897
      %1899 = vrot.lane.b32.xlu0 %v1005, 72
      %v1900 = vpop.permute.xlu0 %1899
      %1901 = vrot.lane.b32.xlu0 %v1010, 72
      %v1902 = vpop.permute.xlu0 %1901
      %v1903 = vsel %vm1024, %v1896, 0
      %v1905 = vsel %vm1024, %v1898, 0
      %v1907 = vsel %vm1024, %v1900, 0
      %v1909 = vsel %vm1024, %v1902, 0
      %1911 = vmatprep.subr.mxu0 0.0
      %1912 = vmatpush1.xpose.msra.mxu0 %v1907
      %1913 = vmatprep.subr.mxu0 0.0
      %1914 = vmatpush1.xpose.msra.mxu0 %v1909
      %1915 = vmatprep.subr.mxu0 0.0
      %1916 = vmatpush1.xpose.msra.mxu0 0.0
      %1917 = vmatprep.subr.mxu0 0.0
      %1918 = vmatpush1.xpose.msra.mxu0 0.0
      %1919 = vmatprep.subr.mxu0 0.0
      %1920 = vmatpush1.xpose.msra.mxu0 0.0
      %1921 = vmatprep.subr.mxu0 0.0
      %1922 = vmatpush1.xpose.msra.mxu0 0.0
      %1923 = vmatprep.subr.mxu0 0.0
      %1924 = vmatpush1.xpose.msra.mxu0 0.0
      %1925 = vmatprep.subr.mxu0 0.0
      %1926 = vmatpush1.xpose.msra.mxu0 0.0
      %1927 = vmatprep.subr.mxu0 0.0
      %1928 = vmatpush1.xpose.msra.mxu0 0.0
      %1929 = vmatprep.subr.mxu0 0.0
      %1930 = vmatpush1.xpose.msra.mxu0 0.0
      %1931 = vmatprep.subr.mxu0 0.0
      %1932 = vmatpush1.xpose.msra.mxu0 0.0
      %1933 = vmatprep.subr.mxu0 0.0
      %1934 = vmatpush1.xpose.msra.mxu0 0.0
      %1935 = vmatprep.subr.mxu0 0.0
      %1936 = vmatpush1.xpose.msra.mxu0 0.0
      %1937 = vmatprep.subr.mxu0 0.0
      %1938 = vmatpush1.xpose.msra.mxu0 0.0
      %1939 = vmatprep.subr.mxu0 0.0
      %1940 = vmatpush1.xpose.msra.mxu0 0.0
      %1941 = vmatprep.subr.mxu0 0.0
      %1942 = vmatpush1.xpose.msra.mxu0 0.0
      %1943 = vmatprep.subr.mxu0 0.0
      %1944 = vmatpush1.xpose.msra.mxu0 0.0
      %1945 = vmatprep.subr.mxu0 0.0
      %1946 = vmatpush1.xpose.msra.mxu0 0.0
      %1947 = vmatprep.subr.mxu0 0.0
      %1948 = vmatpush1.xpose.msra.mxu0 0.0
      %1949 = vmatprep.subr.mxu0 0.0
      %1950 = vmatpush1.xpose.msra.mxu0 0.0
      %1951 = vmatprep.subr.mxu0 0.0
      %1952 = vmatpush1.xpose.msra.mxu0 0.0
      %1953 = vmatprep.subr.mxu0 0.0
      %1954 = vmatpush1.xpose.msra.mxu0 0.0
      %1955 = vmatprep.subr.mxu0 0.0
      %1956 = vmatpush1.xpose.msra.mxu0 0.0
      %1957 = vmatprep.subr.mxu0 0.0
      %1958 = vmatpush1.xpose.msra.mxu0 0.0
      %1959 = vmatprep.subr.mxu0 0.0
      %1960 = vmatpush1.xpose.msra.mxu0 0.0
      %1961 = vmatprep.subr.mxu0 0.0
      %1962 = vmatpush1.xpose.msra.mxu0 0.0
      %1963 = vmatprep.subr.mxu0 0.0
      %1964 = vmatpush1.xpose.msra.mxu0 0.0
      %1965 = vmatprep.subr.mxu0 0.0
      %1966 = vmatpush1.xpose.msra.mxu0 0.0
      %1967 = vmatprep.subr.mxu0 0.0
      %1968 = vmatpush1.xpose.msra.mxu0 0.0
      %1969 = vmatprep.subr.mxu0 0.0
      %1970 = vmatpush1.xpose.msra.mxu0 0.0
      %1971 = vmatprep.subr.mxu0 0.0
      %1972 = vmatpush1.xpose.msra.mxu0 0.0
      %1973 = vmatprep.subr.mxu0 0.0
      %1974 = vmatpush1.xpose.msra.mxu0 0.0
      %1975 = vmatprep.mubr.f32.mxu0 0.0
      %1976 = vmatmul.mubr.f32.gmra.mrb[0].mxu0 %v1903
      %v1977 = vpop.f32.mrb[0].mxu0
      %v1978 = vadd.f32 0.0, %v1977
      %v1979 = vpop.f32.mrb[0].mxu0
      %1980 = vmatprep.mubr.f32.mxu0 0.0
      %1981 = vmatmul.mubr.f32.gmra.mrb[0].mxu0 %v1905
      %v1982 = vpop.f32.mrb[0].mxu0
      %v1983 = vadd.f32 0.0, %v1982
      %v1984 = vpop.f32.mrb[0].mxu0
      %1985 = vdwg.mxu0
      %v1986 = vmul.f32 %v1978, 0.35355338
      %v1987 = vmul.f32 %v1983, 0.35355338
      %v1988 = vadd.f32 %v1986, %v1114
      %v1989 = vadd.f32 %v1987, %v1114
      %v1990 = vsel %vm1118, %v1988, -inf
      %1991 = vmax.xlane.f32.xlu0 %v1990
      %v1992 = vpop.xlane.xlu0 %1991
      %v1993 = vsel %vm1122, %v1989, -inf
      %1994 = vmax.xlane.f32.xlu0 %v1993
      %v1995 = vpop.xlane.xlu0 %1994
      %v1996 = vsub.f32 %v1988, %v1992
      %v1997 = vsub.f32 %v1989, %v1995
      %v1998 = vmul.f32 %v1996, 1.442695
      %v1999 = vpow.pop %v1998
      %v2000 = vmul.f32 %v1997, 1.442695
      %v2001 = vpow.pop %v2000
      %v2002 = vsel %vm1118, %v1999, 0.0
      %2003 = vadd.xlane.f32.xlu0 %v2002
      %v2004 = vpop.xlane.xlu0 %2003
      %v2005 = vsel %vm1122, %v2001, 0.0
      %2006 = vadd.xlane.f32.xlu0 %v2005
      %v2007 = vpop.xlane.xlu0 %2006
      %v2008 = vrcp.pop %v2004
      %v2009 = vrcp.pop %v2007
      %v2010 = vmul.f32 %v1999, %v2008
      %v2011 = vmul.f32 %v2001, %v2009
      %2012 = vrot.lane.b32.xlu0 %v1005, 40
      %v2013 = vpop.permute.xlu0 %2012
      %2014 = vrot.lane.b32.xlu0 %v1010, 40
      %v2015 = vpop.permute.xlu0 %2014
      %v2018 = vsel %vm1118, %v2010, 0
      %v2021 = vsel %vm1118, %v2011, 0
      %v2023 = vsel %vm785, %v2015, 0
      %2025 = vmatprep.subr.mxu0 0.0
      %2026 = vmatpush1.msra.mxu0 %v2013
      %2027 = vmatprep.subr.mxu0 0.0
      %2028 = vmatpush1.msra.mxu0 %v2023
      %2029 = vmatprep.subr.mxu0 0.0
      %2030 = vmatpush1.msra.mxu0 0.0
      %2031 = vmatprep.subr.mxu0 0.0
      %2032 = vmatpush1.msra.mxu0 0.0
      %2033 = vmatprep.subr.mxu0 0.0
      %2034 = vmatpush1.msra.mxu0 0.0
      %2035 = vmatprep.subr.mxu0 0.0
      %2036 = vmatpush1.msra.mxu0 0.0
      %2037 = vmatprep.subr.mxu0 0.0
      %2038 = vmatpush1.msra.mxu0 0.0
      %2039 = vmatprep.subr.mxu0 0.0
      %2040 = vmatpush1.msra.mxu0 0.0
      %2041 = vmatprep.subr.mxu0 0.0
      %2042 = vmatpush1.msra.mxu0 0.0
      %2043 = vmatprep.subr.mxu0 0.0
      %2044 = vmatpush1.msra.mxu0 0.0
      %2045 = vmatprep.subr.mxu0 0.0
      %2046 = vmatpush1.msra.mxu0 0.0
      %2047 = vmatprep.subr.mxu0 0.0
      %2048 = vmatpush1.msra.mxu0 0.0
      %2049 = vmatprep.subr.mxu0 0.0
      %2050 = vmatpush1.msra.mxu0 0.0
      %2051 = vmatprep.subr.mxu0 0.0
      %2052 = vmatpush1.msra.mxu0 0.0
      %2053 = vmatprep.subr.mxu0 0.0
      %2054 = vmatpush1.msra.mxu0 0.0
      %2055 = vmatprep.subr.mxu0 0.0
      %2056 = vmatpush1.msra.mxu0 0.0
      %2057 = vmatprep.subr.mxu0 0.0
      %2058 = vmatpush1.msra.mxu0 0.0
      %2059 = vmatprep.subr.mxu0 0.0
      %2060 = vmatpush1.msra.mxu0 0.0
      %2061 = vmatprep.subr.mxu0 0.0
      %2062 = vmatpush1.msra.mxu0 0.0
      %2063 = vmatprep.subr.mxu0 0.0
      %2064 = vmatpush1.msra.mxu0 0.0
      %2065 = vmatprep.subr.mxu0 0.0
      %2066 = vmatpush1.msra.mxu0 0.0
      %2067 = vmatprep.subr.mxu0 0.0
      %2068 = vmatpush1.msra.mxu0 0.0
      %2069 = vmatprep.subr.mxu0 0.0
      %2070 = vmatpush1.msra.mxu0 0.0
      %2071 = vmatprep.subr.mxu0 0.0
      %2072 = vmatpush1.msra.mxu0 0.0
      %2073 = vmatprep.subr.mxu0 0.0
      %2074 = vmatpush1.msra.mxu0 0.0
      %2075 = vmatprep.subr.mxu0 0.0
      %2076 = vmatpush1.msra.mxu0 0.0
      %2077 = vmatprep.subr.mxu0 0.0
      %2078 = vmatpush1.msra.mxu0 0.0
      %2079 = vmatprep.subr.mxu0 0.0
      %2080 = vmatpush1.msra.mxu0 0.0
      %2081 = vmatprep.subr.mxu0 0.0
      %2082 = vmatpush1.msra.mxu0 0.0
      %2083 = vmatprep.subr.mxu0 0.0
      %2084 = vmatpush1.msra.mxu0 0.0
      %2085 = vmatprep.subr.mxu0 0.0
      %2086 = vmatpush1.msra.mxu0 0.0
      %2087 = vmatprep.subr.mxu0 0.0
      %2088 = vmatpush1.msra.mxu0 0.0
      %2089 = vmatprep.mubr.f32.mxu0 0.0
      %2090 = vmatmul.mubr.f32.gmra.mrb[0].mxu0 %v2018
      %v2091 = vpop.f32.mrb[0].mxu0
      %v2092 = vadd.f32 0.0, %v2091
      %v2093 = vpop.f32.mrb[0].mxu0
      %2094 = vmatprep.mubr.f32.mxu0 0.0
      %2095 = vmatmul.mubr.f32.gmra.mrb[0].mxu0 %v2021
      %v2096 = vpop.f32.mrb[0].mxu0
      %v2097 = vadd.f32 0.0, %v2096
      %v2098 = vpop.f32.mrb[0].mxu0
      %2099 = vdwg.mxu0
      %v2101 = vsel %vm1024, %v2092, 0
      %v2104 = vsel %vm1024, %v2097, 0
      %2106 = vmatprep.subr.mxu0 0.0
      %2107 = vmatpush1.msra.mxu0 %v1016
      %2108 = vmatprep.subr.mxu0 0.0
      %2109 = vmatpush1.msra.mxu0 0.0
      %2110 = vmatprep.subr.mxu0 0.0
      %2111 = vmatpush1.msra.mxu0 0.0
      %2112 = vmatprep.subr.mxu0 0.0
      %2113 = vmatpush1.msra.mxu0 0.0
      %2114 = vmatprep.subr.mxu0 0.0
      %2115 = vmatpush1.msra.mxu0 0.0
      %2116 = vmatprep.subr.mxu0 0.0
      %2117 = vmatpush1.msra.mxu0 0.0
      %2118 = vmatprep.subr.mxu0 0.0
      %2119 = vmatpush1.msra.mxu0 0.0
      %2120 = vmatprep.subr.mxu0 0.0
      %2121 = vmatpush1.msra.mxu0 0.0
      %2122 = vmatprep.subr.mxu0 0.0
      %2123 = vmatpush1.msra.mxu0 0.0
      %2124 = vmatprep.subr.mxu0 0.0
      %2125 = vmatpush1.msra.mxu0 0.0
      %2126 = vmatprep.subr.mxu0 0.0
      %2127 = vmatpush1.msra.mxu0 0.0
      %2128 = vmatprep.subr.mxu0 0.0
      %2129 = vmatpush1.msra.mxu0 0.0
      %2130 = vmatprep.subr.mxu0 0.0
      %2131 = vmatpush1.msra.mxu0 0.0
      %2132 = vmatprep.subr.mxu0 0.0
      %2133 = vmatpush1.msra.mxu0 0.0
      %2134 = vmatprep.subr.mxu0 0.0
      %2135 = vmatpush1.msra.mxu0 0.0
      %2136 = vmatprep.subr.mxu0 0.0
      %2137 = vmatpush1.msra.mxu0 0.0
      %2138 = vmatprep.subr.mxu0 0.0
      %2139 = vmatpush1.msra.mxu0 0.0
      %2140 = vmatprep.subr.mxu0 0.0
      %2141 = vmatpush1.msra.mxu0 0.0
      %2142 = vmatprep.subr.mxu0 0.0
      %2143 = vmatpush1.msra.mxu0 0.0
      %2144 = vmatprep.subr.mxu0 0.0
      %2145 = vmatpush1.msra.mxu0 0.0
      %2146 = vmatprep.subr.mxu0 0.0
      %2147 = vmatpush1.msra.mxu0 0.0
      %2148 = vmatprep.subr.mxu0 0.0
      %2149 = vmatpush1.msra.mxu0 0.0
      %2150 = vmatprep.subr.mxu0 0.0
      %2151 = vmatpush1.msra.mxu0 0.0
      %2152 = vmatprep.subr.mxu0 0.0
      %2153 = vmatpush1.msra.mxu0 0.0
      %2154 = vmatprep.subr.mxu0 0.0
      %2155 = vmatpush1.msra.mxu0 0.0
      %2156 = vmatprep.subr.mxu0 0.0
      %2157 = vmatpush1.msra.mxu0 0.0
      %2158 = vmatprep.subr.mxu0 0.0
      %2159 = vmatpush1.msra.mxu0 0.0
      %2160 = vmatprep.subr.mxu0 0.0
      %2161 = vmatpush1.msra.mxu0 0.0
      %2162 = vmatprep.subr.mxu0 0.0
      %2163 = vmatpush1.msra.mxu0 0.0
      %2164 = vmatprep.subr.mxu0 0.0
      %2165 = vmatpush1.msra.mxu0 0.0
      %2166 = vmatprep.subr.mxu0 0.0
      %2167 = vmatpush1.msra.mxu0 0.0
      %2168 = vmatprep.subr.mxu0 0.0
      %2169 = vmatpush1.msra.mxu0 0.0
      %2170 = vmatprep.mubr.f32.mxu0 0.0
      %2171 = vmatmul.mubr.f32.gmra.mrb[0].mxu0 %v2101
      %v2172 = vpop.f32.mrb[0].mxu0
      %v2173 = vadd.f32 0.0, %v2172
      %v2174 = vpop.f32.mrb[0].mxu0
      %2175 = vmatprep.mubr.f32.mxu0 0.0
      %2176 = vmatmul.mubr.f32.gmra.mrb[0].mxu0 %v2104
      %v2177 = vpop.f32.mrb[0].mxu0
      %v2178 = vadd.f32 0.0, %v2177
      %v2179 = vpop.f32.mrb[0].mxu0
      %2180 = vdwg.mxu0
      %v2181 = vadd.f32 %v1893, %v2173
      %v2182 = vadd.f32 %v1894, %v2178
      %v2183 = vld [vmem:[%s10] sm:$0x3]
      %v2184 = vadd.f32 %v918, %v2181
      %v2185 = vadd.f32 %v919, %v2182
      %v2186 = vsel %vm561, %v2184, 0.0
      %2187 = vadd.xlane.f32.xlu0 %v2186
      %v2188 = vpop.xlane.xlu0 %2187
      %v2189 = vsel %vm883, %v2185, 0.0
      %2190 = vadd.xlane.f32.xlu0 %v2189
      %v2191 = vpop.xlane.xlu0 %2190
      %v2192 = vmul.f32 %v2188, %v887
      %v2193 = vmul.f32 %v2191, %v887
      %v2194 = vsub.f32 %v2184, %v2192
      %v2195 = vsub.f32 %v2185, %v2193
      %v2196 = vmul.f32 %v2194, %v2194
      %v2197 = vmul.f32 %v2195, %v2195
      %v2198 = vsel %vm561, %v2196, 0.0
      %2199 = vadd.xlane.f32.xlu0 %v2198
      %v2200 = vpop.xlane.xlu0 %2199
      %v2201 = vsel %vm883, %v2197, 0.0
      %2202 = vadd.xlane.f32.xlu0 %v2201
      %v2203 = vpop.xlane.xlu0 %2202
      %v2204 = vmul.f32 %v2200, %v887
      %v2205 = vmul.f32 %v2203, %v887
      %v2206 = vadd.f32 %v2204, 1e-12
      %v2207 = vadd.f32 %v2205, 1e-12
      %v2208 = vrsqrt.pop %v2206
      %v2209 = vrsqrt.pop %v2207
      %v2210 = vmul.f32 %v2194, %v2208
      %v2211 = vmul.f32 %v2195, %v2209
      %v2212 = vlaneseq
      %v2213 = vshrl.u32 %v2212, 7
      %v2214 = vsub.s32 0, %v2213
      %v2215 = vrot.slane %v2183, %v2214
      %v2216 = vmul.f32 %v2210, %v2215
      %v2217 = vmul.f32 %v2211, %v2215
      %v2218 = vlaneseq
      %v2219 = vshrl.u32 %v2218, 7
      %v2220 = vsub.s32 1, %v2219
      %v2221 = vrot.slane %v2183, %v2220
      %v2222 = vadd.f32 %v2216, %v2221
      %v2223 = vadd.f32 %v2217, %v2221
      %v2224 = vld [vmem:[%s11] sm:$0xff]
      %v2225 = vld [vmem:[%s11 + $0x8] sm:$0xff]
      %v2226 = vld [vmem:[%s11 + $0x10] sm:$0xff]
      %v2227 = vld [vmem:[%s11 + $0x18] sm:$0xff]
      %v2228 = vld [vmem:[%s12] sm:$0x1]
      %v2230 = vlaneseq
      %v2231 = vshrl.u32 %v2230, 7
      %v2232 = vsub.s32 0, %v2231
      %v2233 = vrot.slane %v2228, %v2232
      %v2236 = vsel %vm561, %v2222, 0
      %v2239 = vsel %vm561, %v2223, 0
      %2241 = vmatprep.subr.mxu0 0.0
      %2242 = vmatpush1.msra.mxu0 %v2224
      %2243 = vmatprep.subr.mxu0 0.0
      %2244 = vmatpush1.msra.mxu0 %v2225
      %2245 = vmatprep.subr.mxu0 0.0
      %2246 = vmatpush1.msra.mxu0 %v2226
      %2247 = vmatprep.subr.mxu0 0.0
      %2248 = vmatpush1.msra.mxu0 %v2227
      %2249 = vmatprep.subr.mxu0 0.0
      %2250 = vmatpush1.msra.mxu0 0.0
      %2251 = vmatprep.subr.mxu0 0.0
      %2252 = vmatpush1.msra.mxu0 0.0
      %2253 = vmatprep.subr.mxu0 0.0
      %2254 = vmatpush1.msra.mxu0 0.0
      %2255 = vmatprep.subr.mxu0 0.0
      %2256 = vmatpush1.msra.mxu0 0.0
      %2257 = vmatprep.subr.mxu0 0.0
      %2258 = vmatpush1.msra.mxu0 0.0
      %2259 = vmatprep.subr.mxu0 0.0
      %2260 = vmatpush1.msra.mxu0 0.0
      %2261 = vmatprep.subr.mxu0 0.0
      %2262 = vmatpush1.msra.mxu0 0.0
      %2263 = vmatprep.subr.mxu0 0.0
      %2264 = vmatpush1.msra.mxu0 0.0
      %2265 = vmatprep.subr.mxu0 0.0
      %2266 = vmatpush1.msra.mxu0 0.0
      %2267 = vmatprep.subr.mxu0 0.0
      %2268 = vmatpush1.msra.mxu0 0.0
      %2269 = vmatprep.subr.mxu0 0.0
      %2270 = vmatpush1.msra.mxu0 0.0
      %2271 = vmatprep.subr.mxu0 0.0
      %2272 = vmatpush1.msra.mxu0 0.0
      %2273 = vmatprep.subr.mxu0 0.0
      %2274 = vmatpush1.msra.mxu0 0.0
      %2275 = vmatprep.subr.mxu0 0.0
      %2276 = vmatpush1.msra.mxu0 0.0
      %2277 = vmatprep.subr.mxu0 0.0
      %2278 = vmatpush1.msra.mxu0 0.0
      %2279 = vmatprep.subr.mxu0 0.0
      %2280 = vmatpush1.msra.mxu0 0.0
      %2281 = vmatprep.subr.mxu0 0.0
      %2282 = vmatpush1.msra.mxu0 0.0
      %2283 = vmatprep.subr.mxu0 0.0
      %2284 = vmatpush1.msra.mxu0 0.0
      %2285 = vmatprep.subr.mxu0 0.0
      %2286 = vmatpush1.msra.mxu0 0.0
      %2287 = vmatprep.subr.mxu0 0.0
      %2288 = vmatpush1.msra.mxu0 0.0
      %2289 = vmatprep.subr.mxu0 0.0
      %2290 = vmatpush1.msra.mxu0 0.0
      %2291 = vmatprep.subr.mxu0 0.0
      %2292 = vmatpush1.msra.mxu0 0.0
      %2293 = vmatprep.subr.mxu0 0.0
      %2294 = vmatpush1.msra.mxu0 0.0
      %2295 = vmatprep.subr.mxu0 0.0
      %2296 = vmatpush1.msra.mxu0 0.0
      %2297 = vmatprep.subr.mxu0 0.0
      %2298 = vmatpush1.msra.mxu0 0.0
      %2299 = vmatprep.subr.mxu0 0.0
      %2300 = vmatpush1.msra.mxu0 0.0
      %2301 = vmatprep.subr.mxu0 0.0
      %2302 = vmatpush1.msra.mxu0 0.0
      %2303 = vmatprep.subr.mxu0 0.0
      %2304 = vmatpush1.msra.mxu0 0.0
      %2305 = vmatprep.mubr.f32.mxu0 0.0
      %2306 = vmatmul.mubr.f32.gmra.mrb[0].mxu0 %v2236
      %v2307 = vpop.f32.mrb[0].mxu0
      %v2308 = vadd.f32 %v2233, %v2307
      %v2309 = vpop.f32.mrb[0].mxu0
      %2310 = vmatprep.mubr.f32.mxu0 0.0
      %2311 = vmatmul.mubr.f32.gmra.mrb[0].mxu0 %v2239
      %v2312 = vpop.f32.mrb[0].mxu0
      %v2313 = vadd.f32 %v2233, %v2312
      %v2314 = vpop.f32.mrb[0].mxu0
      %2315 = vdwg.mxu0
      %v2316 = vmul.f32 %v2308, 0.5
      %v2317 = vmul.f32 %v2313, 0.5
      %v2318 = vmul.f32 %v2308, 0.044715
      %v2319 = vmul.f32 %v2313, 0.044715
      %v2320 = vmul.f32 %v2318, %v2308
      %v2321 = vmul.f32 %v2319, %v2313
      %v2322 = vmul.f32 %v2320, %v2308
      %v2323 = vmul.f32 %v2321, %v2313
      %v2324 = vadd.f32 %v2308, %v2322
      %v2325 = vadd.f32 %v2313, %v2323
      %v2326 = vmul.f32 %v2324, 0.7978846
      %v2327 = vmul.f32 %v2325, 0.7978846
      %v2328 = vtanh.pop %v2326
      %v2329 = vtanh.pop %v2327
      %v2330 = vadd.f32 %v2328, 1.0
      %v2331 = vadd.f32 %v2329, 1.0
      %v2332 = vmul.f32 %v2316, %v2330
      %v2333 = vmul.f32 %v2317, %v2331
      %v2334 = vld [vmem:[%s13] sm:$0xff]
      %v2335 = vld [vmem:[%s13 + $0x8] sm:$0xff]
      %v2336 = vld [vmem:[%s13 + $0x10] sm:$0xff]
      %v2337 = vld [vmem:[%s13 + $0x18] sm:$0xff]
      %v2338 = vld [vmem:[%s13 + $0x20] sm:$0xff]
      %v2339 = vld [vmem:[%s13 + $0x28] sm:$0xff]
      %v2340 = vld [vmem:[%s13 + $0x30] sm:$0xff]
      %v2341 = vld [vmem:[%s13 + $0x38] sm:$0xff]
      %v2342 = vld [vmem:[%s14] sm:$0x1]
      %v2344 = vlaneseq
      %v2345 = vshrl.u32 %v2344, 7
      %v2346 = vsub.s32 0, %v2345
      %v2347 = vrot.slane %v2342, %v2346
      %vm2349 = vcmask 523264
      %v2351 = vsel %vm2349, %v2332, 0
      %v2354 = vsel %vm2349, %v2333, 0
      %2356 = vmatprep.subr.mxu0 0.0
      %2357 = vmatpush1.msra.mxu0 %v2334
      %2358 = vmatprep.subr.mxu0 0.0
      %2359 = vmatpush1.msra.mxu0 %v2335
      %2360 = vmatprep.subr.mxu0 0.0
      %2361 = vmatpush1.msra.mxu0 %v2336
      %2362 = vmatprep.subr.mxu0 0.0
      %2363 = vmatpush1.msra.mxu0 %v2337
      %2364 = vmatprep.subr.mxu0 0.0
      %2365 = vmatpush1.msra.mxu0 %v2338
      %2366 = vmatprep.subr.mxu0 0.0
      %2367 = vmatpush1.msra.mxu0 %v2339
      %2368 = vmatprep.subr.mxu0 0.0
      %2369 = vmatpush1.msra.mxu0 %v2340
      %2370 = vmatprep.subr.mxu0 0.0
      %2371 = vmatpush1.msra.mxu0 %v2341
      %2372 = vmatprep.subr.mxu0 0.0
      %2373 = vmatpush1.msra.mxu0 0.0
      %2374 = vmatprep.subr.mxu0 0.0
      %2375 = vmatpush1.msra.mxu0 0.0
      %2376 = vmatprep.subr.mxu0 0.0
      %2377 = vmatpush1.msra.mxu0 0.0
      %2378 = vmatprep.subr.mxu0 0.0
      %2379 = vmatpush1.msra.mxu0 0.0
      %2380 = vmatprep.subr.mxu0 0.0
      %2381 = vmatpush1.msra.mxu0 0.0
      %2382 = vmatprep.subr.mxu0 0.0
      %2383 = vmatpush1.msra.mxu0 0.0
      %2384 = vmatprep.subr.mxu0 0.0
      %2385 = vmatpush1.msra.mxu0 0.0
      %2386 = vmatprep.subr.mxu0 0.0
      %2387 = vmatpush1.msra.mxu0 0.0
      %2388 = vmatprep.subr.mxu0 0.0
      %2389 = vmatpush1.msra.mxu0 0.0
      %2390 = vmatprep.subr.mxu0 0.0
      %2391 = vmatpush1.msra.mxu0 0.0
      %2392 = vmatprep.subr.mxu0 0.0
      %2393 = vmatpush1.msra.mxu0 0.0
      %2394 = vmatprep.subr.mxu0 0.0
      %2395 = vmatpush1.msra.mxu0 0.0
      %2396 = vmatprep.subr.mxu0 0.0
      %2397 = vmatpush1.msra.mxu0 0.0
      %2398 = vmatprep.subr.mxu0 0.0
      %2399 = vmatpush1.msra.mxu0 0.0
      %2400 = vmatprep.subr.mxu0 0.0
      %2401 = vmatpush1.msra.mxu0 0.0
      %2402 = vmatprep.subr.mxu0 0.0
      %2403 = vmatpush1.msra.mxu0 0.0
      %2404 = vmatprep.subr.mxu0 0.0
      %2405 = vmatpush1.msra.mxu0 0.0
      %2406 = vmatprep.subr.mxu0 0.0
      %2407 = vmatpush1.msra.mxu0 0.0
      %2408 = vmatprep.subr.mxu0 0.0
      %2409 = vmatpush1.msra.mxu0 0.0
      %2410 = vmatprep.subr.mxu0 0.0
      %2411 = vmatpush1.msra.mxu0 0.0
      %2412 = vmatprep.subr.mxu0 0.0
      %2413 = vmatpush1.msra.mxu0 0.0
      %2414 = vmatprep.subr.mxu0 0.0
      %2415 = vmatpush1.msra.mxu0 0.0
      %2416 = vmatprep.subr.mxu0 0.0
      %2417 = vmatpush1.msra.mxu0 0.0
      %2418 = vmatprep.subr.mxu0 0.0
      %2419 = vmatpush1.msra.mxu0 0.0
      %2420 = vmatprep.mubr.f32.mxu0 0.0
      %2421 = vmatmul.mubr.f32.gmra.mrb[0].mxu0 %v2351
      %v2422 = vpop.f32.mrb[0].mxu0
      %v2423 = vadd.f32 %v2347, %v2422
      %v2424 = vpop.f32.mrb[0].mxu0
      %2425 = vmatprep.mubr.f32.mxu0 0.0
      %2426 = vmatmul.mubr.f32.gmra.mrb[0].mxu0 %v2354
      %v2427 = vpop.f32.mrb[0].mxu0
      %v2428 = vadd.f32 %v2347, %v2427
      %v2429 = vpop.f32.mrb[0].mxu0
      %2430 = vdwg.mxu0
      %v2431 = vld [vmem:[%s15] sm:$0x3]
      %v2432 = vadd.f32 %v2222, %v2423
      %v2433 = vadd.f32 %v2223, %v2428
      %v2434 = vsel %vm561, %v2432, 0.0
      %2435 = vadd.xlane.f32.xlu0 %v2434
      %v2436 = vpop.xlane.xlu0 %2435
      %v2437 = vsel %vm883, %v2433, 0.0
      %2438 = vadd.xlane.f32.xlu0 %v2437
      %v2439 = vpop.xlane.xlu0 %2438
      %v2440 = vmul.f32 %v2436, %v887
      %v2441 = vmul.f32 %v2439, %v887
      %v2442 = vsub.f32 %v2432, %v2440
      %v2443 = vsub.f32 %v2433, %v2441
      %v2444 = vmul.f32 %v2442, %v2442
      %v2445 = vmul.f32 %v2443, %v2443
      %v2446 = vsel %vm561, %v2444, 0.0
      %2447 = vadd.xlane.f32.xlu0 %v2446
      %v2448 = vpop.xlane.xlu0 %2447
      %v2449 = vsel %vm883, %v2445, 0.0
      %2450 = vadd.xlane.f32.xlu0 %v2449
      %v2451 = vpop.xlane.xlu0 %2450
      %v2452 = vmul.f32 %v2448, %v887
      %v2453 = vmul.f32 %v2451, %v887
      %v2454 = vadd.f32 %v2452, 1e-12
      %v2455 = vadd.f32 %v2453, 1e-12
      %v2456 = vrsqrt.pop %v2454
      %v2457 = vrsqrt.pop %v2455
      %v2458 = vmul.f32 %v2442, %v2456
      %v2459 = vmul.f32 %v2443, %v2457
      %v2460 = vlaneseq
      %v2461 = vshrl.u32 %v2460, 7
      %v2462 = vsub.s32 0, %v2461
      %v2463 = vrot.slane %v2431, %v2462
      %v2464 = vmul.f32 %v2458, %v2463
      %v2465 = vmul.f32 %v2459, %v2463
      %v2466 = vlaneseq
      %v2467 = vshrl.u32 %v2466, 7
      %v2468 = vsub.s32 1, %v2467
      %v2469 = vrot.slane %v2431, %v2468
      %v2470 = vadd.f32 %v2464, %v2469
      %v2471 = vadd.f32 %v2465, %v2469
      %s2472 = scalar_lea.vmem %s6, 32
      %v2473 = vld [vmem:[%s2472] sm:$0xff]
      %v2474 = vld [vmem:[%s2472 + $0x8] sm:$0xff]
      %v2475 = vld [vmem:[%s2472 + $0x10] sm:$0xff]
      %v2476 = vld [vmem:[%s2472 + $0x18] sm:$0xff]
      %s2477 = scalar_lea.vmem %s7, 1
      %v2478 = vld [vmem:[%s2477] sm:$0x1]
      %v2480 = vlaneseq
      %v2481 = vshrl.u32 %v2480, 7
      %v2482 = vsub.s32 0, %v2481
      %v2483 = vrot.slane %v2478, %v2482
      %v2486 = vsel %vm561, %v2470, 0
      %v2489 = vsel %vm561, %v2471, 0
      %2491 = vmatprep.subr.mxu0 0.0
      %2492 = vmatpush1.msra.mxu0 %v2473
      %2493 = vmatprep.subr.mxu0 0.0
      %2494 = vmatpush1.msra.mxu0 %v2474
      %2495 = vmatprep.subr.mxu0 0.0
      %2496 = vmatpush1.msra.mxu0 %v2475
      %2497 = vmatprep.subr.mxu0 0.0
      %2498 = vmatpush1.msra.mxu0 %v2476
      %2499 = vmatprep.subr.mxu0 0.0
      %2500 = vmatpush1.msra.mxu0 0.0
      %2501 = vmatprep.subr.mxu0 0.0
      %2502 = vmatpush1.msra.mxu0 0.0
      %2503 = vmatprep.subr.mxu0 0.0
      %2504 = vmatpush1.msra.mxu0 0.0
      %2505 = vmatprep.subr.mxu0 0.0
      %2506 = vmatpush1.msra.mxu0 0.0
      %2507 = vmatprep.subr.mxu0 0.0
      %2508 = vmatpush1.msra.mxu0 0.0
      %2509 = vmatprep.subr.mxu0 0.0
      %2510 = vmatpush1.msra.mxu0 0.0
      %2511 = vmatprep.subr.mxu0 0.0
      %2512 = vmatpush1.msra.mxu0 0.0
      %2513 = vmatprep.subr.mxu0 0.0
      %2514 = vmatpush1.msra.mxu0 0.0
      %2515 = vmatprep.subr.mxu0 0.0
      %2516 = vmatpush1.msra.mxu0 0.0
      %2517 = vmatprep.subr.mxu0 0.0
      %2518 = vmatpush1.msra.mxu0 0.0
      %2519 = vmatprep.subr.mxu0 0.0
      %2520 = vmatpush1.msra.mxu0 0.0
      %2521 = vmatprep.subr.mxu0 0.0
      %2522 = vmatpush1.msra.mxu0 0.0
      %2523 = vmatprep.subr.mxu0 0.0
      %2524 = vmatpush1.msra.mxu0 0.0
      %2525 = vmatprep.subr.mxu0 0.0
      %2526 = vmatpush1.msra.mxu0 0.0
      %2527 = vmatprep.subr.mxu0 0.0
      %2528 = vmatpush1.msra.mxu0 0.0
      %2529 = vmatprep.subr.mxu0 0.0
      %2530 = vmatpush1.msra.mxu0 0.0
      %2531 = vmatprep.subr.mxu0 0.0
      %2532 = vmatpush1.msra.mxu0 0.0
      %2533 = vmatprep.subr.mxu0 0.0
      %2534 = vmatpush1.msra.mxu0 0.0
      %2535 = vmatprep.subr.mxu0 0.0
      %2536 = vmatpush1.msra.mxu0 0.0
      %2537 = vmatprep.subr.mxu0 0.0
      %2538 = vmatpush1.msra.mxu0 0.0
      %2539 = vmatprep.subr.mxu0 0.0
      %2540 = vmatpush1.msra.mxu0 0.0
      %2541 = vmatprep.subr.mxu0 0.0
      %2542 = vmatpush1.msra.mxu0 0.0
      %2543 = vmatprep.subr.mxu0 0.0
      %2544 = vmatpush1.msra.mxu0 0.0
      %2545 = vmatprep.subr.mxu0 0.0
      %2546 = vmatpush1.msra.mxu0 0.0
      %2547 = vmatprep.subr.mxu0 0.0
      %2548 = vmatpush1.msra.mxu0 0.0
      %2549 = vmatprep.subr.mxu0 0.0
      %2550 = vmatpush1.msra.mxu0 0.0
      %2551 = vmatprep.subr.mxu0 0.0
      %2552 = vmatpush1.msra.mxu0 0.0
      %2553 = vmatprep.subr.mxu0 0.0
      %2554 = vmatpush1.msra.mxu0 0.0
      %2555 = vmatprep.mubr.f32.mxu0 0.0
      %2556 = vmatmul.mubr.f32.gmra.mrb[0].mxu0 %v2486
      %v2557 = vpop.f32.mrb[0].mxu0
      %v2558 = vadd.f32 %v2483, %v2557
      %v2559 = vpop.f32.mrb[0].mxu0
      %2560 = vmatprep.mubr.f32.mxu0 0.0
      %2561 = vmatmul.mubr.f32.gmra.mrb[0].mxu0 %v2489
      %v2562 = vpop.f32.mrb[0].mxu0
      %v2563 = vadd.f32 %v2483, %v2562
      %v2564 = vpop.f32.mrb[0].mxu0
      %2565 = vdwg.mxu0
      %s2566 = scalar_lea.vmem %s8, 32
      %v2567 = vld [vmem:[%s2566] sm:$0xff]
      %v2568 = vld [vmem:[%s2566 + $0x8] sm:$0xff]
      %v2569 = vld [vmem:[%s2566 + $0x10] sm:$0xff]
      %v2570 = vld [vmem:[%s2566 + $0x18] sm:$0xff]
      %s2571 = scalar_lea.vmem %s9, 1
      %v2572 = vld [vmem:[%s2571] sm:$0x1]
      %2575 = vrot.lane.b32.xlu0 %v2558, 96
      %v2576 = vpop.permute.xlu0 %2575
      %2577 = vrot.lane.b32.xlu0 %v2563, 96
      %v2578 = vpop.permute.xlu0 %2577
      %v2579 = vsel %vm1024, %v2558, 0
      %v2581 = vsel %vm1024, %v2563, 0
      %v2583 = vsel %vm1024, %v2576, 0
      %v2585 = vsel %vm1024, %v2578, 0
      %2587 = vmatprep.subr.mxu0 0.0
      %2588 = vmatpush1.xpose.msra.mxu0 %v2583
      %2589 = vmatprep.subr.mxu0 0.0
      %2590 = vmatpush1.xpose.msra.mxu0 %v2585
      %2591 = vmatprep.subr.mxu0 0.0
      %2592 = vmatpush1.xpose.msra.mxu0 0.0
      %2593 = vmatprep.subr.mxu0 0.0
      %2594 = vmatpush1.xpose.msra.mxu0 0.0
      %2595 = vmatprep.subr.mxu0 0.0
      %2596 = vmatpush1.xpose.msra.mxu0 0.0
      %2597 = vmatprep.subr.mxu0 0.0
      %2598 = vmatpush1.xpose.msra.mxu0 0.0
      %2599 = vmatprep.subr.mxu0 0.0
      %2600 = vmatpush1.xpose.msra.mxu0 0.0
      %2601 = vmatprep.subr.mxu0 0.0
      %2602 = vmatpush1.xpose.msra.mxu0 0.0
      %2603 = vmatprep.subr.mxu0 0.0
      %2604 = vmatpush1.xpose.msra.mxu0 0.0
      %2605 = vmatprep.subr.mxu0 0.0
      %2606 = vmatpush1.xpose.msra.mxu0 0.0
      %2607 = vmatprep.subr.mxu0 0.0
      %2608 = vmatpush1.xpose.msra.mxu0 0.0
      %2609 = vmatprep.subr.mxu0 0.0
      %2610 = vmatpush1.xpose.msra.mxu0 0.0
      %2611 = vmatprep.subr.mxu0 0.0
      %2612 = vmatpush1.xpose.msra.mxu0 0.0
      %2613 = vmatprep.subr.mxu0 0.0
      %2614 = vmatpush1.xpose.msra.mxu0 0.0
      %2615 = vmatprep.subr.mxu0 0.0
      %2616 = vmatpush1.xpose.msra.mxu0 0.0
      %2617 = vmatprep.subr.mxu0 0.0
      %2618 = vmatpush1.xpose.msra.mxu0 0.0
      %2619 = vmatprep.subr.mxu0 0.0
      %2620 = vmatpush1.xpose.msra.mxu0 0.0
      %2621 = vmatprep.subr.mxu0 0.0
      %2622 = vmatpush1.xpose.msra.mxu0 0.0
      %2623 = vmatprep.subr.mxu0 0.0
      %2624 = vmatpush1.xpose.msra.mxu0 0.0
      %2625 = vmatprep.subr.mxu0 0.0
      %2626 = vmatpush1.xpose.msra.mxu0 0.0
      %2627 = vmatprep.subr.mxu0 0.0
      %2628 = vmatpush1.xpose.msra.mxu0 0.0
      %2629 = vmatprep.subr.mxu0 0.0
      %2630 = vmatpush1.xpose.msra.mxu0 0.0
      %2631 = vmatprep.subr.mxu0 0.0
      %2632 = vmatpush1.xpose.msra.mxu0 0.0
      %2633 = vmatprep.subr.mxu0 0.0
      %2634 = vmatpush1.xpose.msra.mxu0 0.0
      %2635 = vmatprep.subr.mxu0 0.0
      %2636 = vmatpush1.xpose.msra.mxu0 0.0
      %2637 = vmatprep.subr.mxu0 0.0
      %2638 = vmatpush1.xpose.msra.mxu0 0.0
      %2639 = vmatprep.subr.mxu0 0.0
      %2640 = vmatpush1.xpose.msra.mxu0 0.0
      %2641 = vmatprep.subr.mxu0 0.0
      %2642 = vmatpush1.xpose.msra.mxu0 0.0
      %2643 = vmatprep.subr.mxu0 0.0
      %2644 = vmatpush1.xpose.msra.mxu0 0.0
      %2645 = vmatprep.subr.mxu0 0.0
      %2646 = vmatpush1.xpose.msra.mxu0 0.0
      %2647 = vmatprep.subr.mxu0 0.0
      %2648 = vmatpush1.xpose.msra.mxu0 0.0
      %2649 = vmatprep.subr.mxu0 0.0
      %2650 = vmatpush1.xpose.msra.mxu0 0.0
      %2651 = vmatprep.mubr.f32.mxu0 0.0
      %2652 = vmatmul.mubr.f32.gmra.mrb[0].mxu0 %v2579
      %v2653 = vpop.f32.mrb[0].mxu0
      %v2654 = vadd.f32 0.0, %v2653
      %v2655 = vpop.f32.mrb[0].mxu0
      %2656 = vmatprep.mubr.f32.mxu0 0.0
      %2657 = vmatmul.mubr.f32.gmra.mrb[0].mxu0 %v2581
      %v2658 = vpop.f32.mrb[0].mxu0
      %v2659 = vadd.f32 0.0, %v2658
      %v2660 = vpop.f32.mrb[0].mxu0
      %2661 = vdwg.mxu0
      %v2662 = vmul.f32 %v2654, 0.35355338
      %v2663 = vmul.f32 %v2659, 0.35355338
      %v2664 = vadd.f32 %v2662, %v1114
      %v2665 = vadd.f32 %v2663, %v1114
      %v2666 = vsel %vm1118, %v2664, -inf
      %2667 = vmax.xlane.f32.xlu0 %v2666
      %v2668 = vpop.xlane.xlu0 %2667
      %v2669 = vsel %vm1122, %v2665, -inf
      %2670 = vmax.xlane.f32.xlu0 %v2669
      %v2671 = vpop.xlane.xlu0 %2670
      %v2672 = vsub.f32 %v2664, %v2668
      %v2673 = vsub.f32 %v2665, %v2671
      %v2674 = vmul.f32 %v2672, 1.442695
      %v2675 = vpow.pop %v2674
      %v2676 = vmul.f32 %v2673, 1.442695
      %v2677 = vpow.pop %v2676
      %v2678 = vsel %vm1118, %v2675, 0.0
      %2679 = vadd.xlane.f32.xlu0 %v2678
      %v2680 = vpop.xlane.xlu0 %2679
      %v2681 = vsel %vm1122, %v2677, 0.0
      %2682 = vadd.xlane.f32.xlu0 %v2681
      %v2683 = vpop.xlane.xlu0 %2682
      %v2684 = vrcp.pop %v2680
      %v2685 = vrcp.pop %v2683
      %v2686 = vmul.f32 %v2675, %v2684
      %v2687 = vmul.f32 %v2677, %v2685
      %2688 = vrot.lane.b32.xlu0 %v2558, 64
      %v2689 = vpop.permute.xlu0 %2688
      %2690 = vrot.lane.b32.xlu0 %v2563, 64
      %v2691 = vpop.permute.xlu0 %2690
      %v2694 = vsel %vm1118, %v2686, 0
      %v2697 = vsel %vm1118, %v2687, 0
      %v2699 = vsel %vm785, %v2691, 0
      %2701 = vmatprep.subr.mxu0 0.0
      %2702 = vmatpush1.msra.mxu0 %v2689
      %2703 = vmatprep.subr.mxu0 0.0
      %2704 = vmatpush1.msra.mxu0 %v2699
      %2705 = vmatprep.subr.mxu0 0.0
      %2706 = vmatpush1.msra.mxu0 0.0
      %2707 = vmatprep.subr.mxu0 0.0
      %2708 = vmatpush1.msra.mxu0 0.0
      %2709 = vmatprep.subr.mxu0 0.0
      %2710 = vmatpush1.msra.mxu0 0.0
      %2711 = vmatprep.subr.mxu0 0.0
      %2712 = vmatpush1.msra.mxu0 0.0
      %2713 = vmatprep.subr.mxu0 0.0
      %2714 = vmatpush1.msra.mxu0 0.0
      %2715 = vmatprep.subr.mxu0 0.0
      %2716 = vmatpush1.msra.mxu0 0.0
      %2717 = vmatprep.subr.mxu0 0.0
      %2718 = vmatpush1.msra.mxu0 0.0
      %2719 = vmatprep.subr.mxu0 0.0
      %2720 = vmatpush1.msra.mxu0 0.0
      %2721 = vmatprep.subr.mxu0 0.0
      %2722 = vmatpush1.msra.mxu0 0.0
      %2723 = vmatprep.subr.mxu0 0.0
      %2724 = vmatpush1.msra.mxu0 0.0
      %2725 = vmatprep.subr.mxu0 0.0
      %2726 = vmatpush1.msra.mxu0 0.0
      %2727 = vmatprep.subr.mxu0 0.0
      %2728 = vmatpush1.msra.mxu0 0.0
      %2729 = vmatprep.subr.mxu0 0.0
      %2730 = vmatpush1.msra.mxu0 0.0
      %2731 = vmatprep.subr.mxu0 0.0
      %2732 = vmatpush1.msra.mxu0 0.0
      %2733 = vmatprep.subr.mxu0 0.0
      %2734 = vmatpush1.msra.mxu0 0.0
      %2735 = vmatprep.subr.mxu0 0.0
      %2736 = vmatpush1.msra.mxu0 0.0
      %2737 = vmatprep.subr.mxu0 0.0
      %2738 = vmatpush1.msra.mxu0 0.0
      %2739 = vmatprep.subr.mxu0 0.0
      %2740 = vmatpush1.msra.mxu0 0.0
      %2741 = vmatprep.subr.mxu0 0.0
      %2742 = vmatpush1.msra.mxu0 0.0
      %2743 = vmatprep.subr.mxu0 0.0
      %2744 = vmatpush1.msra.mxu0 0.0
      %2745 = vmatprep.subr.mxu0 0.0
      %2746 = vmatpush1.msra.mxu0 0.0
      %2747 = vmatprep.subr.mxu0 0.0
      %2748 = vmatpush1.msra.mxu0 0.0
      %2749 = vmatprep.subr.mxu0 0.0
      %2750 = vmatpush1.msra.mxu0 0.0
      %2751 = vmatprep.subr.mxu0 0.0
      %2752 = vmatpush1.msra.mxu0 0.0
      %2753 = vmatprep.subr.mxu0 0.0
      %2754 = vmatpush1.msra.mxu0 0.0
      %2755 = vmatprep.subr.mxu0 0.0
      %2756 = vmatpush1.msra.mxu0 0.0
      %2757 = vmatprep.subr.mxu0 0.0
      %2758 = vmatpush1.msra.mxu0 0.0
      %2759 = vmatprep.subr.mxu0 0.0
      %2760 = vmatpush1.msra.mxu0 0.0
      %2761 = vmatprep.subr.mxu0 0.0
      %2762 = vmatpush1.msra.mxu0 0.0
      %2763 = vmatprep.subr.mxu0 0.0
      %2764 = vmatpush1.msra.mxu0 0.0
      %2765 = vmatprep.mubr.f32.mxu0 0.0
      %2766 = vmatmul.mubr.f32.gmra.mrb[0].mxu0 %v2694
      %v2767 = vpop.f32.mrb[0].mxu0
      %v2768 = vadd.f32 0.0, %v2767
      %v2769 = vpop.f32.mrb[0].mxu0
      %2770 = vmatprep.mubr.f32.mxu0 0.0
      %2771 = vmatmul.mubr.f32.gmra.mrb[0].mxu0 %v2697
      %v2772 = vpop.f32.mrb[0].mxu0
      %v2773 = vadd.f32 0.0, %v2772
      %v2774 = vpop.f32.mrb[0].mxu0
      %2775 = vdwg.mxu0
      %v2777 = vsel %vm1024, %v2768, 0
      %v2780 = vsel %vm1024, %v2773, 0
      %2782 = vmatprep.subr.mxu0 0.0
      %2783 = vmatpush1.msra.mxu0 %v2567
      %2784 = vmatprep.subr.mxu0 0.0
      %2785 = vmatpush1.msra.mxu0 0.0
      %2786 = vmatprep.subr.mxu0 0.0
      %2787 = vmatpush1.msra.mxu0 0.0
      %2788 = vmatprep.subr.mxu0 0.0
      %2789 = vmatpush1.msra.mxu0 0.0
      %2790 = vmatprep.subr.mxu0 0.0
      %2791 = vmatpush1.msra.mxu0 0.0
      %2792 = vmatprep.subr.mxu0 0.0
      %2793 = vmatpush1.msra.mxu0 0.0
      %2794 = vmatprep.subr.mxu0 0.0
      %2795 = vmatpush1.msra.mxu0 0.0
      %2796 = vmatprep.subr.mxu0 0.0
      %2797 = vmatpush1.msra.mxu0 0.0
      %2798 = vmatprep.subr.mxu0 0.0
      %2799 = vmatpush1.msra.mxu0 0.0
      %2800 = vmatprep.subr.mxu0 0.0
      %2801 = vmatpush1.msra.mxu0 0.0
      %2802 = vmatprep.subr.mxu0 0.0
      %2803 = vmatpush1.msra.mxu0 0.0
      %2804 = vmatprep.subr.mxu0 0.0
      %2805 = vmatpush1.msra.mxu0 0.0
      %2806 = vmatprep.subr.mxu0 0.0
      %2807 = vmatpush1.msra.mxu0 0.0
      %2808 = vmatprep.subr.mxu0 0.0
      %2809 = vmatpush1.msra.mxu0 0.0
      %2810 = vmatprep.subr.mxu0 0.0
      %2811 = vmatpush1.msra.mxu0 0.0
      %2812 = vmatprep.subr.mxu0 0.0
      %2813 = vmatpush1.msra.mxu0 0.0
      %2814 = vmatprep.subr.mxu0 0.0
      %2815 = vmatpush1.msra.mxu0 0.0
      %2816 = vmatprep.subr.mxu0 0.0
      %2817 = vmatpush1.msra.mxu0 0.0
      %2818 = vmatprep.subr.mxu0 0.0
      %2819 = vmatpush1.msra.mxu0 0.0
      %2820 = vmatprep.subr.mxu0 0.0
      %2821 = vmatpush1.msra.mxu0 0.0
      %2822 = vmatprep.subr.mxu0 0.0
      %2823 = vmatpush1.msra.mxu0 0.0
      %2824 = vmatprep.subr.mxu0 0.0
      %2825 = vmatpush1.msra.mxu0 0.0
      %2826 = vmatprep.subr.mxu0 0.0
      %2827 = vmatpush1.msra.mxu0 0.0
      %2828 = vmatprep.subr.mxu0 0.0
      %2829 = vmatpush1.msra.mxu0 0.0
      %2830 = vmatprep.subr.mxu0 0.0
      %2831 = vmatpush1.msra.mxu0 0.0
      %2832 = vmatprep.subr.mxu0 0.0
      %2833 = vmatpush1.msra.mxu0 0.0
      %2834 = vmatprep.subr.mxu0 0.0
      %2835 = vmatpush1.msra.mxu0 0.0
      %2836 = vmatprep.subr.mxu0 0.0
      %2837 = vmatpush1.msra.mxu0 0.0
      %2838 = vmatprep.subr.mxu0 0.0
      %2839 = vmatpush1.msra.mxu0 0.0
      %2840 = vmatprep.subr.mxu0 0.0
      %2841 = vmatpush1.msra.mxu0 0.0
      %2842 = vmatprep.subr.mxu0 0.0
      %2843 = vmatpush1.msra.mxu0 0.0
      %2844 = vmatprep.subr.mxu0 0.0
      %2845 = vmatpush1.msra.mxu0 0.0
      %2846 = vmatprep.mubr.f32.mxu0 0.0
      %2847 = vmatmul.mubr.f32.gmra.mrb[0].mxu0 %v2777
      %v2848 = vpop.f32.mrb[0].mxu0
      %v2849 = vadd.f32 0.0, %v2848
      %v2850 = vpop.f32.mrb[0].mxu0
      %2851 = vmatprep.mubr.f32.mxu0 0.0
      %2852 = vmatmul.mubr.f32.gmra.mrb[0].mxu0 %v2780
      %v2853 = vpop.f32.mrb[0].mxu0
      %v2854 = vadd.f32 0.0, %v2853
      %v2855 = vpop.f32.mrb[0].mxu0
      %2856 = vdwg.mxu0
      %v2858 = vlaneseq
      %v2859 = vshrl.u32 %v2858, 7
      %v2860 = vsub.s32 0, %v2859
      %v2861 = vrot.slane %v2572, %v2860
      %v2863 = vadd.f32 %v2861, %v2849
      %v2864 = vadd.f32 %v2861, %v2854
      %2865 = vrot.lane.b32.xlu0 %v2558, 120
      %v2866 = vpop.permute.xlu0 %2865
      %2867 = vrot.lane.b32.xlu0 %v2563, 120
      %v2868 = vpop.permute.xlu0 %2867
      %2869 = vrot.lane.b32.xlu0 %v2558, 88
      %v2870 = vpop.permute.xlu0 %2869
      %2871 = vrot.lane.b32.xlu0 %v2563, 88
      %v2872 = vpop.permute.xlu0 %2871
      %v2873 = vsel %vm1024, %v2866, 0
      %v2875 = vsel %vm1024, %v2868, 0
      %v2877 = vsel %vm1024, %v2870, 0
      %v2879 = vsel %vm1024, %v2872, 0
      %2881 = vmatprep.subr.mxu0 0.0
      %2882 = vmatpush1.xpose.msra.mxu0 %v2877
      %2883 = vmatprep.subr.mxu0 0.0
      %2884 = vmatpush1.xpose.msra.mxu0 %v2879
      %2885 = vmatprep.subr.mxu0 0.0
      %2886 = vmatpush1.xpose.msra.mxu0 0.0
      %2887 = vmatprep.subr.mxu0 0.0
      %2888 = vmatpush1.xpose.msra.mxu0 0.0
      %2889 = vmatprep.subr.mxu0 0.0
      %2890 = vmatpush1.xpose.msra.mxu0 0.0
      %2891 = vmatprep.subr.mxu0 0.0
      %2892 = vmatpush1.xpose.msra.mxu0 0.0
      %2893 = vmatprep.subr.mxu0 0.0
      %2894 = vmatpush1.xpose.msra.mxu0 0.0
      %2895 = vmatprep.subr.mxu0 0.0
      %2896 = vmatpush1.xpose.msra.mxu0 0.0
      %2897 = vmatprep.subr.mxu0 0.0
      %2898 = vmatpush1.xpose.msra.mxu0 0.0
      %2899 = vmatprep.subr.mxu0 0.0
      %2900 = vmatpush1.xpose.msra.mxu0 0.0
      %2901 = vmatprep.subr.mxu0 0.0
      %2902 = vmatpush1.xpose.msra.mxu0 0.0
      %2903 = vmatprep.subr.mxu0 0.0
      %2904 = vmatpush1.xpose.msra.mxu0 0.0
      %2905 = vmatprep.subr.mxu0 0.0
      %2906 = vmatpush1.xpose.msra.mxu0 0.0
      %2907 = vmatprep.subr.mxu0 0.0
      %2908 = vmatpush1.xpose.msra.mxu0 0.0
      %2909 = vmatprep.subr.mxu0 0.0
      %2910 = vmatpush1.xpose.msra.mxu0 0.0
      %2911 = vmatprep.subr.mxu0 0.0
      %2912 = vmatpush1.xpose.msra.mxu0 0.0
      %2913 = vmatprep.subr.mxu0 0.0
      %2914 = vmatpush1.xpose.msra.mxu0 0.0
      %2915 = vmatprep.subr.mxu0 0.0
      %2916 = vmatpush1.xpose.msra.mxu0 0.0
      %2917 = vmatprep.subr.mxu0 0.0
      %2918 = vmatpush1.xpose.msra.mxu0 0.0
      %2919 = vmatprep.subr.mxu0 0.0
      %2920 = vmatpush1.xpose.msra.mxu0 0.0
      %2921 = vmatprep.subr.mxu0 0.0
      %2922 = vmatpush1.xpose.msra.mxu0 0.0
      %2923 = vmatprep.subr.mxu0 0.0
      %2924 = vmatpush1.xpose.msra.mxu0 0.0
      %2925 = vmatprep.subr.mxu0 0.0
      %2926 = vmatpush1.xpose.msra.mxu0 0.0
      %2927 = vmatprep.subr.mxu0 0.0
      %2928 = vmatpush1.xpose.msra.mxu0 0.0
      %2929 = vmatprep.subr.mxu0 0.0
      %2930 = vmatpush1.xpose.msra.mxu0 0.0
      %2931 = vmatprep.subr.mxu0 0.0
      %2932 = vmatpush1.xpose.msra.mxu0 0.0
      %2933 = vmatprep.subr.mxu0 0.0
      %2934 = vmatpush1.xpose.msra.mxu0 0.0
      %2935 = vmatprep.subr.mxu0 0.0
      %2936 = vmatpush1.xpose.msra.mxu0 0.0
      %2937 = vmatprep.subr.mxu0 0.0
      %2938 = vmatpush1.xpose.msra.mxu0 0.0
      %2939 = vmatprep.subr.mxu0 0.0
      %2940 = vmatpush1.xpose.msra.mxu0 0.0
      %2941 = vmatprep.subr.mxu0 0.0
      %2942 = vmatpush1.xpose.msra.mxu0 0.0
      %2943 = vmatprep.subr.mxu0 0.0
      %2944 = vmatpush1.xpose.msra.mxu0 0.0
      %2945 = vmatprep.mubr.f32.mxu0 0.0
      %2946 = vmatmul.mubr.f32.gmra.mrb[0].mxu0 %v2873
      %v2947 = vpop.f32.mrb[0].mxu0
      %v2948 = vadd.f32 0.0, %v2947
      %v2949 = vpop.f32.mrb[0].mxu0
      %2950 = vmatprep.mubr.f32.mxu0 0.0
      %2951 = vmatmul.mubr.f32.gmra.mrb[0].mxu0 %v2875
      %v2952 = vpop.f32.mrb[0].mxu0
      %v2953 = vadd.f32 0.0, %v2952
      %v2954 = vpop.f32.mrb[0].mxu0
      %2955 = vdwg.mxu0
      %v2956 = vmul.f32 %v2948, 0.35355338
      %v2957 = vmul.f32 %v2953, 0.35355338
      %v2958 = vadd.f32 %v2956, %v1114
      %v2959 = vadd.f32 %v2957, %v1114
      %v2960 = vsel %vm1118, %v2958, -inf
      %2961 = vmax.xlane.f32.xlu0 %v2960
      %v2962 = vpop.xlane.xlu0 %2961
      %v2963 = vsel %vm1122, %v2959, -inf
      %2964 = vmax.xlane.f32.xlu0 %v2963
      %v2965 = vpop.xlane.xlu0 %2964
      %v2966 = vsub.f32 %v2958, %v2962
      %v2967 = vsub.f32 %v2959, %v2965
      %v2968 = vmul.f32 %v2966, 1.442695
      %v2969 = vpow.pop %v2968
      %v2970 = vmul.f32 %v2967, 1.442695
      %v2971 = vpow.pop %v2970
      %v2972 = vsel %vm1118, %v2969, 0.0
      %2973 = vadd.xlane.f32.xlu0 %v2972
      %v2974 = vpop.xlane.xlu0 %2973
      %v2975 = vsel %vm1122, %v2971, 0.0
      %2976 = vadd.xlane.f32.xlu0 %v2975
      %v2977 = vpop.xlane.xlu0 %2976
      %v2978 = vrcp.pop %v2974
      %v2979 = vrcp.pop %v2977
      %v2980 = vmul.f32 %v2969, %v2978
      %v2981 = vmul.f32 %v2971, %v2979
      %2982 = vrot.lane.b32.xlu0 %v2558, 56
      %v2983 = vpop.permute.xlu0 %2982
      %2984 = vrot.lane.b32.xlu0 %v2563, 56
      %v2985 = vpop.permute.xlu0 %2984
      %v2988 = vsel %vm1118, %v2980, 0
      %v2991 = vsel %vm1118, %v2981, 0
      %v2993 = vsel %vm785, %v2985, 0
      %2995 = vmatprep.subr.mxu0 0.0
      %2996 = vmatpush1.msra.mxu0 %v2983
      %2997 = vmatprep.subr.mxu0 0.0
      %2998 = vmatpush1.msra.mxu0 %v2993
      %2999 = vmatprep.subr.mxu0 0.0
      %3000 = vmatpush1.msra.mxu0 0.0
      %3001 = vmatprep.subr.mxu0 0.0
      %3002 = vmatpush1.msra.mxu0 0.0
      %3003 = vmatprep.subr.mxu0 0.0
      %3004 = vmatpush1.msra.mxu0 0.0
      %3005 = vmatprep.subr.mxu0 0.0
      %3006 = vmatpush1.msra.mxu0 0.0
      %3007 = vmatprep.subr.mxu0 0.0
      %3008 = vmatpush1.msra.mxu0 0.0
      %3009 = vmatprep.subr.mxu0 0.0
      %3010 = vmatpush1.msra.mxu0 0.0
      %3011 = vmatprep.subr.mxu0 0.0
      %3012 = vmatpush1.msra.mxu0 0.0
      %3013 = vmatprep.subr.mxu0 0.0
      %3014 = vmatpush1.msra.mxu0 0.0
      %3015 = vmatprep.subr.mxu0 0.0
      %3016 = vmatpush1.msra.mxu0 0.0
      %3017 = vmatprep.subr.mxu0 0.0
      %3018 = vmatpush1.msra.mxu0 0.0
      %3019 = vmatprep.subr.mxu0 0.0
      %3020 = vmatpush1.msra.mxu0 0.0
      %3021 = vmatprep.subr.mxu0 0.0
      %3022 = vmatpush1.msra.mxu0 0.0
      %3023 = vmatprep.subr.mxu0 0.0
      %3024 = vmatpush1.msra.mxu0 0.0
      %3025 = vmatprep.subr.mxu0 0.0
      %3026 = vmatpush1.msra.mxu0 0.0
      %3027 = vmatprep.subr.mxu0 0.0
      %3028 = vmatpush1.msra.mxu0 0.0
      %3029 = vmatprep.subr.mxu0 0.0
      %3030 = vmatpush1.msra.mxu0 0.0
      %3031 = vmatprep.subr.mxu0 0.0
      %3032 = vmatpush1.msra.mxu0 0.0
      %3033 = vmatprep.subr.mxu0 0.0
      %3034 = vmatpush1.msra.mxu0 0.0
      %3035 = vmatprep.subr.mxu0 0.0
      %3036 = vmatpush1.msra.mxu0 0.0
      %3037 = vmatprep.subr.mxu0 0.0
      %3038 = vmatpush1.msra.mxu0 0.0
      %3039 = vmatprep.subr.mxu0 0.0
      %3040 = vmatpush1.msra.mxu0 0.0
      %3041 = vmatprep.subr.mxu0 0.0
      %3042 = vmatpush1.msra.mxu0 0.0
      %3043 = vmatprep.subr.mxu0 0.0
      %3044 = vmatpush1.msra.mxu0 0.0
      %3045 = vmatprep.subr.mxu0 0.0
      %3046 = vmatpush1.msra.mxu0 0.0
      %3047 = vmatprep.subr.mxu0 0.0
      %3048 = vmatpush1.msra.mxu0 0.0
      %3049 = vmatprep.subr.mxu0 0.0
      %3050 = vmatpush1.msra.mxu0 0.0
      %3051 = vmatprep.subr.mxu0 0.0
      %3052 = vmatpush1.msra.mxu0 0.0
      %3053 = vmatprep.subr.mxu0 0.0
      %3054 = vmatpush1.msra.mxu0 0.0
      %3055 = vmatprep.subr.mxu0 0.0
      %3056 = vmatpush1.msra.mxu0 0.0
      %3057 = vmatprep.subr.mxu0 0.0
      %3058 = vmatpush1.msra.mxu0 0.0
      %3059 = vmatprep.mubr.f32.mxu0 0.0
      %3060 = vmatmul.mubr.f32.gmra.mrb[0].mxu0 %v2988
      %v3061 = vpop.f32.mrb[0].mxu0
      %v3062 = vadd.f32 0.0, %v3061
      %v3063 = vpop.f32.mrb[0].mxu0
      %3064 = vmatprep.mubr.f32.mxu0 0.0
      %3065 = vmatmul.mubr.f32.gmra.mrb[0].mxu0 %v2991
      %v3066 = vpop.f32.mrb[0].mxu0
      %v3067 = vadd.f32 0.0, %v3066
      %v3068 = vpop.f32.mrb[0].mxu0
      %3069 = vdwg.mxu0
      %v3071 = vsel %vm1024, %v3062, 0
      %v3074 = vsel %vm1024, %v3067, 0
      %3076 = vmatprep.subr.mxu0 0.0
      %3077 = vmatpush1.msra.mxu0 %v2568
      %3078 = vmatprep.subr.mxu0 0.0
      %3079 = vmatpush1.msra.mxu0 0.0
      %3080 = vmatprep.subr.mxu0 0.0
      %3081 = vmatpush1.msra.mxu0 0.0
      %3082 = vmatprep.subr.mxu0 0.0
      %3083 = vmatpush1.msra.mxu0 0.0
      %3084 = vmatprep.subr.mxu0 0.0
      %3085 = vmatpush1.msra.mxu0 0.0
      %3086 = vmatprep.subr.mxu0 0.0
      %3087 = vmatpush1.msra.mxu0 0.0
      %3088 = vmatprep.subr.mxu0 0.0
      %3089 = vmatpush1.msra.mxu0 0.0
      %3090 = vmatprep.subr.mxu0 0.0
      %3091 = vmatpush1.msra.mxu0 0.0
      %3092 = vmatprep.subr.mxu0 0.0
      %3093 = vmatpush1.msra.mxu0 0.0
      %3094 = vmatprep.subr.mxu0 0.0
      %3095 = vmatpush1.msra.mxu0 0.0
      %3096 = vmatprep.subr.mxu0 0.0
      %3097 = vmatpush1.msra.mxu0 0.0
      %3098 = vmatprep.subr.mxu0 0.0
      %3099 = vmatpush1.msra.mxu0 0.0
      %3100 = vmatprep.subr.mxu0 0.0
      %3101 = vmatpush1.msra.mxu0 0.0
      %3102 = vmatprep.subr.mxu0 0.0
      %3103 = vmatpush1.msra.mxu0 0.0
      %3104 = vmatprep.subr.mxu0 0.0
      %3105 = vmatpush1.msra.mxu0 0.0
      %3106 = vmatprep.subr.mxu0 0.0
      %3107 = vmatpush1.msra.mxu0 0.0
      %3108 = vmatprep.subr.mxu0 0.0
      %3109 = vmatpush1.msra.mxu0 0.0
      %3110 = vmatprep.subr.mxu0 0.0
      %3111 = vmatpush1.msra.mxu0 0.0
      %3112 = vmatprep.subr.mxu0 0.0
      %3113 = vmatpush1.msra.mxu0 0.0
      %3114 = vmatprep.subr.mxu0 0.0
      %3115 = vmatpush1.msra.mxu0 0.0
      %3116 = vmatprep.subr.mxu0 0.0
      %3117 = vmatpush1.msra.mxu0 0.0
      %3118 = vmatprep.subr.mxu0 0.0
      %3119 = vmatpush1.msra.mxu0 0.0
      %3120 = vmatprep.subr.mxu0 0.0
      %3121 = vmatpush1.msra.mxu0 0.0
      %3122 = vmatprep.subr.mxu0 0.0
      %3123 = vmatpush1.msra.mxu0 0.0
      %3124 = vmatprep.subr.mxu0 0.0
      %3125 = vmatpush1.msra.mxu0 0.0
      %3126 = vmatprep.subr.mxu0 0.0
      %3127 = vmatpush1.msra.mxu0 0.0
      %3128 = vmatprep.subr.mxu0 0.0
      %3129 = vmatpush1.msra.mxu0 0.0
      %3130 = vmatprep.subr.mxu0 0.0
      %3131 = vmatpush1.msra.mxu0 0.0
      %3132 = vmatprep.subr.mxu0 0.0
      %3133 = vmatpush1.msra.mxu0 0.0
      %3134 = vmatprep.subr.mxu0 0.0
      %3135 = vmatpush1.msra.mxu0 0.0
      %3136 = vmatprep.subr.mxu0 0.0
      %3137 = vmatpush1.msra.mxu0 0.0
      %3138 = vmatprep.subr.mxu0 0.0
      %3139 = vmatpush1.msra.mxu0 0.0
      %3140 = vmatprep.mubr.f32.mxu0 0.0
      %3141 = vmatmul.mubr.f32.gmra.mrb[0].mxu0 %v3071
      %v3142 = vpop.f32.mrb[0].mxu0
      %v3143 = vadd.f32 0.0, %v3142
      %v3144 = vpop.f32.mrb[0].mxu0
      %3145 = vmatprep.mubr.f32.mxu0 0.0
      %3146 = vmatmul.mubr.f32.gmra.mrb[0].mxu0 %v3074
      %v3147 = vpop.f32.mrb[0].mxu0
      %v3148 = vadd.f32 0.0, %v3147
      %v3149 = vpop.f32.mrb[0].mxu0
      %3150 = vdwg.mxu0
      %v3151 = vadd.f32 %v2863, %v3143
      %v3152 = vadd.f32 %v2864, %v3148
      %3153 = vrot.lane.b32.xlu0 %v2558, 112
      %v3154 = vpop.permute.xlu0 %3153
      %3155 = vrot.lane.b32.xlu0 %v2563, 112
      %v3156 = vpop.permute.xlu0 %3155
      %3157 = vrot.lane.b32.xlu0 %v2558, 80
      %v3158 = vpop.permute.xlu0 %3157
      %3159 = vrot.lane.b32.xlu0 %v2563, 80
      %v3160 = vpop.permute.xlu0 %3159
      %v3161 = vsel %vm1024, %v3154, 0
      %v3163 = vsel %vm1024, %v3156, 0
      %v3165 = vsel %vm1024, %v3158, 0
      %v3167 = vsel %vm1024, %v3160, 0
      %3169 = vmatprep.subr.mxu0 0.0
      %3170 = vmatpush1.xpose.msra.mxu0 %v3165
      %3171 = vmatprep.subr.mxu0 0.0
      %3172 = vmatpush1.xpose.msra.mxu0 %v3167
      %3173 = vmatprep.subr.mxu0 0.0
      %3174 = vmatpush1.xpose.msra.mxu0 0.0
      %3175 = vmatprep.subr.mxu0 0.0
      %3176 = vmatpush1.xpose.msra.mxu0 0.0
      %3177 = vmatprep.subr.mxu0 0.0
      %3178 = vmatpush1.xpose.msra.mxu0 0.0
      %3179 = vmatprep.subr.mxu0 0.0
      %3180 = vmatpush1.xpose.msra.mxu0 0.0
      %3181 = vmatprep.subr.mxu0 0.0
      %3182 = vmatpush1.xpose.msra.mxu0 0.0
      %3183 = vmatprep.subr.mxu0 0.0
      %3184 = vmatpush1.xpose.msra.mxu0 0.0
      %3185 = vmatprep.subr.mxu0 0.0
      %3186 = vmatpush1.xpose.msra.mxu0 0.0
      %3187 = vmatprep.subr.mxu0 0.0
      %3188 = vmatpush1.xpose.msra.mxu0 0.0
      %3189 = vmatprep.subr.mxu0 0.0
      %3190 = vmatpush1.xpose.msra.mxu0 0.0
      %3191 = vmatprep.subr.mxu0 0.0
      %3192 = vmatpush1.xpose.msra.mxu0 0.0
      %3193 = vmatprep.subr.mxu0 0.0
      %3194 = vmatpush1.xpose.msra.mxu0 0.0
      %3195 = vmatprep.subr.mxu0 0.0
      %3196 = vmatpush1.xpose.msra.mxu0 0.0
      %3197 = vmatprep.subr.mxu0 0.0
      %3198 = vmatpush1.xpose.msra.mxu0 0.0
      %3199 = vmatprep.subr.mxu0 0.0
      %3200 = vmatpush1.xpose.msra.mxu0 0.0
      %3201 = vmatprep.subr.mxu0 0.0
      %3202 = vmatpush1.xpose.msra.mxu0 0.0
      %3203 = vmatprep.subr.mxu0 0.0
      %3204 = vmatpush1.xpose.msra.mxu0 0.0
      %3205 = vmatprep.subr.mxu0 0.0
      %3206 = vmatpush1.xpose.msra.mxu0 0.0
      %3207 = vmatprep.subr.mxu0 0.0
      %3208 = vmatpush1.xpose.msra.mxu0 0.0
      %3209 = vmatprep.subr.mxu0 0.0
      %3210 = vmatpush1.xpose.msra.mxu0 0.0
      %3211 = vmatprep.subr.mxu0 0.0
      %3212 = vmatpush1.xpose.msra.mxu0 0.0
      %3213 = vmatprep.subr.mxu0 0.0
      %3214 = vmatpush1.xpose.msra.mxu0 0.0
      %3215 = vmatprep.subr.mxu0 0.0
      %3216 = vmatpush1.xpose.msra.mxu0 0.0
      %3217 = vmatprep.subr.mxu0 0.0
      %3218 = vmatpush1.xpose.msra.mxu0 0.0
      %3219 = vmatprep.subr.mxu0 0.0
      %3220 = vmatpush1.xpose.msra.mxu0 0.0
      %3221 = vmatprep.subr.mxu0 0.0
      %3222 = vmatpush1.xpose.msra.mxu0 0.0
      %3223 = vmatprep.subr.mxu0 0.0
      %3224 = vmatpush1.xpose.msra.mxu0 0.0
      %3225 = vmatprep.subr.mxu0 0.0
      %3226 = vmatpush1.xpose.msra.mxu0 0.0
      %3227 = vmatprep.subr.mxu0 0.0
      %3228 = vmatpush1.xpose.msra.mxu0 0.0
      %3229 = vmatprep.subr.mxu0 0.0
      %3230 = vmatpush1.xpose.msra.mxu0 0.0
      %3231 = vmatprep.subr.mxu0 0.0
      %3232 = vmatpush1.xpose.msra.mxu0 0.0
      %3233 = vmatprep.mubr.f32.mxu0 0.0
      %3234 = vmatmul.mubr.f32.gmra.mrb[0].mxu0 %v3161
      %v3235 = vpop.f32.mrb[0].mxu0
      %v3236 = vadd.f32 0.0, %v3235
      %v3237 = vpop.f32.mrb[0].mxu0
      %3238 = vmatprep.mubr.f32.mxu0 0.0
      %3239 = vmatmul.mubr.f32.gmra.mrb[0].mxu0 %v3163
      %v3240 = vpop.f32.mrb[0].mxu0
      %v3241 = vadd.f32 0.0, %v3240
      %v3242 = vpop.f32.mrb[0].mxu0
      %3243 = vdwg.mxu0
      %v3244 = vmul.f32 %v3236, 0.35355338
      %v3245 = vmul.f32 %v3241, 0.35355338
      %v3246 = vadd.f32 %v3244, %v1114
      %v3247 = vadd.f32 %v3245, %v1114
      %v3248 = vsel %vm1118, %v3246, -inf
      %3249 = vmax.xlane.f32.xlu0 %v3248
      %v3250 = vpop.xlane.xlu0 %3249
      %v3251 = vsel %vm1122, %v3247, -inf
      %3252 = vmax.xlane.f32.xlu0 %v3251
      %v3253 = vpop.xlane.xlu0 %3252
      %v3254 = vsub.f32 %v3246, %v3250
      %v3255 = vsub.f32 %v3247, %v3253
      %v3256 = vmul.f32 %v3254, 1.442695
      %v3257 = vpow.pop %v3256
      %v3258 = vmul.f32 %v3255, 1.442695
      %v3259 = vpow.pop %v3258
      %v3260 = vsel %vm1118, %v3257, 0.0
      %3261 = vadd.xlane.f32.xlu0 %v3260
      %v3262 = vpop.xlane.xlu0 %3261
      %v3263 = vsel %vm1122, %v3259, 0.0
      %3264 = vadd.xlane.f32.xlu0 %v3263
      %v3265 = vpop.xlane.xlu0 %3264
      %v3266 = vrcp.pop %v3262
      %v3267 = vrcp.pop %v3265
      %v3268 = vmul.f32 %v3257, %v3266
      %v3269 = vmul.f32 %v3259, %v3267
      %3270 = vrot.lane.b32.xlu0 %v2558, 48
      %v3271 = vpop.permute.xlu0 %3270
      %3272 = vrot.lane.b32.xlu0 %v2563, 48
      %v3273 = vpop.permute.xlu0 %3272
      %v3276 = vsel %vm1118, %v3268, 0
      %v3279 = vsel %vm1118, %v3269, 0
      %v3281 = vsel %vm785, %v3273, 0
      %3283 = vmatprep.subr.mxu0 0.0
      %3284 = vmatpush1.msra.mxu0 %v3271
      %3285 = vmatprep.subr.mxu0 0.0
      %3286 = vmatpush1.msra.mxu0 %v3281
      %3287 = vmatprep.subr.mxu0 0.0
      %3288 = vmatpush1.msra.mxu0 0.0
      %3289 = vmatprep.subr.mxu0 0.0
      %3290 = vmatpush1.msra.mxu0 0.0
      %3291 = vmatprep.subr.mxu0 0.0
      %3292 = vmatpush1.msra.mxu0 0.0
      %3293 = vmatprep.subr.mxu0 0.0
      %3294 = vmatpush1.msra.mxu0 0.0
      %3295 = vmatprep.subr.mxu0 0.0
      %3296 = vmatpush1.msra.mxu0 0.0
      %3297 = vmatprep.subr.mxu0 0.0
      %3298 = vmatpush1.msra.mxu0 0.0
      %3299 = vmatprep.subr.mxu0 0.0
      %3300 = vmatpush1.msra.mxu0 0.0
      %3301 = vmatprep.subr.mxu0 0.0
      %3302 = vmatpush1.msra.mxu0 0.0
      %3303 = vmatprep.subr.mxu0 0.0
      %3304 = vmatpush1.msra.mxu0 0.0
      %3305 = vmatprep.subr.mxu0 0.0
      %3306 = vmatpush1.msra.mxu0 0.0
      %3307 = vmatprep.subr.mxu0 0.0
      %3308 = vmatpush1.msra.mxu0 0.0
      %3309 = vmatprep.subr.mxu0 0.0
      %3310 = vmatpush1.msra.mxu0 0.0
      %3311 = vmatprep.subr.mxu0 0.0
      %3312 = vmatpush1.msra.mxu0 0.0
      %3313 = vmatprep.subr.mxu0 0.0
      %3314 = vmatpush1.msra.mxu0 0.0
      %3315 = vmatprep.subr.mxu0 0.0
      %3316 = vmatpush1.msra.mxu0 0.0
      %3317 = vmatprep.subr.mxu0 0.0
      %3318 = vmatpush1.msra.mxu0 0.0
      %3319 = vmatprep.subr.mxu0 0.0
      %3320 = vmatpush1.msra.mxu0 0.0
      %3321 = vmatprep.subr.mxu0 0.0
      %3322 = vmatpush1.msra.mxu0 0.0
      %3323 = vmatprep.subr.mxu0 0.0
      %3324 = vmatpush1.msra.mxu0 0.0
      %3325 = vmatprep.subr.mxu0 0.0
      %3326 = vmatpush1.msra.mxu0 0.0
      %3327 = vmatprep.subr.mxu0 0.0
      %3328 = vmatpush1.msra.mxu0 0.0
      %3329 = vmatprep.subr.mxu0 0.0
      %3330 = vmatpush1.msra.mxu0 0.0
      %3331 = vmatprep.subr.mxu0 0.0
      %3332 = vmatpush1.msra.mxu0 0.0
      %3333 = vmatprep.subr.mxu0 0.0
      %3334 = vmatpush1.msra.mxu0 0.0
      %3335 = vmatprep.subr.mxu0 0.0
      %3336 = vmatpush1.msra.mxu0 0.0
      %3337 = vmatprep.subr.mxu0 0.0
      %3338 = vmatpush1.msra.mxu0 0.0
      %3339 = vmatprep.subr.mxu0 0.0
      %3340 = vmatpush1.msra.mxu0 0.0
      %3341 = vmatprep.subr.mxu0 0.0
      %3342 = vmatpush1.msra.mxu0 0.0
      %3343 = vmatprep.subr.mxu0 0.0
      %3344 = vmatpush1.msra.mxu0 0.0
      %3345 = vmatprep.subr.mxu0 0.0
      %3346 = vmatpush1.msra.mxu0 0.0
      %3347 = vmatprep.mubr.f32.mxu0 0.0
      %3348 = vmatmul.mubr.f32.gmra.mrb[0].mxu0 %v3276
      %v3349 = vpop.f32.mrb[0].mxu0
      %v3350 = vadd.f32 0.0, %v3349
      %v3351 = vpop.f32.mrb[0].mxu0
      %3352 = vmatprep.mubr.f32.mxu0 0.0
      %3353 = vmatmul.mubr.f32.gmra.mrb[0].mxu0 %v3279
      %v3354 = vpop.f32.mrb[0].mxu0
      %v3355 = vadd.f32 0.0, %v3354
      %v3356 = vpop.f32.mrb[0].mxu0
      %3357 = vdwg.mxu0
      %v3359 = vsel %vm1024, %v3350, 0
      %v3362 = vsel %vm1024, %v3355, 0
      %3364 = vmatprep.subr.mxu0 0.0
      %3365 = vmatpush1.msra.mxu0 %v2569
      %3366 = vmatprep.subr.mxu0 0.0
      %3367 = vmatpush1.msra.mxu0 0.0
      %3368 = vmatprep.subr.mxu0 0.0
      %3369 = vmatpush1.msra.mxu0 0.0
      %3370 = vmatprep.subr.mxu0 0.0
      %3371 = vmatpush1.msra.mxu0 0.0
      %3372 = vmatprep.subr.mxu0 0.0
      %3373 = vmatpush1.msra.mxu0 0.0
      %3374 = vmatprep.subr.mxu0 0.0
      %3375 = vmatpush1.msra.mxu0 0.0
      %3376 = vmatprep.subr.mxu0 0.0
      %3377 = vmatpush1.msra.mxu0 0.0
      %3378 = vmatprep.subr.mxu0 0.0
      %3379 = vmatpush1.msra.mxu0 0.0
      %3380 = vmatprep.subr.mxu0 0.0
      %3381 = vmatpush1.msra.mxu0 0.0
      %3382 = vmatprep.subr.mxu0 0.0
      %3383 = vmatpush1.msra.mxu0 0.0
      %3384 = vmatprep.subr.mxu0 0.0
      %3385 = vmatpush1.msra.mxu0 0.0
      %3386 = vmatprep.subr.mxu0 0.0
      %3387 = vmatpush1.msra.mxu0 0.0
      %3388 = vmatprep.subr.mxu0 0.0
      %3389 = vmatpush1.msra.mxu0 0.0
      %3390 = vmatprep.subr.mxu0 0.0
      %3391 = vmatpush1.msra.mxu0 0.0
      %3392 = vmatprep.subr.mxu0 0.0
      %3393 = vmatpush1.msra.mxu0 0.0
      %3394 = vmatprep.subr.mxu0 0.0
      %3395 = vmatpush1.msra.mxu0 0.0
      %3396 = vmatprep.subr.mxu0 0.0
      %3397 = vmatpush1.msra.mxu0 0.0
      %3398 = vmatprep.subr.mxu0 0.0
      %3399 = vmatpush1.msra.mxu0 0.0
      %3400 = vmatprep.subr.mxu0 0.0
      %3401 = vmatpush1.msra.mxu0 0.0
      %3402 = vmatprep.subr.mxu0 0.0
      %3403 = vmatpush1.msra.mxu0 0.0
      %3404 = vmatprep.subr.mxu0 0.0
      %3405 = vmatpush1.msra.mxu0 0.0
      %3406 = vmatprep.subr.mxu0 0.0
      %3407 = vmatpush1.msra.mxu0 0.0
      %3408 = vmatprep.subr.mxu0 0.0
      %3409 = vmatpush1.msra.mxu0 0.0
      %3410 = vmatprep.subr.mxu0 0.0
      %3411 = vmatpush1.msra.mxu0 0.0
      %3412 = vmatprep.subr.mxu0 0.0
      %3413 = vmatpush1.msra.mxu0 0.0
      %3414 = vmatprep.subr.mxu0 0.0
      %3415 = vmatpush1.msra.mxu0 0.0
      %3416 = vmatprep.subr.mxu0 0.0
      %3417 = vmatpush1.msra.mxu0 0.0
      %3418 = vmatprep.subr.mxu0 0.0
      %3419 = vmatpush1.msra.mxu0 0.0
      %3420 = vmatprep.subr.mxu0 0.0
      %3421 = vmatpush1.msra.mxu0 0.0
      %3422 = vmatprep.subr.mxu0 0.0
      %3423 = vmatpush1.msra.mxu0 0.0
      %3424 = vmatprep.subr.mxu0 0.0
      %3425 = vmatpush1.msra.mxu0 0.0
      %3426 = vmatprep.subr.mxu0 0.0
      %3427 = vmatpush1.msra.mxu0 0.0
      %3428 = vmatprep.mubr.f32.mxu0 0.0
      %3429 = vmatmul.mubr.f32.gmra.mrb[0].mxu0 %v3359
      %v3430 = vpop.f32.mrb[0].mxu0
      %v3431 = vadd.f32 0.0, %v3430
      %v3432 = vpop.f32.mrb[0].mxu0
      %3433 = vmatprep.mubr.f32.mxu0 0.0
      %3434 = vmatmul.mubr.f32.gmra.mrb[0].mxu0 %v3362
      %v3435 = vpop.f32.mrb[0].mxu0
      %v3436 = vadd.f32 0.0, %v3435
      %v3437 = vpop.f32.mrb[0].mxu0
      %3438 = vdwg.mxu0
      %v3439 = vadd.f32 %v3151, %v3431
      %v3440 = vadd.f32 %v3152, %v3436
      %3441 = vrot.lane.b32.xlu0 %v2558, 104
      %v3442 = vpop.permute.xlu0 %3441
      %3443 = vrot.lane.b32.xlu0 %v2563, 104
      %v3444 = vpop.permute.xlu0 %3443
      %3445 = vrot.lane.b32.xlu0 %v2558, 72
      %v3446 = vpop.permute.xlu0 %3445
      %3447 = vrot.lane.b32.xlu0 %v2563, 72
      %v3448 = vpop.permute.xlu0 %3447
      %v3449 = vsel %vm1024, %v3442, 0
      %v3451 = vsel %vm1024, %v3444, 0
      %v3453 = vsel %vm1024, %v3446, 0
      %v3455 = vsel %vm1024, %v3448, 0
      %3457 = vmatprep.subr.mxu0 0.0
      %3458 = vmatpush1.xpose.msra.mxu0 %v3453
      %3459 = vmatprep.subr.mxu0 0.0
      %3460 = vmatpush1.xpose.msra.mxu0 %v3455
      %3461 = vmatprep.subr.mxu0 0.0
      %3462 = vmatpush1.xpose.msra.mxu0 0.0
      %3463 = vmatprep.subr.mxu0 0.0
      %3464 = vmatpush1.xpose.msra.mxu0 0.0
      %3465 = vmatprep.subr.mxu0 0.0
      %3466 = vmatpush1.xpose.msra.mxu0 0.0
      %3467 = vmatprep.subr.mxu0 0.0
      %3468 = vmatpush1.xpose.msra.mxu0 0.0
      %3469 = vmatprep.subr.mxu0 0.0
      %3470 = vmatpush1.xpose.msra.mxu0 0.0
      %3471 = vmatprep.subr.mxu0 0.0
      %3472 = vmatpush1.xpose.msra.mxu0 0.0
      %3473 = vmatprep.subr.mxu0 0.0
      %3474 = vmatpush1.xpose.msra.mxu0 0.0
      %3475 = vmatprep.subr.mxu0 0.0
      %3476 = vmatpush1.xpose.msra.mxu0 0.0
      %3477 = vmatprep.subr.mxu0 0.0
      %3478 = vmatpush1.xpose.msra.mxu0 0.0
      %3479 = vmatprep.subr.mxu0 0.0
      %3480 = vmatpush1.xpose.msra.mxu0 0.0
      %3481 = vmatprep.subr.mxu0 0.0
      %3482 = vmatpush1.xpose.msra.mxu0 0.0
      %3483 = vmatprep.subr.mxu0 0.0
      %3484 = vmatpush1.xpose.msra.mxu0 0.0
      %3485 = vmatprep.subr.mxu0 0.0
      %3486 = vmatpush1.xpose.msra.mxu0 0.0
      %3487 = vmatprep.subr.mxu0 0.0
      %3488 = vmatpush1.xpose.msra.mxu0 0.0
      %3489 = vmatprep.subr.mxu0 0.0
      %3490 = vmatpush1.xpose.msra.mxu0 0.0
      %3491 = vmatprep.subr.mxu0 0.0
      %3492 = vmatpush1.xpose.msra.mxu0 0.0
      %3493 = vmatprep.subr.mxu0 0.0
      %3494 = vmatpush1.xpose.msra.mxu0 0.0
      %3495 = vmatprep.subr.mxu0 0.0
      %3496 = vmatpush1.xpose.msra.mxu0 0.0
      %3497 = vmatprep.subr.mxu0 0.0
      %3498 = vmatpush1.xpose.msra.mxu0 0.0
      %3499 = vmatprep.subr.mxu0 0.0
      %3500 = vmatpush1.xpose.msra.mxu0 0.0
      %3501 = vmatprep.subr.mxu0 0.0
      %3502 = vmatpush1.xpose.msra.mxu0 0.0
      %3503 = vmatprep.subr.mxu0 0.0
      %3504 = vmatpush1.xpose.msra.mxu0 0.0
      %3505 = vmatprep.subr.mxu0 0.0
      %3506 = vmatpush1.xpose.msra.mxu0 0.0
      %3507 = vmatprep.subr.mxu0 0.0
      %3508 = vmatpush1.xpose.msra.mxu0 0.0
      %3509 = vmatprep.subr.mxu0 0.0
      %3510 = vmatpush1.xpose.msra.mxu0 0.0
      %3511 = vmatprep.subr.mxu0 0.0
      %3512 = vmatpush1.xpose.msra.mxu0 0.0
      %3513 = vmatprep.subr.mxu0 0.0
      %3514 = vmatpush1.xpose.msra.mxu0 0.0
      %3515 = vmatprep.subr.mxu0 0.0
      %3516 = vmatpush1.xpose.msra.mxu0 0.0
      %3517 = vmatprep.subr.mxu0 0.0
      %3518 = vmatpush1.xpose.msra.mxu0 0.0
      %3519 = vmatprep.subr.mxu0 0.0
      %3520 = vmatpush1.xpose.msra.mxu0 0.0
      %3521 = vmatprep.mubr.f32.mxu0 0.0
      %3522 = vmatmul.mubr.f32.gmra.mrb[0].mxu0 %v3449
      %v3523 = vpop.f32.mrb[0].mxu0
      %v3524 = vadd.f32 0.0, %v3523
      %v3525 = vpop.f32.mrb[0].mxu0
      %3526 = vmatprep.mubr.f32.mxu0 0.0
      %3527 = vmatmul.mubr.f32.gmra.mrb[0].mxu0 %v3451
      %v3528 = vpop.f32.mrb[0].mxu0
      %v3529 = vadd.f32 0.0, %v3528
      %v3530 = vpop.f32.mrb[0].mxu0
      %3531 = vdwg.mxu0
      %v3532 = vmul.f32 %v3524, 0.35355338
      %v3533 = vmul.f32 %v3529, 0.35355338
      %v3534 = vadd.f32 %v3532, %v1114
      %v3535 = vadd.f32 %v3533, %v1114
      %v3536 = vsel %vm1118, %v3534, -inf
      %3537 = vmax.xlane.f32.xlu0 %v3536
      %v3538 = vpop.xlane.xlu0 %3537
      %v3539 = vsel %vm1122, %v3535, -inf
      %3540 = vmax.xlane.f32.xlu0 %v3539
      %v3541 = vpop.xlane.xlu0 %3540
      %v3542 = vsub.f32 %v3534, %v3538
      %v3543 = vsub.f32 %v3535, %v3541
      %v3544 = vmul.f32 %v3542, 1.442695
      %v3545 = vpow.pop %v3544
      %v3546 = vmul.f32 %v3543, 1.442695
      %v3547 = vpow.pop %v3546
      %v3548 = vsel %vm1118, %v3545, 0.0
      %3549 = vadd.xlane.f32.xlu0 %v3548
      %v3550 = vpop.xlane.xlu0 %3549
      %v3551 = vsel %vm1122, %v3547, 0.0
      %3552 = vadd.xlane.f32.xlu0 %v3551
      %v3553 = vpop.xlane.xlu0 %3552
      %v3554 = vrcp.pop %v3550
      %v3555 = vrcp.pop %v3553
      %v3556 = vmul.f32 %v3545, %v3554
      %v3557 = vmul.f32 %v3547, %v3555
      %3558 = vrot.lane.b32.xlu0 %v2558, 40
      %v3559 = vpop.permute.xlu0 %3558
      %3560 = vrot.lane.b32.xlu0 %v2563, 40
      %v3561 = vpop.permute.xlu0 %3560
      %v3564 = vsel %vm1118, %v3556, 0
      %v3567 = vsel %vm1118, %v3557, 0
      %v3569 = vsel %vm785, %v3561, 0
      %3571 = vmatprep.subr.mxu0 0.0
      %3572 = vmatpush1.msra.mxu0 %v3559
      %3573 = vmatprep.subr.mxu0 0.0
      %3574 = vmatpush1.msra.mxu0 %v3569
      %3575 = vmatprep.subr.mxu0 0.0
      %3576 = vmatpush1.msra.mxu0 0.0
      %3577 = vmatprep.subr.mxu0 0.0
      %3578 = vmatpush1.msra.mxu0 0.0
      %3579 = vmatprep.subr.mxu0 0.0
      %3580 = vmatpush1.msra.mxu0 0.0
      %3581 = vmatprep.subr.mxu0 0.0
      %3582 = vmatpush1.msra.mxu0 0.0
      %3583 = vmatprep.subr.mxu0 0.0
      %3584 = vmatpush1.msra.mxu0 0.0
      %3585 = vmatprep.subr.mxu0 0.0
      %3586 = vmatpush1.msra.mxu0 0.0
      %3587 = vmatprep.subr.mxu0 0.0
      %3588 = vmatpush1.msra.mxu0 0.0
      %3589 = vmatprep.subr.mxu0 0.0
      %3590 = vmatpush1.msra.mxu0 0.0
      %3591 = vmatprep.subr.mxu0 0.0
      %3592 = vmatpush1.msra.mxu0 0.0
      %3593 = vmatprep.subr.mxu0 0.0
      %3594 = vmatpush1.msra.mxu0 0.0
      %3595 = vmatprep.subr.mxu0 0.0
      %3596 = vmatpush1.msra.mxu0 0.0
      %3597 = vmatprep.subr.mxu0 0.0
      %3598 = vmatpush1.msra.mxu0 0.0
      %3599 = vmatprep.subr.mxu0 0.0
      %3600 = vmatpush1.msra.mxu0 0.0
      %3601 = vmatprep.subr.mxu0 0.0
      %3602 = vmatpush1.msra.mxu0 0.0
      %3603 = vmatprep.subr.mxu0 0.0
      %3604 = vmatpush1.msra.mxu0 0.0
      %3605 = vmatprep.subr.mxu0 0.0
      %3606 = vmatpush1.msra.mxu0 0.0
      %3607 = vmatprep.subr.mxu0 0.0
      %3608 = vmatpush1.msra.mxu0 0.0
      %3609 = vmatprep.subr.mxu0 0.0
      %3610 = vmatpush1.msra.mxu0 0.0
      %3611 = vmatprep.subr.mxu0 0.0
      %3612 = vmatpush1.msra.mxu0 0.0
      %3613 = vmatprep.subr.mxu0 0.0
      %3614 = vmatpush1.msra.mxu0 0.0
      %3615 = vmatprep.subr.mxu0 0.0
      %3616 = vmatpush1.msra.mxu0 0.0
      %3617 = vmatprep.subr.mxu0 0.0
      %3618 = vmatpush1.msra.mxu0 0.0
      %3619 = vmatprep.subr.mxu0 0.0
      %3620 = vmatpush1.msra.mxu0 0.0
      %3621 = vmatprep.subr.mxu0 0.0
      %3622 = vmatpush1.msra.mxu0 0.0
      %3623 = vmatprep.subr.mxu0 0.0
      %3624 = vmatpush1.msra.mxu0 0.0
      %3625 = vmatprep.subr.mxu0 0.0
      %3626 = vmatpush1.msra.mxu0 0.0
      %3627 = vmatprep.subr.mxu0 0.0
      %3628 = vmatpush1.msra.mxu0 0.0
      %3629 = vmatprep.subr.mxu0 0.0
      %3630 = vmatpush1.msra.mxu0 0.0
      %3631 = vmatprep.subr.mxu0 0.0
      %3632 = vmatpush1.msra.mxu0 0.0
      %3633 = vmatprep.subr.mxu0 0.0
      %3634 = vmatpush1.msra.mxu0 0.0
      %3635 = vmatprep.mubr.f32.mxu0 0.0
      %3636 = vmatmul.mubr.f32.gmra.mrb[0].mxu0 %v3564
      %v3637 = vpop.f32.mrb[0].mxu0
      %v3638 = vadd.f32 0.0, %v3637
      %v3639 = vpop.f32.mrb[0].mxu0
      %3640 = vmatprep.mubr.f32.mxu0 0.0
      %3641 = vmatmul.mubr.f32.gmra.mrb[0].mxu0 %v3567
      %v3642 = vpop.f32.mrb[0].mxu0
      %v3643 = vadd.f32 0.0, %v3642
      %v3644 = vpop.f32.mrb[0].mxu0
      %3645 = vdwg.mxu0
      %v3647 = vsel %vm1024, %v3638, 0
      %v3650 = vsel %vm1024, %v3643, 0
      %3652 = vmatprep.subr.mxu0 0.0
      %3653 = vmatpush1.msra.mxu0 %v2570
      %3654 = vmatprep.subr.mxu0 0.0
      %3655 = vmatpush1.msra.mxu0 0.0
      %3656 = vmatprep.subr.mxu0 0.0
      %3657 = vmatpush1.msra.mxu0 0.0
      %3658 = vmatprep.subr.mxu0 0.0
      %3659 = vmatpush1.msra.mxu0 0.0
      %3660 = vmatprep.subr.mxu0 0.0
      %3661 = vmatpush1.msra.mxu0 0.0
      %3662 = vmatprep.subr.mxu0 0.0
      %3663 = vmatpush1.msra.mxu0 0.0
      %3664 = vmatprep.subr.mxu0 0.0
      %3665 = vmatpush1.msra.mxu0 0.0
      %3666 = vmatprep.subr.mxu0 0.0
      %3667 = vmatpush1.msra.mxu0 0.0
      %3668 = vmatprep.subr.mxu0 0.0
      %3669 = vmatpush1.msra.mxu0 0.0
      %3670 = vmatprep.subr.mxu0 0.0
      %3671 = vmatpush1.msra.mxu0 0.0
      %3672 = vmatprep.subr.mxu0 0.0
      %3673 = vmatpush1.msra.mxu0 0.0
      %3674 = vmatprep.subr.mxu0 0.0
      %3675 = vmatpush1.msra.mxu0 0.0
      %3676 = vmatprep.subr.mxu0 0.0
      %3677 = vmatpush1.msra.mxu0 0.0
      %3678 = vmatprep.subr.mxu0 0.0
      %3679 = vmatpush1.msra.mxu0 0.0
      %3680 = vmatprep.subr.mxu0 0.0
      %3681 = vmatpush1.msra.mxu0 0.0
      %3682 = vmatprep.subr.mxu0 0.0
      %3683 = vmatpush1.msra.mxu0 0.0
      %3684 = vmatprep.subr.mxu0 0.0
      %3685 = vmatpush1.msra.mxu0 0.0
      %3686 = vmatprep.subr.mxu0 0.0
      %3687 = vmatpush1.msra.mxu0 0.0
      %3688 = vmatprep.subr.mxu0 0.0
      %3689 = vmatpush1.msra.mxu0 0.0
      %3690 = vmatprep.subr.mxu0 0.0
      %3691 = vmatpush1.msra.mxu0 0.0
      %3692 = vmatprep.subr.mxu0 0.0
      %3693 = vmatpush1.msra.mxu0 0.0
      %3694 = vmatprep.subr.mxu0 0.0
      %3695 = vmatpush1.msra.mxu0 0.0
      %3696 = vmatprep.subr.mxu0 0.0
      %3697 = vmatpush1.msra.mxu0 0.0
      %3698 = vmatprep.subr.mxu0 0.0
      %3699 = vmatpush1.msra.mxu0 0.0
      %3700 = vmatprep.subr.mxu0 0.0
      %3701 = vmatpush1.msra.mxu0 0.0
      %3702 = vmatprep.subr.mxu0 0.0
      %3703 = vmatpush1.msra.mxu0 0.0
      %3704 = vmatprep.subr.mxu0 0.0
      %3705 = vmatpush1.msra.mxu0 0.0
      %3706 = vmatprep.subr.mxu0 0.0
      %3707 = vmatpush1.msra.mxu0 0.0
      %3708 = vmatprep.subr.mxu0 0.0
      %3709 = vmatpush1.msra.mxu0 0.0
      %3710 = vmatprep.subr.mxu0 0.0
      %3711 = vmatpush1.msra.mxu0 0.0
      %3712 = vmatprep.subr.mxu0 0.0
      %3713 = vmatpush1.msra.mxu0 0.0
      %3714 = vmatprep.subr.mxu0 0.0
      %3715 = vmatpush1.msra.mxu0 0.0
      %3716 = vmatprep.mubr.f32.mxu0 0.0
      %3717 = vmatmul.mubr.f32.gmra.mrb[0].mxu0 %v3647
      %v3718 = vpop.f32.mrb[0].mxu0
      %v3719 = vadd.f32 0.0, %v3718
      %v3720 = vpop.f32.mrb[0].mxu0
      %3721 = vmatprep.mubr.f32.mxu0 0.0
      %3722 = vmatmul.mubr.f32.gmra.mrb[0].mxu0 %v3650
      %v3723 = vpop.f32.mrb[0].mxu0
      %v3724 = vadd.f32 0.0, %v3723
      %v3725 = vpop.f32.mrb[0].mxu0
      %3726 = vdwg.mxu0
      %v3727 = vadd.f32 %v3439, %v3719
      %v3728 = vadd.f32 %v3440, %v3724
      %s3729 = scalar_lea.vmem %s10, 2
      %v3730 = vld [vmem:[%s3729] sm:$0x3]
      %v3731 = vadd.f32 %v2470, %v3727
      %v3732 = vadd.f32 %v2471, %v3728
      %v3733 = vsel %vm561, %v3731, 0.0
      %3734 = vadd.xlane.f32.xlu0 %v3733
      %v3735 = vpop.xlane.xlu0 %3734
      %v3736 = vsel %vm883, %v3732, 0.0
      %3737 = vadd.xlane.f32.xlu0 %v3736
      %v3738 = vpop.xlane.xlu0 %3737
      %v3739 = vmul.f32 %v3735, %v887
      %v3740 = vmul.f32 %v3738, %v887
      %v3741 = vsub.f32 %v3731, %v3739
      %v3742 = vsub.f32 %v3732, %v3740
      %v3743 = vmul.f32 %v3741, %v3741
      %v3744 = vmul.f32 %v3742, %v3742
      %v3745 = vsel %vm561, %v3743, 0.0
      %3746 = vadd.xlane.f32.xlu0 %v3745
      %v3747 = vpop.xlane.xlu0 %3746
      %v3748 = vsel %vm883, %v3744, 0.0
      %3749 = vadd.xlane.f32.xlu0 %v3748
      %v3750 = vpop.xlane.xlu0 %3749
      %v3751 = vmul.f32 %v3747, %v887
      %v3752 = vmul.f32 %v3750, %v887
      %v3753 = vadd.f32 %v3751, 1e-12
      %v3754 = vadd.f32 %v3752, 1e-12
      %v3755 = vrsqrt.pop %v3753
      %v3756 = vrsqrt.pop %v3754
      %v3757 = vmul.f32 %v3741, %v3755
      %v3758 = vmul.f32 %v3742, %v3756
      %v3759 = vlaneseq
      %v3760 = vshrl.u32 %v3759, 7
      %v3761 = vsub.s32 0, %v3760
      %v3762 = vrot.slane %v3730, %v3761
      %v3763 = vmul.f32 %v3757, %v3762
      %v3764 = vmul.f32 %v3758, %v3762
      %v3765 = vlaneseq
      %v3766 = vshrl.u32 %v3765, 7
      %v3767 = vsub.s32 1, %v3766
      %v3768 = vrot.slane %v3730, %v3767
      %v3769 = vadd.f32 %v3763, %v3768
      %v3770 = vadd.f32 %v3764, %v3768
      %s3771 = scalar_lea.vmem %s11, 32
      %v3772 = vld [vmem:[%s3771] sm:$0xff]
      %v3773 = vld [vmem:[%s3771 + $0x8] sm:$0xff]
      %v3774 = vld [vmem:[%s3771 + $0x10] sm:$0xff]
      %v3775 = vld [vmem:[%s3771 + $0x18] sm:$0xff]
      %s3776 = scalar_lea.vmem %s12, 1
      %v3777 = vld [vmem:[%s3776] sm:$0x1]
      %v3779 = vlaneseq
      %v3780 = vshrl.u32 %v3779, 7
      %v3781 = vsub.s32 0, %v3780
      %v3782 = vrot.slane %v3777, %v3781
      %v3785 = vsel %vm561, %v3769, 0
      %v3788 = vsel %vm561, %v3770, 0
      %3790 = vmatprep.subr.mxu0 0.0
      %3791 = vmatpush1.msra.mxu0 %v3772
      %3792 = vmatprep.subr.mxu0 0.0
      %3793 = vmatpush1.msra.mxu0 %v3773
      %3794 = vmatprep.subr.mxu0 0.0
      %3795 = vmatpush1.msra.mxu0 %v3774
      %3796 = vmatprep.subr.mxu0 0.0
      %3797 = vmatpush1.msra.mxu0 %v3775
      %3798 = vmatprep.subr.mxu0 0.0
      %3799 = vmatpush1.msra.mxu0 0.0
      %3800 = vmatprep.subr.mxu0 0.0
      %3801 = vmatpush1.msra.mxu0 0.0
      %3802 = vmatprep.subr.mxu0 0.0
      %3803 = vmatpush1.msra.mxu0 0.0
      %3804 = vmatprep.subr.mxu0 0.0
      %3805 = vmatpush1.msra.mxu0 0.0
      %3806 = vmatprep.subr.mxu0 0.0
      %3807 = vmatpush1.msra.mxu0 0.0
      %3808 = vmatprep.subr.mxu0 0.0
      %3809 = vmatpush1.msra.mxu0 0.0
      %3810 = vmatprep.subr.mxu0 0.0
      %3811 = vmatpush1.msra.mxu0 0.0
      %3812 = vmatprep.subr.mxu0 0.0
      %3813 = vmatpush1.msra.mxu0 0.0
      %3814 = vmatprep.subr.mxu0 0.0
      %3815 = vmatpush1.msra.mxu0 0.0
      %3816 = vmatprep.subr.mxu0 0.0
      %3817 = vmatpush1.msra.mxu0 0.0
      %3818 = vmatprep.subr.mxu0 0.0
      %3819 = vmatpush1.msra.mxu0 0.0
      %3820 = vmatprep.subr.mxu0 0.0
      %3821 = vmatpush1.msra.mxu0 0.0
      %3822 = vmatprep.subr.mxu0 0.0
      %3823 = vmatpush1.msra.mxu0 0.0
      %3824 = vmatprep.subr.mxu0 0.0
      %3825 = vmatpush1.msra.mxu0 0.0
      %3826 = vmatprep.subr.mxu0 0.0
      %3827 = vmatpush1.msra.mxu0 0.0
      %3828 = vmatprep.subr.mxu0 0.0
      %3829 = vmatpush1.msra.mxu0 0.0
      %3830 = vmatprep.subr.mxu0 0.0
      %3831 = vmatpush1.msra.mxu0 0.0
      %3832 = vmatprep.subr.mxu0 0.0
      %3833 = vmatpush1.msra.mxu0 0.0
      %3834 = vmatprep.subr.mxu0 0.0
      %3835 = vmatpush1.msra.mxu0 0.0
      %3836 = vmatprep.subr.mxu0 0.0
      %3837 = vmatpush1.msra.mxu0 0.0
      %3838 = vmatprep.subr.mxu0 0.0
      %3839 = vmatpush1.msra.mxu0 0.0
      %3840 = vmatprep.subr.mxu0 0.0
      %3841 = vmatpush1.msra.mxu0 0.0
      %3842 = vmatprep.subr.mxu0 0.0
      %3843 = vmatpush1.msra.mxu0 0.0
      %3844 = vmatprep.subr.mxu0 0.0
      %3845 = vmatpush1.msra.mxu0 0.0
      %3846 = vmatprep.subr.mxu0 0.0
      %3847 = vmatpush1.msra.mxu0 0.0
      %3848 = vmatprep.subr.mxu0 0.0
      %3849 = vmatpush1.msra.mxu0 0.0
      %3850 = vmatprep.subr.mxu0 0.0
      %3851 = vmatpush1.msra.mxu0 0.0
      %3852 = vmatprep.subr.mxu0 0.0
      %3853 = vmatpush1.msra.mxu0 0.0
      %3854 = vmatprep.mubr.f32.mxu0 0.0
      %3855 = vmatmul.mubr.f32.gmra.mrb[0].mxu0 %v3785
      %v3856 = vpop.f32.mrb[0].mxu0
      %v3857 = vadd.f32 %v3782, %v3856
      %v3858 = vpop.f32.mrb[0].mxu0
      %3859 = vmatprep.mubr.f32.mxu0 0.0
      %3860 = vmatmul.mubr.f32.gmra.mrb[0].mxu0 %v3788
      %v3861 = vpop.f32.mrb[0].mxu0
      %v3862 = vadd.f32 %v3782, %v3861
      %v3863 = vpop.f32.mrb[0].mxu0
      %3864 = vdwg.mxu0
      %v3865 = vmul.f32 %v3857, 0.5
      %v3866 = vmul.f32 %v3862, 0.5
      %v3867 = vmul.f32 %v3857, 0.044715
      %v3868 = vmul.f32 %v3862, 0.044715
      %v3869 = vmul.f32 %v3867, %v3857
      %v3870 = vmul.f32 %v3868, %v3862
      %v3871 = vmul.f32 %v3869, %v3857
      %v3872 = vmul.f32 %v3870, %v3862
      %v3873 = vadd.f32 %v3857, %v3871
      %v3874 = vadd.f32 %v3862, %v3872
      %v3875 = vmul.f32 %v3873, 0.7978846
      %v3876 = vmul.f32 %v3874, 0.7978846
      %v3877 = vtanh.pop %v3875
      %v3878 = vtanh.pop %v3876
      %v3879 = vadd.f32 %v3877, 1.0
      %v3880 = vadd.f32 %v3878, 1.0
      %v3881 = vmul.f32 %v3865, %v3879
      %v3882 = vmul.f32 %v3866, %v3880
      %s3883 = scalar_lea.vmem %s13, 64
      %v3884 = vld [vmem:[%s3883] sm:$0xff]
      %v3885 = vld [vmem:[%s3883 + $0x8] sm:$0xff]
      %v3886 = vld [vmem:[%s3883 + $0x10] sm:$0xff]
      %v3887 = vld [vmem:[%s3883 + $0x18] sm:$0xff]
      %v3888 = vld [vmem:[%s3883 + $0x20] sm:$0xff]
      %v3889 = vld [vmem:[%s3883 + $0x28] sm:$0xff]
      %v3890 = vld [vmem:[%s3883 + $0x30] sm:$0xff]
      %v3891 = vld [vmem:[%s3883 + $0x38] sm:$0xff]
      %s3892 = scalar_lea.vmem %s14, 1
      %v3893 = vld [vmem:[%s3892] sm:$0x1]
      %v3895 = vlaneseq
      %v3896 = vshrl.u32 %v3895, 7
      %v3897 = vsub.s32 0, %v3896
      %v3898 = vrot.slane %v3893, %v3897
      %v3901 = vsel %vm2349, %v3881, 0
      %v3904 = vsel %vm2349, %v3882, 0
      %3906 = vmatprep.subr.mxu0 0.0
      %3907 = vmatpush1.msra.mxu0 %v3884
      %3908 = vmatprep.subr.mxu0 0.0
      %3909 = vmatpush1.msra.mxu0 %v3885
      %3910 = vmatprep.subr.mxu0 0.0
      %3911 = vmatpush1.msra.mxu0 %v3886
      %3912 = vmatprep.subr.mxu0 0.0
      %3913 = vmatpush1.msra.mxu0 %v3887
      %3914 = vmatprep.subr.mxu0 0.0
      %3915 = vmatpush1.msra.mxu0 %v3888
      %3916 = vmatprep.subr.mxu0 0.0
      %3917 = vmatpush1.msra.mxu0 %v3889
      %3918 = vmatprep.subr.mxu0 0.0
      %3919 = vmatpush1.msra.mxu0 %v3890
      %3920 = vmatprep.subr.mxu0 0.0
      %3921 = vmatpush1.msra.mxu0 %v3891
      %3922 = vmatprep.subr.mxu0 0.0
      %3923 = vmatpush1.msra.mxu0 0.0
      %3924 = vmatprep.subr.mxu0 0.0
      %3925 = vmatpush1.msra.mxu0 0.0
      %3926 = vmatprep.subr.mxu0 0.0
      %3927 = vmatpush1.msra.mxu0 0.0
      %3928 = vmatprep.subr.mxu0 0.0
      %3929 = vmatpush1.msra.mxu0 0.0
      %3930 = vmatprep.subr.mxu0 0.0
      %3931 = vmatpush1.msra.mxu0 0.0
      %3932 = vmatprep.subr.mxu0 0.0
      %3933 = vmatpush1.msra.mxu0 0.0
      %3934 = vmatprep.subr.mxu0 0.0
      %3935 = vmatpush1.msra.mxu0 0.0
      %3936 = vmatprep.subr.mxu0 0.0
      %3937 = vmatpush1.msra.mxu0 0.0
      %3938 = vmatprep.subr.mxu0 0.0
      %3939 = vmatpush1.msra.mxu0 0.0
      %3940 = vmatprep.subr.mxu0 0.0
      %3941 = vmatpush1.msra.mxu0 0.0
      %3942 = vmatprep.subr.mxu0 0.0
      %3943 = vmatpush1.msra.mxu0 0.0
      %3944 = vmatprep.subr.mxu0 0.0
      %3945 = vmatpush1.msra.mxu0 0.0
      %3946 = vmatprep.subr.mxu0 0.0
      %3947 = vmatpush1.msra.mxu0 0.0
      %3948 = vmatprep.subr.mxu0 0.0
      %3949 = vmatpush1.msra.mxu0 0.0
      %3950 = vmatprep.subr.mxu0 0.0
      %3951 = vmatpush1.msra.mxu0 0.0
      %3952 = vmatprep.subr.mxu0 0.0
      %3953 = vmatpush1.msra.mxu0 0.0
      %3954 = vmatprep.subr.mxu0 0.0
      %3955 = vmatpush1.msra.mxu0 0.0
      %3956 = vmatprep.subr.mxu0 0.0
      %3957 = vmatpush1.msra.mxu0 0.0
      %3958 = vmatprep.subr.mxu0 0.0
      %3959 = vmatpush1.msra.mxu0 0.0
      %3960 = vmatprep.subr.mxu0 0.0
      %3961 = vmatpush1.msra.mxu0 0.0
      %3962 = vmatprep.subr.mxu0 0.0
      %3963 = vmatpush1.msra.mxu0 0.0
      %3964 = vmatprep.subr.mxu0 0.0
      %3965 = vmatpush1.msra.mxu0 0.0
      %3966 = vmatprep.subr.mxu0 0.0
      %3967 = vmatpush1.msra.mxu0 0.0
      %3968 = vmatprep.subr.mxu0 0.0
      %3969 = vmatpush1.msra.mxu0 0.0
      %3970 = vmatprep.mubr.f32.mxu0 0.0
      %3971 = vmatmul.mubr.f32.gmra.mrb[0].mxu0 %v3901
      %v3972 = vpop.f32.mrb[0].mxu0
      %v3973 = vadd.f32 %v3898, %v3972
      %v3974 = vpop.f32.mrb[0].mxu0
      %3975 = vmatprep.mubr.f32.mxu0 0.0
      %3976 = vmatmul.mubr.f32.gmra.mrb[0].mxu0 %v3904
      %v3977 = vpop.f32.mrb[0].mxu0
      %v3978 = vadd.f32 %v3898, %v3977
      %v3979 = vpop.f32.mrb[0].mxu0
      %3980 = vdwg.mxu0
      %s3981 = scalar_lea.vmem %s15, 2
      %v3982 = vld [vmem:[%s3981] sm:$0x3]
      %v3983 = vadd.f32 %v3769, %v3973
      %v3984 = vadd.f32 %v3770, %v3978
      %v3985 = vsel %vm561, %v3983, 0.0
      %3986 = vadd.xlane.f32.xlu0 %v3985
      %v3987 = vpop.xlane.xlu0 %3986
      %v3988 = vsel %vm883, %v3984, 0.0
      %3989 = vadd.xlane.f32.xlu0 %v3988
      %v3990 = vpop.xlane.xlu0 %3989
      %v3991 = vmul.f32 %v3987, %v887
      %v3992 = vmul.f32 %v3990, %v887
      %v3993 = vsub.f32 %v3983, %v3991
      %v3994 = vsub.f32 %v3984, %v3992
      %v3995 = vmul.f32 %v3993, %v3993
      %v3996 = vmul.f32 %v3994, %v3994
      %v3997 = vsel %vm561, %v3995, 0.0
      %3998 = vadd.xlane.f32.xlu0 %v3997
      %v3999 = vpop.xlane.xlu0 %3998
      %v4000 = vsel %vm883, %v3996, 0.0
      %4001 = vadd.xlane.f32.xlu0 %v4000
      %v4002 = vpop.xlane.xlu0 %4001
      %v4003 = vmul.f32 %v3999, %v887
      %v4004 = vmul.f32 %v4002, %v887
      %v4005 = vadd.f32 %v4003, 1e-12
      %v4006 = vadd.f32 %v4004, 1e-12
      %v4007 = vrsqrt.pop %v4005
      %v4008 = vrsqrt.pop %v4006
      %v4009 = vmul.f32 %v3993, %v4007
      %v4010 = vmul.f32 %v3994, %v4008
      %v4011 = vlaneseq
      %v4012 = vshrl.u32 %v4011, 7
      %v4013 = vsub.s32 0, %v4012
      %v4014 = vrot.slane %v3982, %v4013
      %v4015 = vmul.f32 %v4009, %v4014
      %v4016 = vmul.f32 %v4010, %v4014
      %v4017 = vlaneseq
      %v4018 = vshrl.u32 %v4017, 7
      %v4019 = vsub.s32 1, %v4018
      %v4020 = vrot.slane %v3982, %v4019
      %v4021 = vadd.f32 %v4015, %v4020
      %v4022 = vadd.f32 %v4016, %v4020
      %4023 = vst.msk [vmem:[%s535] sm:$0xff] %vm561, %v4021
      %4024 = vst.msk [vmem:[%s535 + $0x8] sm:$0x3f] %vm883, %v4022
      %p4025 = scmp.lt.s32.totalorder %s27, 1
      %s4026 = scalar_select %p4025, %s27, 1
      %s4027 = smul.addr %s4026, 2
      %s4028 = smul.addr %s4027, 8
      %s4029 = scalar_lea.vmem %s16, %s4028
      // Predicated region
      $region85: #{tpu_custom_call.1} parent=83 // pred_check
        %p4030 = pneg %p391
      $region86: #{tpu_custom_call.1} parent=83 // pred_check_branch
        %4032 = sbr.rel (%p4030) target = $region88
      $region87: #{tpu_custom_call.1} parent=83 // pred_region
        _
      $region88: #{tpu_custom_call.1} parent=83 // pred_fallthru
        _
    $region84: #{tpu_custom_call.1} parent=5 // pred_fallthru
      _
    %p4033 = scmp.le.s32.totalorder 2, %s22
    // Predicated region
    $region89: #{tpu_custom_call.1} parent=5 // pred_check
      %p4034 = pneg %p4033
    $region90: #{tpu_custom_call.1} parent=5 // pred_check_branch
      %4036 = sbr.rel (%p4034) target = $region92
    $region91: #{tpu_custom_call.1} parent=5 // pred_region
      %s4037 = ssub.s32 %s22, 2
      // Predicated region
      $region93: #{tpu_custom_call.1} parent=91 // pred_check
        %p4038 = pneg %p397
      $region94: #{tpu_custom_call.1} parent=91 // pred_check_branch
        %4040 = sbr.rel (%p4038) target = $region96
      $region95: #{tpu_custom_call.1} parent=91 // pred_region
        %p4041 = scmp.lt.s32.totalorder %s28, 1
        %s4042 = scalar_select %p4041, %s28, 1
        %s4043 = smul.addr %s4042, 2
        %s4044 = smul.addr %s4043, 8
        %s4045 = scalar_lea.vmem %s16, %s4044
      $region96: #{tpu_custom_call.1} parent=91 // pred_fallthru
        _
    $region92: #{tpu_custom_call.1} parent=5 // pred_fallthru
      _
  $region6: #{tpu_custom_call.1} parent=0 // loop_footer
    %s26 = sadd.s32 1, %s22
  $region7: #{tpu_custom_call.1} parent=0 // loop_footer_branch
    %21 = sbr.rel target = $region3
  $region8: #{tpu_custom_call.1} parent=0 // loop_exit
    _

</llo_original>
